<compile_context>
chip_gen: v6e
topology: v6e:2x2x1
jax: 0.10.0
libtpu: 0.0.40
codegen_flags: <defaults>
</compile_context>

<pallas_src>
import jax
import jax.numpy as jnp
import numpy as np
from jax import lax
from jax.experimental import pallas as pl
from jax.experimental.pallas import tpu as pltpu


# ---------------------------------------------------------------------------
# In-kernel helpers (operate on per-batch 2-D values: (length, channels))
# ---------------------------------------------------------------------------
def _shifted_rows(x):
    """Return (x_prev, x_next): x shifted by +1 / -1 rows with zero boundary.

    Uses pltpu.roll (XLU) plus a one-column (Lc,1) boundary mask -- a single
    vreg of VPU work vs. the old (Lc,Lc) selector matmuls.  Row counts that
    are not sublane-aligned (only conv4's 4-row input) fall back to tiny
    selector matmuls, which lower cleanly at any shape.
    """
    Lc, _ = x.shape
    if Lc % 8 == 0:
        ridx = lax.broadcasted_iota(jnp.int32, (Lc, 1), 0)
        x_prev = jnp.where(ridx == 0, 0.0, pltpu.roll(x, 1, axis=0))
        x_next = jnp.where(ridx == Lc - 1, 0.0, pltpu.roll(x, Lc - 1, axis=0))
    else:
        ri = lax.broadcasted_iota(jnp.int32, (Lc, Lc), 0)
        ci = lax.broadcasted_iota(jnp.int32, (Lc, Lc), 1)
        sel_prev = (ci == ri - 1).astype(jnp.float32)
        sel_next = (ci == ri + 1).astype(jnp.float32)
        x_prev = jnp.dot(sel_prev, x, preferred_element_type=jnp.float32)
        x_next = jnp.dot(sel_next, x, preferred_element_type=jnp.float32)
    return x_prev, x_next


def _conv_relu_bn(x, w_ref, bss_ref):
    """Conv1d(k=3, pad=1) + bias + ReLU + folded BatchNorm (eval).

    w_ref:  (3*Cin, Cout) fused wide-K weight when Cin is 128-aligned,
            otherwise (3, Cin, Cout) (one matmul per tap).
    bss_ref: (3, Cout) -- rows = (bias, bn_scale, bn_shift).
    """
    x_prev, x_next = _shifted_rows(x)
    if len(w_ref.shape) == 2:
        # Fused wide-K matmul: lane-concat stays 128-aligned for these layers.
        xw = jnp.concatenate([x_prev, x, x_next], axis=-1)
        acc = jnp.dot(xw, w_ref[...], preferred_element_type=jnp.float32)
    else:
        acc = jnp.dot(x_prev, w_ref[0], preferred_element_type=jnp.float32)
        acc = acc + jnp.dot(x, w_ref[1], preferred_element_type=jnp.float32)
        acc = acc + jnp.dot(x_next, w_ref[2], preferred_element_type=jnp.float32)
    bss = bss_ref[...]
    y = jnp.maximum(acc + bss[0:1, :], 0.0)          # bias + ReLU
    return y * bss[1:2, :] + bss[2:3, :]             # folded BatchNorm


def _maxpool2(x, even_sel_ref):
    """MaxPool1d(2): m = max(x, roll(x,-1)); select even rows (one matmul)."""
    Lc = x.shape[0]
    m = jnp.maximum(x, pltpu.roll(x, Lc - 1, axis=0))     # m[t] = max(x[t], x[t+1])
    return jnp.dot(even_sel_ref[...], m, preferred_element_type=jnp.float32)


def _fc_softmax(d3, tile_ref, blkm_ref, fcw_ref, fcb_ref, selmax_ref, gsum_ref):
    """Flatten (length-major, FC rows pre-permuted) + Linear + grouped softmax.

    tile_ref: (32, F)  hoisted constant, tile_sel[c, f] = (f % 32 == c)
    blkm_ref: (2L, F)  hoisted constant, blk_mask[l, f] = (f // 32 == l)
    selmax_ref: (n_class, nct, nct) hoisted per-group gather selectors.
    gsum_ref: (nct, nct) group-sum matrix.
    """
    tiled = jnp.dot(d3, tile_ref[...], preferred_element_type=jnp.float32)   # (2L, F)
    flat = jnp.sum(tiled * blkm_ref[...], axis=0, keepdims=True)             # (1, F)
    logits = jnp.dot(flat, fcw_ref[...],
                     preferred_element_type=jnp.float32) + fcb_ref[...]      # (1, nct)

    # Numerically safe grouped softmax: subtract the PER-GROUP max.
    n_class = selmax_ref.shape[0]
    gmax = jnp.dot(logits, selmax_ref[0], preferred_element_type=jnp.float32)
    for k in range(1, n_class):
        gmax = jnp.maximum(
            gmax, jnp.dot(logits, selmax_ref[k], preferred_element_type=jnp.float32))
    e = jnp.exp(logits - gmax)
    denom = jnp.dot(e, gsum_ref[...], preferred_element_type=jnp.float32)
    return e / denom


# ---------------------------------------------------------------------------
# Fused kernel: one grid step == one batch element, everything stays in VMEM.
# ---------------------------------------------------------------------------
def uconv1d_kernel(feat_ref,
                   w1, bss1, w2, bss2, w3, bss3, w4, bss4,
                   wd1, bssd1, wd2, bssd2, wd3, bssd3,
                   pool_a_ref, pool_b_ref, up_ref,
                   tile_ref, blkm_ref, fcw_ref, fcb_ref,
                   selmax_ref, gsum_ref, out_ref):
    x0 = feat_ref[0]                                  # (L, 41)
    c1 = _conv_relu_bn(x0, w1, bss1)                  # (L,   32)
    c2 = _conv_relu_bn(c1, w2, bss2)                  # (L,   64)
    p2 = _maxpool2(c2, pool_a_ref)                    # (L/2, 64)
    c3 = _conv_relu_bn(p2, w3, bss3)                  # (L/2, 128)
    p3 = _maxpool2(c3, pool_b_ref)                    # (L/4, 128)
    c4 = _conv_relu_bn(p3, w4, bss4)                  # (L/4, 256)

    up = jnp.dot(up_ref[...], c4,
                 preferred_element_type=jnp.float32)  # (L/2, 256) nearest x2
    d1 = _conv_relu_bn(up, wd1, bssd1)                # (L/2, 128)
    cat1 = jnp.concatenate([c3, d1], axis=0)          # (L,   128)  8-aligned
    d2 = _conv_relu_bn(cat1, wd2, bssd2)              # (L,   64)   (Upsample(L) == id)
    cat2 = jnp.concatenate([c2, d2], axis=0)          # (2L,  64)   8-aligned
    d3 = _conv_relu_bn(cat2, wd3, bssd3)              # (2L,  32)

    out_ref[0] = _fc_softmax(d3, tile_ref, blkm_ref, fcw_ref, fcb_ref,
                             selmax_ref, gsum_ref)    # (1, (L-1)*nc)


def _full_spec(shape):
    zeros = (0,) * len(shape)
    return pl.BlockSpec(shape, lambda b: zeros)


# ---------------------------------------------------------------------------
# Parameters (deterministic synthetic init; shapes follow UConv1d.__init__)
# ---------------------------------------------------------------------------
def init_params(key, len_subseq, n_class=2):
    def conv_p(k, cin, cout):
        k1, k2, k3, k4 = jax.random.split(k, 4)
        w = jax.random.normal(k1, (3, cin, cout), jnp.float32) * 0.1
        b = jax.random.normal(k2, (cout,), jnp.float32) * 0.1
        gamma = 1.0 + 0.1 * jax.random.normal(k3, (cout,), jnp.float32)
        beta = 0.1 * jax.random.normal(k4, (cout,), jnp.float32)
        running_mean = jnp.zeros((cout,), jnp.float32)
        running_var = jnp.ones((cout,), jnp.float32)
        eps = 1e-5
        scale = gamma / jnp.sqrt(running_var + eps)
        shift = beta - running_mean * scale
        return dict(w=w, b=b, scale=scale, shift=shift)

    ks = jax.random.split(key, 9)
    params = dict(
        conv1=conv_p(ks[0], 20 + 21, 32),
        conv2=conv_p(ks[1], 32, 64),
        conv3=conv_p(ks[2], 64, 128),
        conv4=conv_p(ks[3], 128, 256),
        deconv1=conv_p(ks[4], 256, 128),
        deconv2=conv_p(ks[5], 128, 64),
        deconv3=conv_p(ks[6], 64, 32),
    )
    f_in = 32 * len_subseq * 2
    f_out = (len_subseq - 1) * n_class
    params["fc_w"] = jax.random.normal(ks[7], (f_in, f_out), jnp.float32) * 0.05
    params["fc_b"] = jax.random.normal(ks[8], (f_out,), jnp.float32) * 0.05
    return params


def prepare_params(params, len_subseq, n_class=2):
    """One-time packing: bias/scale/shift packed per layer; wide-K weights for
    128-aligned layers; torch channel-major Flatten folded into a static row
    permutation of the FC weight; all selector matrices hoisted to host."""
    L = len_subseq
    assert L % 4 == 0, "len_subseq must be divisible by 4 (two max-pools)"
    C = 32                                   # deconv3 output channels (fixed)
    assert params["fc_w"].shape[0] == C * 2 * L
    nct = (L - 1) * n_class
    F = 2 * L * C

    def pack(p, fuse):
        w = p["w"]                                           # (3, cin, cout)
        if fuse:                                             # prev|center|next
            w = jnp.concatenate([w[0], w[1], w[2]], axis=0)  # (3*cin, cout)
        return dict(w=w,
                    bss=jnp.stack([p["b"], p["scale"], p["shift"]], axis=0))

    convs = []
    for name in ("conv1", "conv2", "conv3", "conv4",
                 "deconv1", "deconv2", "deconv3"):
        cin = params[name]["w"].shape[1]
        convs.append(pack(params[name], fuse=(cin % 128 == 0)))

    # fc_w rows are torch-flat indexed channel-major (c*2L + l); permute to
    # length-major (l*32 + c) so the kernel consumes d3 (2L, 32) directly.
    fc_w = params["fc_w"]
    w_perm = (fc_w.reshape(C, 2 * L, nct).transpose(1, 0, 2).reshape(F, nct))

    # Flatten selectors (hoisted constants): flat[l*32 + c] = d3[l, c].
    f_idx = np.arange(F)
    tile_sel = (f_idx[None, :] % C == np.arange(C)[:, None]).astype(np.float32)
    blk_mask = (f_idx[None, :] // C == np.arange(2 * L)[:, None]).astype(np.float32)

    # Pool even-row selectors and nearest-x2 upsample selector (constants).
    def even_sel(lc):
        t = lc // 2
        return (np.arange(lc)[None, :] == 2 * np.arange(t)[:, None]).astype(np.float32)

    def up_sel(t):
        return (np.arange(t)[None, :] ==
                (np.arange(2 * t)[:, None] // 2)).astype(np.float32)

    # Grouped-softmax machinery: group-sum matrix and per-group max gather.
    gid = np.arange(nct) // n_class
    gsum = (gid[:, None] == gid[None, :]).astype(np.float32)
    selmax = np.zeros((n_class, nct, nct), np.float32)
    for k in range(n_class):
        src = (np.arange(nct) // n_class) * n_class + k
        selmax[k, src, np.arange(nct)] = 1.0

    return dict(
        convs=convs,
        pool_sel_a=jnp.asarray(even_sel(L)),
        pool_sel_b=jnp.asarray(even_sel(L // 2)),
        up_sel=jnp.asarray(up_sel(L // 4)),
        tile_sel=jnp.asarray(tile_sel),
        blk_mask=jnp.asarray(blk_mask),
        fc_w=w_perm,
        fc_b=params["fc_b"].reshape(1, nct),
        selmax=jnp.asarray(selmax),
        gsum=jnp.asarray(gsum),
    )


# ---------------------------------------------------------------------------
# Forward pass (single fused pallas_call) — mirrors UConv1d.forward (eval mode)
# ---------------------------------------------------------------------------
def uconv1d_forward(prepped, seq, pssm):
    B, L, _ = seq.shape
    nct = prepped["fc_b"].shape[-1]
    nc = nct // (L - 1)

    # Model inputs -> channels-last features (B, L, 41); only plain-XLA op.
    feats = jnp.concatenate(
        [seq, jnp.transpose(pssm, (0, 2, 1))], axis=-1).astype(jnp.float32)
    cin0 = feats.shape[-1]

    conv_args, conv_specs = [], []
    for layer in prepped["convs"]:
        conv_args += [layer["w"], layer["bss"]]
        conv_specs += [_full_spec(layer["w"].shape),
                       _full_spec(layer["bss"].shape)]

    const_names = ("pool_sel_a", "pool_sel_b", "up_sel",
                   "tile_sel", "blk_mask", "fc_w", "fc_b", "selmax", "gsum")
    const_args = [prepped[n] for n in const_names]
    const_specs = [_full_spec(prepped[n].shape) for n in const_names]

    args = [feats] + conv_args + const_args
    in_specs = ([pl.BlockSpec((1, L, cin0), lambda b: (b, 0, 0))]
                + conv_specs + const_specs)

    out = pl.pallas_call(
        uconv1d_kernel,
        out_shape=jax.ShapeDtypeStruct((B, 1, nct), jnp.float32),
        grid=(B,),
        in_specs=in_specs,
        out_specs=pl.BlockSpec((1, 1, nct), lambda b: (b, 0, 0)),
        compiler_params=pltpu.CompilerParams(
            dimension_semantics=("parallel",)),
    )(*args)

    # torch: fc(...).view(-1, n_class) -> softmax rows; row-major, so free.
    return out.reshape(B * (L - 1), nc)


# ---------------------------------------------------------------------------
# Pure-JAX reference (same math, no Pallas) for a correctness check
# ---------------------------------------------------------------------------
def _conv_ref(x_cl, w, b, scale, shift):
    L = x_cl.shape[1]
    x_pad = jnp.pad(x_cl, ((0, 0), (1, 1), (0, 0)))
    acc = sum(jnp.einsum("blc,cd->bld", x_pad[:, k:k + L, :], w[k])
              for k in range(3))
    y = jnp.maximum(acc + b.reshape(1, 1, -1), 0.0)
    return y * scale.reshape(1, 1, -1) + shift.reshape(1, 1, -1)


def uconv1d_reference(params, seq, pssm, n_class=2):
    B, L, _ = seq.shape
    features = jnp.concatenate([seq, jnp.transpose(pssm, (0, 2, 1))], axis=-1)
    c1 = _conv_ref(features, **params["conv1"])
    c2 = _conv_ref(c1, **params["conv2"])
    p2 = jnp.max(c2.reshape(B, L // 2, 2, -1), axis=2)
    c3 = _conv_ref(p2, **params["conv3"])
    p3 = jnp.max(c3.reshape(B, L // 4, 2, -1), axis=2)
    c4 = _conv_ref(p3, **params["conv4"])
    d1 = _conv_ref(jnp.repeat(c4, 2, axis=1), **params["deconv1"])
    cat1 = jnp.concatenate([c3, d1], axis=1)
    d2 = _conv_ref(cat1, **params["deconv2"])
    cat2 = jnp.concatenate([c2, d2], axis=1)
    d3 = _conv_ref(cat2, **params["deconv3"])
    flat = jnp.transpose(d3, (0, 2, 1)).reshape(B, 32 * 2 * L)
    logits = (flat @ params["fc_w"] + params["fc_b"]).reshape(B * (L - 1),
                                                              n_class)
    return jax.nn.softmax(logits, axis=-1)


# ---------------------------------------------------------------------------
if __name__ == "__main__":
    L = 16        # len_subseq (must be divisible by 4 for the two pools)
    B = 2
    N_CLASS = 2

    key = jax.random.PRNGKey(0)
    k_seq, k_pssm, k_params = jax.random.split(key, 3)
    seq = jax.random.normal(k_seq, (B, L, 20), jnp.float32)
    pssm = jax.random.normal(k_pssm, (B, 21, L), jnp.float32)

    params = init_params(k_params, L, N_CLASS)
    prepped = prepare_params(params, L, N_CLASS)

    fwd = jax.jit(uconv1d_forward)
    out = jax.block_until_ready(fwd(prepped, seq, pssm))

    assert out.shape == (B * (L - 1), N_CLASS), out.shape
    assert np.all(np.isfinite(np.asarray(out)))
    # softmax rows sum to 1
    np.testing.assert_allclose(np.asarray(out).sum(-1), 1.0, atol=1e-5)
    # match the pure-JAX reference
    ref = np.asarray(uconv1d_reference(params, seq, pssm, N_CLASS))
    np.testing.assert_allclose(np.asarray(out), ref, rtol=2e-3, atol=2e-3)

    print("KERNEL_OK")
</pallas_src>

<mosaic_0001>
module attributes {stable_mosaic.version = 11 : i64} {
  func.func @uconv1d_kernel(%arg0: i32, %arg1: memref<1x16x41xf32, #tpu.memory_space<vmem>>, %arg2: memref<3x41x32xf32, #tpu.memory_space<vmem>>, %arg3: memref<3x32xf32, #tpu.memory_space<vmem>>, %arg4: memref<3x32x64xf32, #tpu.memory_space<vmem>>, %arg5: memref<3x64xf32, #tpu.memory_space<vmem>>, %arg6: memref<3x64x128xf32, #tpu.memory_space<vmem>>, %arg7: memref<3x128xf32, #tpu.memory_space<vmem>>, %arg8: memref<384x256xf32, #tpu.memory_space<vmem>>, %arg9: memref<3x256xf32, #tpu.memory_space<vmem>>, %arg10: memref<768x128xf32, #tpu.memory_space<vmem>>, %arg11: memref<3x128xf32, #tpu.memory_space<vmem>>, %arg12: memref<384x64xf32, #tpu.memory_space<vmem>>, %arg13: memref<3x64xf32, #tpu.memory_space<vmem>>, %arg14: memref<3x64x32xf32, #tpu.memory_space<vmem>>, %arg15: memref<3x32xf32, #tpu.memory_space<vmem>>, %arg16: memref<8x16xf32, #tpu.memory_space<vmem>>, %arg17: memref<4x8xf32, #tpu.memory_space<vmem>>, %arg18: memref<8x4xf32, #tpu.memory_space<vmem>>, %arg19: memref<32x1024xf32, #tpu.memory_space<vmem>>, %arg20: memref<32x1024xf32, #tpu.memory_space<vmem>>, %arg21: memref<1024x30xf32, #tpu.memory_space<vmem>>, %arg22: memref<1x30xf32, #tpu.memory_space<vmem>>, %arg23: memref<2x30x30xf32, #tpu.memory_space<vmem>>, %arg24: memref<30x30xf32, #tpu.memory_space<vmem>>, %arg25: memref<1x1x30xf32, #tpu.memory_space<vmem>>) attributes {dimension_semantics = [#tpu.dimension_semantics<parallel>], iteration_bounds = array<i64: 2>, scalar_prefetch = 0 : i64, scratch_operands = 0 : i64, tpu.core_type = #tpu.core_type<tc>, window_params = [{transform_indices = @transform_0, window_bounds = array<i64: 1, 16, 41>}, {pipeline_mode = #tpu.pipeline_mode<synchronous>, transform_indices = @transform_1, window_bounds = array<i64: 3, 41, 32>}, {pipeline_mode = #tpu.pipeline_mode<synchronous>, transform_indices = @transform_2, window_bounds = array<i64: 3, 32>}, {pipeline_mode = #tpu.pipeline_mode<synchronous>, transform_indices = @transform_3, window_bounds = array<i64: 3, 32, 64>}, {pipeline_mode = #tpu.pipeline_mode<synchronous>, transform_indices = @transform_4, window_bounds = array<i64: 3, 64>}, {pipeline_mode = #tpu.pipeline_mode<synchronous>, transform_indices = @transform_5, window_bounds = array<i64: 3, 64, 128>}, {pipeline_mode = #tpu.pipeline_mode<synchronous>, transform_indices = @transform_6, window_bounds = array<i64: 3, 128>}, {pipeline_mode = #tpu.pipeline_mode<synchronous>, transform_indices = @transform_7, window_bounds = array<i64: 384, 256>}, {pipeline_mode = #tpu.pipeline_mode<synchronous>, transform_indices = @transform_8, window_bounds = array<i64: 3, 256>}, {pipeline_mode = #tpu.pipeline_mode<synchronous>, transform_indices = @transform_9, window_bounds = array<i64: 768, 128>}, {pipeline_mode = #tpu.pipeline_mode<synchronous>, transform_indices = @transform_10, window_bounds = array<i64: 3, 128>}, {pipeline_mode = #tpu.pipeline_mode<synchronous>, transform_indices = @transform_11, window_bounds = array<i64: 384, 64>}, {pipeline_mode = #tpu.pipeline_mode<synchronous>, transform_indices = @transform_12, window_bounds = array<i64: 3, 64>}, {pipeline_mode = #tpu.pipeline_mode<synchronous>, transform_indices = @transform_13, window_bounds = array<i64: 3, 64, 32>}, {pipeline_mode = #tpu.pipeline_mode<synchronous>, transform_indices = @transform_14, window_bounds = array<i64: 3, 32>}, {pipeline_mode = #tpu.pipeline_mode<synchronous>, transform_indices = @transform_15, window_bounds = array<i64: 8, 16>}, {pipeline_mode = #tpu.pipeline_mode<synchronous>, transform_indices = @transform_16, window_bounds = array<i64: 4, 8>}, {pipeline_mode = #tpu.pipeline_mode<synchronous>, transform_indices = @transform_17, window_bounds = array<i64: 8, 4>}, {pipeline_mode = #tpu.pipeline_mode<synchronous>, transform_indices = @transform_18, window_bounds = array<i64: 32, 1024>}, {pipeline_mode = #tpu.pipeline_mode<synchronous>, transform_indices = @transform_19, window_bounds = array<i64: 32, 1024>}, {pipeline_mode = #tpu.pipeline_mode<synchronous>, transform_indices = @transform_20, window_bounds = array<i64: 1024, 30>}, {pipeline_mode = #tpu.pipeline_mode<synchronous>, transform_indices = @transform_21, window_bounds = array<i64: 1, 30>}, {pipeline_mode = #tpu.pipeline_mode<synchronous>, transform_indices = @transform_22, window_bounds = array<i64: 2, 30, 30>}, {pipeline_mode = #tpu.pipeline_mode<synchronous>, transform_indices = @transform_23, window_bounds = array<i64: 30, 30>}, {transform_indices = @transform_24, window_bounds = array<i64: 1, 1, 30>}]} {
    %c0 = arith.constant 0 : index
    %c0_0 = arith.constant 0 : index
    %c0_1 = arith.constant 0 : index
    %0 = vector.load %arg1[%c0, %c0_0, %c0_1] : memref<1x16x41xf32, #tpu.memory_space<vmem>>, vector<1x16x41xf32>
    %1 = vector.shape_cast %0 : vector<1x16x41xf32> to vector<16x41xf32>
    %2 = tpu.iota {dimensions = array<i32: 0>} : vector<16x1xi32>
    %c0_i32 = arith.constant 0 : i32
    %3 = vector.broadcast %c0_i32 : i32 to vector<16x1xi32>
    %4 = arith.cmpi eq, %2, %3 : vector<16x1xi32>
    %c1_i32 = arith.constant 1 : i32
    %5 = tpu.dynamic_rotate %1 by %c1_i32 dim 0 : vector<16x41xf32>, i32 -> vector<16x41xf32>
    %cst = arith.constant 0.000000e+00 : f32
    %6 = vector.shape_cast %4 : vector<16x1xi1> to vector<16x1xi1>
    %7 = vector.broadcast %6 : vector<16x1xi1> to vector<16x41xi1>
    %8 = vector.broadcast %cst : f32 to vector<16x41xf32>
    %9 = arith.select %7, %8, %5 : vector<16x41xi1>, vector<16x41xf32>
    %c15_i32 = arith.constant 15 : i32
    %10 = vector.broadcast %c15_i32 : i32 to vector<16x1xi32>
    %11 = arith.cmpi eq, %2, %10 : vector<16x1xi32>
    %c15_i32_2 = arith.constant 15 : i32
    %12 = tpu.dynamic_rotate %1 by %c15_i32_2 dim 0 : vector<16x41xf32>, i32 -> vector<16x41xf32>
    %cst_3 = arith.constant 0.000000e+00 : f32
    %13 = vector.shape_cast %11 : vector<16x1xi1> to vector<16x1xi1>
    %14 = vector.broadcast %13 : vector<16x1xi1> to vector<16x41xi1>
    %15 = vector.broadcast %cst_3 : f32 to vector<16x41xf32>
    %16 = arith.select %14, %15, %12 : vector<16x41xi1>, vector<16x41xf32>
    %c0_4 = arith.constant 0 : index
    %c0_5 = arith.constant 0 : index
    %c0_6 = arith.constant 0 : index
    %17 = vector.load %arg2[%c0_4, %c0_5, %c0_6] : memref<3x41x32xf32, #tpu.memory_space<vmem>>, vector<1x41x32xf32>
    %18 = vector.shape_cast %17 : vector<1x41x32xf32> to vector<41x32xf32>
    %cst_7 = arith.constant dense<0.000000e+00> : vector<16x32xf32>
    %19 = tpu.matmul %9, %18, %cst_7 {dimension_numbers = #tpu.dot_dimension_numbers<[1], [0], [0], [1], [0, 0, 1, 1], [], []>} : vector<16x41xf32>, vector<41x32xf32>, vector<16x32xf32> -> vector<16x32xf32>
    %c1 = arith.constant 1 : index
    %c0_8 = arith.constant 0 : index
    %c0_9 = arith.constant 0 : index
    %20 = vector.load %arg2[%c1, %c0_8, %c0_9] : memref<3x41x32xf32, #tpu.memory_space<vmem>>, vector<1x41x32xf32>
    %21 = vector.shape_cast %20 : vector<1x41x32xf32> to vector<41x32xf32>
    %cst_10 = arith.constant dense<0.000000e+00> : vector<16x32xf32>
    %22 = tpu.matmul %1, %21, %cst_10 {dimension_numbers = #tpu.dot_dimension_numbers<[1], [0], [0], [1], [0, 0, 1, 1], [], []>} : vector<16x41xf32>, vector<41x32xf32>, vector<16x32xf32> -> vector<16x32xf32>
    %23 = arith.addf %19, %22 : vector<16x32xf32>
    %c2 = arith.constant 2 : index
    %c0_11 = arith.constant 0 : index
    %c0_12 = arith.constant 0 : index
    %24 = vector.load %arg2[%c2, %c0_11, %c0_12] : memref<3x41x32xf32, #tpu.memory_space<vmem>>, vector<1x41x32xf32>
    %25 = vector.shape_cast %24 : vector<1x41x32xf32> to vector<41x32xf32>
    %cst_13 = arith.constant dense<0.000000e+00> : vector<16x32xf32>
    %26 = tpu.matmul %16, %25, %cst_13 {dimension_numbers = #tpu.dot_dimension_numbers<[1], [0], [0], [1], [0, 0, 1, 1], [], []>} : vector<16x41xf32>, vector<41x32xf32>, vector<16x32xf32> -> vector<16x32xf32>
    %27 = arith.addf %23, %26 : vector<16x32xf32>
    %c0_14 = arith.constant 0 : index
    %c0_15 = arith.constant 0 : index
    %28 = vector.load %arg3[%c0_14, %c0_15] : memref<3x32xf32, #tpu.memory_space<vmem>>, vector<3x32xf32>
    %29 = vector.extract_strided_slice %28 {offsets = [0, 0], sizes = [1, 32], strides = [1, 1]} : vector<3x32xf32> to vector<1x32xf32>
    %30 = vector.broadcast %29 : vector<1x32xf32> to vector<16x32xf32>
    %31 = arith.addf %27, %30 : vector<16x32xf32>
    %cst_16 = arith.constant 0.000000e+00 : f32
    %32 = vector.broadcast %cst_16 : f32 to vector<16x32xf32>
    %33 = arith.maximumf %31, %32 : vector<16x32xf32>
    %34 = vector.extract_strided_slice %28 {offsets = [1, 0], sizes = [1, 32], strides = [1, 1]} : vector<3x32xf32> to vector<1x32xf32>
    %35 = vector.broadcast %34 : vector<1x32xf32> to vector<16x32xf32>
    %36 = arith.mulf %33, %35 : vector<16x32xf32>
    %37 = vector.extract_strided_slice %28 {offsets = [2, 0], sizes = [1, 32], strides = [1, 1]} : vector<3x32xf32> to vector<1x32xf32>
    %38 = vector.broadcast %37 : vector<1x32xf32> to vector<16x32xf32>
    %39 = arith.addf %36, %38 : vector<16x32xf32>
    %40 = tpu.iota {dimensions = array<i32: 0>} : vector<16x1xi32>
    %c0_i32_17 = arith.constant 0 : i32
    %41 = vector.broadcast %c0_i32_17 : i32 to vector<16x1xi32>
    %42 = arith.cmpi eq, %40, %41 : vector<16x1xi32>
    %c1_i32_18 = arith.constant 1 : i32
    %43 = tpu.dynamic_rotate %39 by %c1_i32_18 dim 0 : vector<16x32xf32>, i32 -> vector<16x32xf32>
    %cst_19 = arith.constant 0.000000e+00 : f32
    %44 = vector.shape_cast %42 : vector<16x1xi1> to vector<16x1xi1>
    %45 = vector.broadcast %44 : vector<16x1xi1> to vector<16x32xi1>
    %46 = vector.broadcast %cst_19 : f32 to vector<16x32xf32>
    %47 = arith.select %45, %46, %43 : vector<16x32xi1>, vector<16x32xf32>
    %c15_i32_20 = arith.constant 15 : i32
    %48 = vector.broadcast %c15_i32_20 : i32 to vector<16x1xi32>
    %49 = arith.cmpi eq, %40, %48 : vector<16x1xi32>
    %c15_i32_21 = arith.constant 15 : i32
    %50 = tpu.dynamic_rotate %39 by %c15_i32_21 dim 0 : vector<16x32xf32>, i32 -> vector<16x32xf32>
    %cst_22 = arith.constant 0.000000e+00 : f32
    %51 = vector.shape_cast %49 : vector<16x1xi1> to vector<16x1xi1>
    %52 = vector.broadcast %51 : vector<16x1xi1> to vector<16x32xi1>
    %53 = vector.broadcast %cst_22 : f32 to vector<16x32xf32>
    %54 = arith.select %52, %53, %50 : vector<16x32xi1>, vector<16x32xf32>
    %c0_23 = arith.constant 0 : index
    %c0_24 = arith.constant 0 : index
    %c0_25 = arith.constant 0 : index
    %55 = vector.load %arg4[%c0_23, %c0_24, %c0_25] : memref<3x32x64xf32, #tpu.memory_space<vmem>>, vector<1x32x64xf32>
    %56 = vector.shape_cast %55 : vector<1x32x64xf32> to vector<32x64xf32>
    %cst_26 = arith.constant dense<0.000000e+00> : vector<16x64xf32>
    %57 = tpu.matmul %47, %56, %cst_26 {dimension_numbers = #tpu.dot_dimension_numbers<[1], [0], [0], [1], [0, 0, 1, 1], [], []>} : vector<16x32xf32>, vector<32x64xf32>, vector<16x64xf32> -> vector<16x64xf32>
    %c1_27 = arith.constant 1 : index
    %c0_28 = arith.constant 0 : index
    %c0_29 = arith.constant 0 : index
    %58 = vector.load %arg4[%c1_27, %c0_28, %c0_29] : memref<3x32x64xf32, #tpu.memory_space<vmem>>, vector<1x32x64xf32>
    %59 = vector.shape_cast %58 : vector<1x32x64xf32> to vector<32x64xf32>
    %cst_30 = arith.constant dense<0.000000e+00> : vector<16x64xf32>
    %60 = tpu.matmul %39, %59, %cst_30 {dimension_numbers = #tpu.dot_dimension_numbers<[1], [0], [0], [1], [0, 0, 1, 1], [], []>} : vector<16x32xf32>, vector<32x64xf32>, vector<16x64xf32> -> vector<16x64xf32>
    %61 = arith.addf %57, %60 : vector<16x64xf32>
    %c2_31 = arith.constant 2 : index
    %c0_32 = arith.constant 0 : index
    %c0_33 = arith.constant 0 : index
    %62 = vector.load %arg4[%c2_31, %c0_32, %c0_33] : memref<3x32x64xf32, #tpu.memory_space<vmem>>, vector<1x32x64xf32>
    %63 = vector.shape_cast %62 : vector<1x32x64xf32> to vector<32x64xf32>
    %cst_34 = arith.constant dense<0.000000e+00> : vector<16x64xf32>
    %64 = tpu.matmul %54, %63, %cst_34 {dimension_numbers = #tpu.dot_dimension_numbers<[1], [0], [0], [1], [0, 0, 1, 1], [], []>} : vector<16x32xf32>, vector<32x64xf32>, vector<16x64xf32> -> vector<16x64xf32>
    %65 = arith.addf %61, %64 : vector<16x64xf32>
    %c0_35 = arith.constant 0 : index
    %c0_36 = arith.constant 0 : index
    %66 = vector.load %arg5[%c0_35, %c0_36] : memref<3x64xf32, #tpu.memory_space<vmem>>, vector<3x64xf32>
    %67 = vector.extract_strided_slice %66 {offsets = [0, 0], sizes = [1, 64], strides = [1, 1]} : vector<3x64xf32> to vector<1x64xf32>
    %68 = vector.broadcast %67 : vector<1x64xf32> to vector<16x64xf32>
    %69 = arith.addf %65, %68 : vector<16x64xf32>
    %cst_37 = arith.constant 0.000000e+00 : f32
    %70 = vector.broadcast %cst_37 : f32 to vector<16x64xf32>
    %71 = arith.maximumf %69, %70 : vector<16x64xf32>
    %72 = vector.extract_strided_slice %66 {offsets = [1, 0], sizes = [1, 64], strides = [1, 1]} : vector<3x64xf32> to vector<1x64xf32>
    %73 = vector.broadcast %72 : vector<1x64xf32> to vector<16x64xf32>
    %74 = arith.mulf %71, %73 : vector<16x64xf32>
    %75 = vector.extract_strided_slice %66 {offsets = [2, 0], sizes = [1, 64], strides = [1, 1]} : vector<3x64xf32> to vector<1x64xf32>
    %76 = vector.broadcast %75 : vector<1x64xf32> to vector<16x64xf32>
    %77 = arith.addf %74, %76 : vector<16x64xf32>
    %c15_i32_38 = arith.constant 15 : i32
    %78 = tpu.dynamic_rotate %77 by %c15_i32_38 dim 0 : vector<16x64xf32>, i32 -> vector<16x64xf32>
    %79 = arith.maximumf %77, %78 : vector<16x64xf32>
    %c0_39 = arith.constant 0 : index
    %c0_40 = arith.constant 0 : index
    %80 = vector.load %arg16[%c0_39, %c0_40] : memref<8x16xf32, #tpu.memory_space<vmem>>, vector<8x16xf32>
    %cst_41 = arith.constant dense<0.000000e+00> : vector<8x64xf32>
    %81 = tpu.matmul %80, %79, %cst_41 {dimension_numbers = #tpu.dot_dimension_numbers<[1], [0], [0], [1], [0, 0, 1, 1], [], []>} : vector<8x16xf32>, vector<16x64xf32>, vector<8x64xf32> -> vector<8x64xf32>
    %82 = tpu.iota {dimensions = array<i32: 0>} : vector<8x1xi32>
    %c0_i32_42 = arith.constant 0 : i32
    %83 = vector.broadcast %c0_i32_42 : i32 to vector<8x1xi32>
    %84 = arith.cmpi eq, %82, %83 : vector<8x1xi32>
    %c1_i32_43 = arith.constant 1 : i32
    %85 = tpu.dynamic_rotate %81 by %c1_i32_43 dim 0 : vector<8x64xf32>, i32 -> vector<8x64xf32>
    %cst_44 = arith.constant 0.000000e+00 : f32
    %86 = vector.shape_cast %84 : vector<8x1xi1> to vector<8x1xi1>
    %87 = vector.broadcast %86 : vector<8x1xi1> to vector<8x64xi1>
    %88 = vector.broadcast %cst_44 : f32 to vector<8x64xf32>
    %89 = arith.select %87, %88, %85 : vector<8x64xi1>, vector<8x64xf32>
    %c7_i32 = arith.constant 7 : i32
    %90 = vector.broadcast %c7_i32 : i32 to vector<8x1xi32>
    %91 = arith.cmpi eq, %82, %90 : vector<8x1xi32>
    %c7_i32_45 = arith.constant 7 : i32
    %92 = tpu.dynamic_rotate %81 by %c7_i32_45 dim 0 : vector<8x64xf32>, i32 -> vector<8x64xf32>
    %cst_46 = arith.constant 0.000000e+00 : f32
    %93 = vector.shape_cast %91 : vector<8x1xi1> to vector<8x1xi1>
    %94 = vector.broadcast %93 : vector<8x1xi1> to vector<8x64xi1>
    %95 = vector.broadcast %cst_46 : f32 to vector<8x64xf32>
    %96 = arith.select %94, %95, %92 : vector<8x64xi1>, vector<8x64xf32>
    %c0_47 = arith.constant 0 : index
    %c0_48 = arith.constant 0 : index
    %c0_49 = arith.constant 0 : index
    %97 = vector.load %arg6[%c0_47, %c0_48, %c0_49] : memref<3x64x128xf32, #tpu.memory_space<vmem>>, vector<1x64x128xf32>
    %98 = vector.shape_cast %97 : vector<1x64x128xf32> to vector<64x128xf32>
    %cst_50 = arith.constant dense<0.000000e+00> : vector<8x128xf32>
    %99 = tpu.matmul %89, %98, %cst_50 {dimension_numbers = #tpu.dot_dimension_numbers<[1], [0], [0], [1], [0, 0, 1, 1], [], []>} : vector<8x64xf32>, vector<64x128xf32>, vector<8x128xf32> -> vector<8x128xf32>
    %c1_51 = arith.constant 1 : index
    %c0_52 = arith.constant 0 : index
    %c0_53 = arith.constant 0 : index
    %100 = vector.load %arg6[%c1_51, %c0_52, %c0_53] : memref<3x64x128xf32, #tpu.memory_space<vmem>>, vector<1x64x128xf32>
    %101 = vector.shape_cast %100 : vector<1x64x128xf32> to vector<64x128xf32>
    %cst_54 = arith.constant dense<0.000000e+00> : vector<8x128xf32>
    %102 = tpu.matmul %81, %101, %cst_54 {dimension_numbers = #tpu.dot_dimension_numbers<[1], [0], [0], [1], [0, 0, 1, 1], [], []>} : vector<8x64xf32>, vector<64x128xf32>, vector<8x128xf32> -> vector<8x128xf32>
    %103 = arith.addf %99, %102 : vector<8x128xf32>
    %c2_55 = arith.constant 2 : index
    %c0_56 = arith.constant 0 : index
    %c0_57 = arith.constant 0 : index
    %104 = vector.load %arg6[%c2_55, %c0_56, %c0_57] : memref<3x64x128xf32, #tpu.memory_space<vmem>>, vector<1x64x128xf32>
    %105 = vector.shape_cast %104 : vector<1x64x128xf32> to vector<64x128xf32>
    %cst_58 = arith.constant dense<0.000000e+00> : vector<8x128xf32>
    %106 = tpu.matmul %96, %105, %cst_58 {dimension_numbers = #tpu.dot_dimension_numbers<[1], [0], [0], [1], [0, 0, 1, 1], [], []>} : vector<8x64xf32>, vector<64x128xf32>, vector<8x128xf32> -> vector<8x128xf32>
    %107 = arith.addf %103, %106 : vector<8x128xf32>
    %c0_59 = arith.constant 0 : index
    %c0_60 = arith.constant 0 : index
    %108 = vector.load %arg7[%c0_59, %c0_60] : memref<3x128xf32, #tpu.memory_space<vmem>>, vector<3x128xf32>
    %109 = vector.extract_strided_slice %108 {offsets = [0, 0], sizes = [1, 128], strides = [1, 1]} : vector<3x128xf32> to vector<1x128xf32>
    %110 = vector.broadcast %109 : vector<1x128xf32> to vector<8x128xf32>
    %111 = arith.addf %107, %110 : vector<8x128xf32>
    %cst_61 = arith.constant 0.000000e+00 : f32
    %112 = vector.broadcast %cst_61 : f32 to vector<8x128xf32>
    %113 = arith.maximumf %111, %112 : vector<8x128xf32>
    %114 = vector.extract_strided_slice %108 {offsets = [1, 0], sizes = [1, 128], strides = [1, 1]} : vector<3x128xf32> to vector<1x128xf32>
    %115 = vector.broadcast %114 : vector<1x128xf32> to vector<8x128xf32>
    %116 = arith.mulf %113, %115 : vector<8x128xf32>
    %117 = vector.extract_strided_slice %108 {offsets = [2, 0], sizes = [1, 128], strides = [1, 1]} : vector<3x128xf32> to vector<1x128xf32>
    %118 = vector.broadcast %117 : vector<1x128xf32> to vector<8x128xf32>
    %119 = arith.addf %116, %118 : vector<8x128xf32>
    %c7_i32_62 = arith.constant 7 : i32
    %120 = tpu.dynamic_rotate %119 by %c7_i32_62 dim 0 : vector<8x128xf32>, i32 -> vector<8x128xf32>
    %121 = arith.maximumf %119, %120 : vector<8x128xf32>
    %c0_63 = arith.constant 0 : index
    %c0_64 = arith.constant 0 : index
    %122 = vector.load %arg17[%c0_63, %c0_64] : memref<4x8xf32, #tpu.memory_space<vmem>>, vector<4x8xf32>
    %cst_65 = arith.constant dense<0.000000e+00> : vector<4x128xf32>
    %123 = tpu.matmul %122, %121, %cst_65 {dimension_numbers = #tpu.dot_dimension_numbers<[1], [0], [0], [1], [0, 0, 1, 1], [], []>} : vector<4x8xf32>, vector<8x128xf32>, vector<4x128xf32> -> vector<4x128xf32>
    %124 = tpu.iota {dimensions = array<i32: 0>} : vector<4x4xi32>
    %125 = tpu.iota {dimensions = array<i32: 1>} : vector<4x4xi32>
    %c1_i32_66 = arith.constant 1 : i32
    %126 = vector.broadcast %c1_i32_66 : i32 to vector<4x4xi32>
    %127 = arith.subi %124, %126 : vector<4x4xi32>
    %128 = arith.cmpi eq, %125, %127 : vector<4x4xi32>
    %129 = arith.extui %128 : vector<4x4xi1> to vector<4x4xi32>
    %130 = arith.sitofp %129 : vector<4x4xi32> to vector<4x4xf32>
    %c1_i32_67 = arith.constant 1 : i32
    %131 = vector.broadcast %c1_i32_67 : i32 to vector<4x4xi32>
    %132 = arith.addi %124, %131 : vector<4x4xi32>
    %133 = arith.cmpi eq, %125, %132 : vector<4x4xi32>
    %134 = arith.extui %133 : vector<4x4xi1> to vector<4x4xi32>
    %135 = arith.sitofp %134 : vector<4x4xi32> to vector<4x4xf32>
    %cst_68 = arith.constant dense<0.000000e+00> : vector<4x128xf32>
    %136 = tpu.matmul %130, %123, %cst_68 {dimension_numbers = #tpu.dot_dimension_numbers<[1], [0], [0], [1], [0, 0, 1, 1], [], []>} : vector<4x4xf32>, vector<4x128xf32>, vector<4x128xf32> -> vector<4x128xf32>
    %cst_69 = arith.constant dense<0.000000e+00> : vector<4x128xf32>
    %137 = tpu.matmul %135, %123, %cst_69 {dimension_numbers = #tpu.dot_dimension_numbers<[1], [0], [0], [1], [0, 0, 1, 1], [], []>} : vector<4x4xf32>, vector<4x128xf32>, vector<4x128xf32> -> vector<4x128xf32>
    %138 = tpu.concatenate %136, %123, %137 in 1 : vector<4x128xf32>, vector<4x128xf32>, vector<4x128xf32> -> vector<4x384xf32>
    %c0_70 = arith.constant 0 : index
    %c0_71 = arith.constant 0 : index
    %139 = vector.load %arg8[%c0_70, %c0_71] : memref<384x256xf32, #tpu.memory_space<vmem>>, vector<384x256xf32>
    %cst_72 = arith.constant dense<0.000000e+00> : vector<4x256xf32>
    %140 = tpu.matmul %138, %139, %cst_72 {dimension_numbers = #tpu.dot_dimension_numbers<[1], [0], [0], [1], [0, 0, 1, 1], [], []>} : vector<4x384xf32>, vector<384x256xf32>, vector<4x256xf32> -> vector<4x256xf32>
    %c0_73 = arith.constant 0 : index
    %c0_74 = arith.constant 0 : index
    %141 = vector.load %arg9[%c0_73, %c0_74] : memref<3x256xf32, #tpu.memory_space<vmem>>, vector<3x256xf32>
    %142 = vector.extract_strided_slice %141 {offsets = [0, 0], sizes = [1, 256], strides = [1, 1]} : vector<3x256xf32> to vector<1x256xf32>
    %143 = vector.broadcast %142 : vector<1x256xf32> to vector<4x256xf32>
    %144 = arith.addf %140, %143 : vector<4x256xf32>
    %cst_75 = arith.constant 0.000000e+00 : f32
    %145 = vector.broadcast %cst_75 : f32 to vector<4x256xf32>
    %146 = arith.maximumf %144, %145 : vector<4x256xf32>
    %147 = vector.extract_strided_slice %141 {offsets = [1, 0], sizes = [1, 256], strides = [1, 1]} : vector<3x256xf32> to vector<1x256xf32>
    %148 = vector.broadcast %147 : vector<1x256xf32> to vector<4x256xf32>
    %149 = arith.mulf %146, %148 : vector<4x256xf32>
    %150 = vector.extract_strided_slice %141 {offsets = [2, 0], sizes = [1, 256], strides = [1, 1]} : vector<3x256xf32> to vector<1x256xf32>
    %151 = vector.broadcast %150 : vector<1x256xf32> to vector<4x256xf32>
    %152 = arith.addf %149, %151 : vector<4x256xf32>
    %c0_76 = arith.constant 0 : index
    %c0_77 = arith.constant 0 : index
    %153 = vector.load %arg18[%c0_76, %c0_77] : memref<8x4xf32, #tpu.memory_space<vmem>>, vector<8x4xf32>
    %cst_78 = arith.constant dense<0.000000e+00> : vector<8x256xf32>
    %154 = tpu.matmul %153, %152, %cst_78 {dimension_numbers = #tpu.dot_dimension_numbers<[1], [0], [0], [1], [0, 0, 1, 1], [], []>} : vector<8x4xf32>, vector<4x256xf32>, vector<8x256xf32> -> vector<8x256xf32>
    %155 = tpu.iota {dimensions = array<i32: 0>} : vector<8x1xi32>
    %c0_i32_79 = arith.constant 0 : i32
    %156 = vector.broadcast %c0_i32_79 : i32 to vector<8x1xi32>
    %157 = arith.cmpi eq, %155, %156 : vector<8x1xi32>
    %c1_i32_80 = arith.constant 1 : i32
    %158 = tpu.dynamic_rotate %154 by %c1_i32_80 dim 0 : vector<8x256xf32>, i32 -> vector<8x256xf32>
    %cst_81 = arith.constant 0.000000e+00 : f32
    %159 = vector.shape_cast %157 : vector<8x1xi1> to vector<8x1xi1>
    %160 = vector.broadcast %159 : vector<8x1xi1> to vector<8x256xi1>
    %161 = vector.broadcast %cst_81 : f32 to vector<8x256xf32>
    %162 = arith.select %160, %161, %158 : vector<8x256xi1>, vector<8x256xf32>
    %c7_i32_82 = arith.constant 7 : i32
    %163 = vector.broadcast %c7_i32_82 : i32 to vector<8x1xi32>
    %164 = arith.cmpi eq, %155, %163 : vector<8x1xi32>
    %c7_i32_83 = arith.constant 7 : i32
    %165 = tpu.dynamic_rotate %154 by %c7_i32_83 dim 0 : vector<8x256xf32>, i32 -> vector<8x256xf32>
    %cst_84 = arith.constant 0.000000e+00 : f32
    %166 = vector.shape_cast %164 : vector<8x1xi1> to vector<8x1xi1>
    %167 = vector.broadcast %166 : vector<8x1xi1> to vector<8x256xi1>
    %168 = vector.broadcast %cst_84 : f32 to vector<8x256xf32>
    %169 = arith.select %167, %168, %165 : vector<8x256xi1>, vector<8x256xf32>
    %170 = tpu.concatenate %162, %154, %169 in 1 : vector<8x256xf32>, vector<8x256xf32>, vector<8x256xf32> -> vector<8x768xf32>
    %c0_85 = arith.constant 0 : index
    %c0_86 = arith.constant 0 : index
    %171 = vector.load %arg10[%c0_85, %c0_86] : memref<768x128xf32, #tpu.memory_space<vmem>>, vector<768x128xf32>
    %cst_87 = arith.constant dense<0.000000e+00> : vector<8x128xf32>
    %172 = tpu.matmul %170, %171, %cst_87 {dimension_numbers = #tpu.dot_dimension_numbers<[1], [0], [0], [1], [0, 0, 1, 1], [], []>} : vector<8x768xf32>, vector<768x128xf32>, vector<8x128xf32> -> vector<8x128xf32>
    %c0_88 = arith.constant 0 : index
    %c0_89 = arith.constant 0 : index
    %173 = vector.load %arg11[%c0_88, %c0_89] : memref<3x128xf32, #tpu.memory_space<vmem>>, vector<3x128xf32>
    %174 = vector.extract_strided_slice %173 {offsets = [0, 0], sizes = [1, 128], strides = [1, 1]} : vector<3x128xf32> to vector<1x128xf32>
    %175 = vector.broadcast %174 : vector<1x128xf32> to vector<8x128xf32>
    %176 = arith.addf %172, %175 : vector<8x128xf32>
    %cst_90 = arith.constant 0.000000e+00 : f32
    %177 = vector.broadcast %cst_90 : f32 to vector<8x128xf32>
    %178 = arith.maximumf %176, %177 : vector<8x128xf32>
    %179 = vector.extract_strided_slice %173 {offsets = [1, 0], sizes = [1, 128], strides = [1, 1]} : vector<3x128xf32> to vector<1x128xf32>
    %180 = vector.broadcast %179 : vector<1x128xf32> to vector<8x128xf32>
    %181 = arith.mulf %178, %180 : vector<8x128xf32>
    %182 = vector.extract_strided_slice %173 {offsets = [2, 0], sizes = [1, 128], strides = [1, 1]} : vector<3x128xf32> to vector<1x128xf32>
    %183 = vector.broadcast %182 : vector<1x128xf32> to vector<8x128xf32>
    %184 = arith.addf %181, %183 : vector<8x128xf32>
    %185 = tpu.concatenate %119, %184 in 0 : vector<8x128xf32>, vector<8x128xf32> -> vector<16x128xf32>
    %186 = tpu.iota {dimensions = array<i32: 0>} : vector<16x1xi32>
    %c0_i32_91 = arith.constant 0 : i32
    %187 = vector.broadcast %c0_i32_91 : i32 to vector<16x1xi32>
    %188 = arith.cmpi eq, %186, %187 : vector<16x1xi32>
    %c1_i32_92 = arith.constant 1 : i32
    %189 = tpu.dynamic_rotate %185 by %c1_i32_92 dim 0 : vector<16x128xf32>, i32 -> vector<16x128xf32>
    %cst_93 = arith.constant 0.000000e+00 : f32
    %190 = vector.shape_cast %188 : vector<16x1xi1> to vector<16x1xi1>
    %191 = vector.broadcast %190 : vector<16x1xi1> to vector<16x128xi1>
    %192 = vector.broadcast %cst_93 : f32 to vector<16x128xf32>
    %193 = arith.select %191, %192, %189 : vector<16x128xi1>, vector<16x128xf32>
    %c15_i32_94 = arith.constant 15 : i32
    %194 = vector.broadcast %c15_i32_94 : i32 to vector<16x1xi32>
    %195 = arith.cmpi eq, %186, %194 : vector<16x1xi32>
    %c15_i32_95 = arith.constant 15 : i32
    %196 = tpu.dynamic_rotate %185 by %c15_i32_95 dim 0 : vector<16x128xf32>, i32 -> vector<16x128xf32>
    %cst_96 = arith.constant 0.000000e+00 : f32
    %197 = vector.shape_cast %195 : vector<16x1xi1> to vector<16x1xi1>
    %198 = vector.broadcast %197 : vector<16x1xi1> to vector<16x128xi1>
    %199 = vector.broadcast %cst_96 : f32 to vector<16x128xf32>
    %200 = arith.select %198, %199, %196 : vector<16x128xi1>, vector<16x128xf32>
    %201 = tpu.concatenate %193, %185, %200 in 1 : vector<16x128xf32>, vector<16x128xf32>, vector<16x128xf32> -> vector<16x384xf32>
    %c0_97 = arith.constant 0 : index
    %c0_98 = arith.constant 0 : index
    %202 = vector.load %arg12[%c0_97, %c0_98] : memref<384x64xf32, #tpu.memory_space<vmem>>, vector<384x64xf32>
    %cst_99 = arith.constant dense<0.000000e+00> : vector<16x64xf32>
    %203 = tpu.matmul %201, %202, %cst_99 {dimension_numbers = #tpu.dot_dimension_numbers<[1], [0], [0], [1], [0, 0, 1, 1], [], []>} : vector<16x384xf32>, vector<384x64xf32>, vector<16x64xf32> -> vector<16x64xf32>
    %c0_100 = arith.constant 0 : index
    %c0_101 = arith.constant 0 : index
    %204 = vector.load %arg13[%c0_100, %c0_101] : memref<3x64xf32, #tpu.memory_space<vmem>>, vector<3x64xf32>
    %205 = vector.extract_strided_slice %204 {offsets = [0, 0], sizes = [1, 64], strides = [1, 1]} : vector<3x64xf32> to vector<1x64xf32>
    %206 = vector.broadcast %205 : vector<1x64xf32> to vector<16x64xf32>
    %207 = arith.addf %203, %206 : vector<16x64xf32>
    %cst_102 = arith.constant 0.000000e+00 : f32
    %208 = vector.broadcast %cst_102 : f32 to vector<16x64xf32>
    %209 = arith.maximumf %207, %208 : vector<16x64xf32>
    %210 = vector.extract_strided_slice %204 {offsets = [1, 0], sizes = [1, 64], strides = [1, 1]} : vector<3x64xf32> to vector<1x64xf32>
    %211 = vector.broadcast %210 : vector<1x64xf32> to vector<16x64xf32>
    %212 = arith.mulf %209, %211 : vector<16x64xf32>
    %213 = vector.extract_strided_slice %204 {offsets = [2, 0], sizes = [1, 64], strides = [1, 1]} : vector<3x64xf32> to vector<1x64xf32>
    %214 = vector.broadcast %213 : vector<1x64xf32> to vector<16x64xf32>
    %215 = arith.addf %212, %214 : vector<16x64xf32>
    %216 = tpu.concatenate %77, %215 in 0 : vector<16x64xf32>, vector<16x64xf32> -> vector<32x64xf32>
    %217 = tpu.iota {dimensions = array<i32: 0>} : vector<32x1xi32>
    %c0_i32_103 = arith.constant 0 : i32
    %218 = vector.broadcast %c0_i32_103 : i32 to vector<32x1xi32>
    %219 = arith.cmpi eq, %217, %218 : vector<32x1xi32>
    %c1_i32_104 = arith.constant 1 : i32
    %220 = tpu.dynamic_rotate %216 by %c1_i32_104 dim 0 : vector<32x64xf32>, i32 -> vector<32x64xf32>
    %cst_105 = arith.constant 0.000000e+00 : f32
    %221 = vector.shape_cast %219 : vector<32x1xi1> to vector<32x1xi1>
    %222 = vector.broadcast %221 : vector<32x1xi1> to vector<32x64xi1>
    %223 = vector.broadcast %cst_105 : f32 to vector<32x64xf32>
    %224 = arith.select %222, %223, %220 : vector<32x64xi1>, vector<32x64xf32>
    %c31_i32 = arith.constant 31 : i32
    %225 = vector.broadcast %c31_i32 : i32 to vector<32x1xi32>
    %226 = arith.cmpi eq, %217, %225 : vector<32x1xi32>
    %c31_i32_106 = arith.constant 31 : i32
    %227 = tpu.dynamic_rotate %216 by %c31_i32_106 dim 0 : vector<32x64xf32>, i32 -> vector<32x64xf32>
    %cst_107 = arith.constant 0.000000e+00 : f32
    %228 = vector.shape_cast %226 : vector<32x1xi1> to vector<32x1xi1>
    %229 = vector.broadcast %228 : vector<32x1xi1> to vector<32x64xi1>
    %230 = vector.broadcast %cst_107 : f32 to vector<32x64xf32>
    %231 = arith.select %229, %230, %227 : vector<32x64xi1>, vector<32x64xf32>
    %c0_108 = arith.constant 0 : index
    %c0_109 = arith.constant 0 : index
    %c0_110 = arith.constant 0 : index
    %232 = vector.load %arg14[%c0_108, %c0_109, %c0_110] : memref<3x64x32xf32, #tpu.memory_space<vmem>>, vector<1x64x32xf32>
    %233 = vector.shape_cast %232 : vector<1x64x32xf32> to vector<64x32xf32>
    %cst_111 = arith.constant dense<0.000000e+00> : vector<32x32xf32>
    %234 = tpu.matmul %224, %233, %cst_111 {dimension_numbers = #tpu.dot_dimension_numbers<[1], [0], [0], [1], [0, 0, 1, 1], [], []>} : vector<32x64xf32>, vector<64x32xf32>, vector<32x32xf32> -> vector<32x32xf32>
    %c1_112 = arith.constant 1 : index
    %c0_113 = arith.constant 0 : index
    %c0_114 = arith.constant 0 : index
    %235 = vector.load %arg14[%c1_112, %c0_113, %c0_114] : memref<3x64x32xf32, #tpu.memory_space<vmem>>, vector<1x64x32xf32>
    %236 = vector.shape_cast %235 : vector<1x64x32xf32> to vector<64x32xf32>
    %cst_115 = arith.constant dense<0.000000e+00> : vector<32x32xf32>
    %237 = tpu.matmul %216, %236, %cst_115 {dimension_numbers = #tpu.dot_dimension_numbers<[1], [0], [0], [1], [0, 0, 1, 1], [], []>} : vector<32x64xf32>, vector<64x32xf32>, vector<32x32xf32> -> vector<32x32xf32>
    %238 = arith.addf %234, %237 : vector<32x32xf32>
    %c2_116 = arith.constant 2 : index
    %c0_117 = arith.constant 0 : index
    %c0_118 = arith.constant 0 : index
    %239 = vector.load %arg14[%c2_116, %c0_117, %c0_118] : memref<3x64x32xf32, #tpu.memory_space<vmem>>, vector<1x64x32xf32>
    %240 = vector.shape_cast %239 : vector<1x64x32xf32> to vector<64x32xf32>
    %cst_119 = arith.constant dense<0.000000e+00> : vector<32x32xf32>
    %241 = tpu.matmul %231, %240, %cst_119 {dimension_numbers = #tpu.dot_dimension_numbers<[1], [0], [0], [1], [0, 0, 1, 1], [], []>} : vector<32x64xf32>, vector<64x32xf32>, vector<32x32xf32> -> vector<32x32xf32>
    %242 = arith.addf %238, %241 : vector<32x32xf32>
    %c0_120 = arith.constant 0 : index
    %c0_121 = arith.constant 0 : index
    %243 = vector.load %arg15[%c0_120, %c0_121] : memref<3x32xf32, #tpu.memory_space<vmem>>, vector<3x32xf32>
    %244 = vector.extract_strided_slice %243 {offsets = [0, 0], sizes = [1, 32], strides = [1, 1]} : vector<3x32xf32> to vector<1x32xf32>
    %245 = vector.broadcast %244 : vector<1x32xf32> to vector<32x32xf32>
    %246 = arith.addf %242, %245 : vector<32x32xf32>
    %cst_122 = arith.constant 0.000000e+00 : f32
    %247 = vector.broadcast %cst_122 : f32 to vector<32x32xf32>
    %248 = arith.maximumf %246, %247 : vector<32x32xf32>
    %249 = vector.extract_strided_slice %243 {offsets = [1, 0], sizes = [1, 32], strides = [1, 1]} : vector<3x32xf32> to vector<1x32xf32>
    %250 = vector.broadcast %249 : vector<1x32xf32> to vector<32x32xf32>
    %251 = arith.mulf %248, %250 : vector<32x32xf32>
    %252 = vector.extract_strided_slice %243 {offsets = [2, 0], sizes = [1, 32], strides = [1, 1]} : vector<3x32xf32> to vector<1x32xf32>
    %253 = vector.broadcast %252 : vector<1x32xf32> to vector<32x32xf32>
    %254 = arith.addf %251, %253 : vector<32x32xf32>
    %c0_123 = arith.constant 0 : index
    %c0_124 = arith.constant 0 : index
    %255 = vector.load %arg19[%c0_123, %c0_124] : memref<32x1024xf32, #tpu.memory_space<vmem>>, vector<32x1024xf32>
    %cst_125 = arith.constant dense<0.000000e+00> : vector<32x1024xf32>
    %256 = tpu.matmul %254, %255, %cst_125 {dimension_numbers = #tpu.dot_dimension_numbers<[1], [0], [0], [1], [0, 0, 1, 1], [], []>} : vector<32x32xf32>, vector<32x1024xf32>, vector<32x1024xf32> -> vector<32x1024xf32>
    %c0_126 = arith.constant 0 : index
    %c0_127 = arith.constant 0 : index
    %257 = vector.load %arg20[%c0_126, %c0_127] : memref<32x1024xf32, #tpu.memory_space<vmem>>, vector<32x1024xf32>
    %258 = arith.mulf %256, %257 : vector<32x1024xf32>
    %cst_128 = arith.constant dense<0.000000e+00> : vector<1024xf32>
    %259 = vector.multi_reduction <add>, %258, %cst_128 [0] : vector<32x1024xf32> to vector<1024xf32>
    %260 = vector.shape_cast %259 : vector<1024xf32> to vector<1x1024xf32>
    %c0_129 = arith.constant 0 : index
    %c0_130 = arith.constant 0 : index
    %261 = vector.load %arg21[%c0_129, %c0_130] : memref<1024x30xf32, #tpu.memory_space<vmem>>, vector<1024x30xf32>
    %cst_131 = arith.constant dense<0.000000e+00> : vector<1x30xf32>
    %262 = tpu.matmul %260, %261, %cst_131 {dimension_numbers = #tpu.dot_dimension_numbers<[1], [0], [0], [1], [0, 0, 1, 1], [], []>} : vector<1x1024xf32>, vector<1024x30xf32>, vector<1x30xf32> -> vector<1x30xf32>
    %c0_132 = arith.constant 0 : index
    %c0_133 = arith.constant 0 : index
    %263 = vector.load %arg22[%c0_132, %c0_133] : memref<1x30xf32, #tpu.memory_space<vmem>>, vector<1x30xf32>
    %264 = arith.addf %262, %263 : vector<1x30xf32>
    %c0_134 = arith.constant 0 : index
    %c0_135 = arith.constant 0 : index
    %c0_136 = arith.constant 0 : index
    %265 = vector.load %arg23[%c0_134, %c0_135, %c0_136] : memref<2x30x30xf32, #tpu.memory_space<vmem>>, vector<1x30x30xf32>
    %266 = vector.shape_cast %265 : vector<1x30x30xf32> to vector<30x30xf32>
    %cst_137 = arith.constant dense<0.000000e+00> : vector<1x30xf32>
    %267 = tpu.matmul %264, %266, %cst_137 {dimension_numbers = #tpu.dot_dimension_numbers<[1], [0], [0], [1], [0, 0, 1, 1], [], []>} : vector<1x30xf32>, vector<30x30xf32>, vector<1x30xf32> -> vector<1x30xf32>
    %c1_138 = arith.constant 1 : index
    %c0_139 = arith.constant 0 : index
    %c0_140 = arith.constant 0 : index
    %268 = vector.load %arg23[%c1_138, %c0_139, %c0_140] : memref<2x30x30xf32, #tpu.memory_space<vmem>>, vector<1x30x30xf32>
    %269 = vector.shape_cast %268 : vector<1x30x30xf32> to vector<30x30xf32>
    %cst_141 = arith.constant dense<0.000000e+00> : vector<1x30xf32>
    %270 = tpu.matmul %264, %269, %cst_141 {dimension_numbers = #tpu.dot_dimension_numbers<[1], [0], [0], [1], [0, 0, 1, 1], [], []>} : vector<1x30xf32>, vector<30x30xf32>, vector<1x30xf32> -> vector<1x30xf32>
    %271 = arith.maximumf %267, %270 : vector<1x30xf32>
    %272 = arith.subf %264, %271 : vector<1x30xf32>
    %273 = math.exp %272 : vector<1x30xf32>
    %c0_142 = arith.constant 0 : index
    %c0_143 = arith.constant 0 : index
    %274 = vector.load %arg24[%c0_142, %c0_143] : memref<30x30xf32, #tpu.memory_space<vmem>>, vector<30x30xf32>
    %cst_144 = arith.constant dense<0.000000e+00> : vector<1x30xf32>
    %275 = tpu.matmul %273, %274, %cst_144 {dimension_numbers = #tpu.dot_dimension_numbers<[1], [0], [0], [1], [0, 0, 1, 1], [], []>} : vector<1x30xf32>, vector<30x30xf32>, vector<1x30xf32> -> vector<1x30xf32>
    %276 = arith.divf %273, %275 : vector<1x30xf32>
    %c0_145 = arith.constant 0 : index
    %c0_146 = arith.constant 0 : index
    %c0_147 = arith.constant 0 : index
    %277 = vector.load %arg25[%c0_145, %c0_146, %c0_147] : memref<1x1x30xf32, #tpu.memory_space<vmem>>, vector<1x1x30xf32>
    %278 = vector.shape_cast %277 : vector<1x1x30xf32> to vector<1x30xf32>
    %279 = vector.shape_cast %276 : vector<1x30xf32> to vector<1x1x30xf32>
    tpu.vector_store %arg25[%c0_145, %c0_146, %c0_147], %279 {strides = array<i32>} : memref<1x1x30xf32, #tpu.memory_space<vmem>>, vector<1x1x30xf32>,
    return
  }
  func.func @transform_0(%arg0: i32) -> (i32, i32, i32) {
    %c0_i32 = arith.constant 0 : i32
    %c0_i32_0 = arith.constant 0 : i32
    %c0_i32_1 = arith.constant 0 : i32
    return %arg0, %c0_i32, %c0_i32_0 : i32, i32, i32
  }
  func.func @transform_1(%arg0: i32) -> (i32, i32, i32) {
    %c0_i32 = arith.constant 0 : i32
    %c0_i32_0 = arith.constant 0 : i32
    %c0_i32_1 = arith.constant 0 : i32
    %c0_i32_2 = arith.constant 0 : i32
    return %c0_i32, %c0_i32_0, %c0_i32_1 : i32, i32, i32
  }
  func.func @transform_2(%arg0: i32) -> (i32, i32) {
    %c0_i32 = arith.constant 0 : i32
    %c0_i32_0 = arith.constant 0 : i32
    %c0_i32_1 = arith.constant 0 : i32
    return %c0_i32, %c0_i32_0 : i32, i32
  }
  func.func @transform_3(%arg0: i32) -> (i32, i32, i32) {
    %c0_i32 = arith.constant 0 : i32
    %c0_i32_0 = arith.constant 0 : i32
    %c0_i32_1 = arith.constant 0 : i32
    %c0_i32_2 = arith.constant 0 : i32
    return %c0_i32, %c0_i32_0, %c0_i32_1 : i32, i32, i32
  }
  func.func @transform_4(%arg0: i32) -> (i32, i32) {
    %c0_i32 = arith.constant 0 : i32
    %c0_i32_0 = arith.constant 0 : i32
    %c0_i32_1 = arith.constant 0 : i32
    return %c0_i32, %c0_i32_0 : i32, i32
  }
  func.func @transform_5(%arg0: i32) -> (i32, i32, i32) {
    %c0_i32 = arith.constant 0 : i32
    %c0_i32_0 = arith.constant 0 : i32
    %c0_i32_1 = arith.constant 0 : i32
    %c0_i32_2 = arith.constant 0 : i32
    return %c0_i32, %c0_i32_0, %c0_i32_1 : i32, i32, i32
  }
  func.func @transform_6(%arg0: i32) -> (i32, i32) {
    %c0_i32 = arith.constant 0 : i32
    %c0_i32_0 = arith.constant 0 : i32
    %c0_i32_1 = arith.constant 0 : i32
    return %c0_i32, %c0_i32_0 : i32, i32
  }
  func.func @transform_7(%arg0: i32) -> (i32, i32) {
    %c0_i32 = arith.constant 0 : i32
    %c0_i32_0 = arith.constant 0 : i32
    %c0_i32_1 = arith.constant 0 : i32
    return %c0_i32, %c0_i32_0 : i32, i32
  }
  func.func @transform_8(%arg0: i32) -> (i32, i32) {
    %c0_i32 = arith.constant 0 : i32
    %c0_i32_0 = arith.constant 0 : i32
    %c0_i32_1 = arith.constant 0 : i32
    return %c0_i32, %c0_i32_0 : i32, i32
  }
  func.func @transform_9(%arg0: i32) -> (i32, i32) {
    %c0_i32 = arith.constant 0 : i32
    %c0_i32_0 = arith.constant 0 : i32
    %c0_i32_1 = arith.constant 0 : i32
    return %c0_i32, %c0_i32_0 : i32, i32
  }
  func.func @transform_10(%arg0: i32) -> (i32, i32) {
    %c0_i32 = arith.constant 0 : i32
    %c0_i32_0 = arith.constant 0 : i32
    %c0_i32_1 = arith.constant 0 : i32
    return %c0_i32, %c0_i32_0 : i32, i32
  }
  func.func @transform_11(%arg0: i32) -> (i32, i32) {
    %c0_i32 = arith.constant 0 : i32
    %c0_i32_0 = arith.constant 0 : i32
    %c0_i32_1 = arith.constant 0 : i32
    return %c0_i32, %c0_i32_0 : i32, i32
  }
  func.func @transform_12(%arg0: i32) -> (i32, i32) {
    %c0_i32 = arith.constant 0 : i32
    %c0_i32_0 = arith.constant 0 : i32
    %c0_i32_1 = arith.constant 0 : i32
    return %c0_i32, %c0_i32_0 : i32, i32
  }
  func.func @transform_13(%arg0: i32) -> (i32, i32, i32) {
    %c0_i32 = arith.constant 0 : i32
    %c0_i32_0 = arith.constant 0 : i32
    %c0_i32_1 = arith.constant 0 : i32
    %c0_i32_2 = arith.constant 0 : i32
    return %c0_i32, %c0_i32_0, %c0_i32_1 : i32, i32, i32
  }
  func.func @transform_14(%arg0: i32) -> (i32, i32) {
    %c0_i32 = arith.constant 0 : i32
    %c0_i32_0 = arith.constant 0 : i32
    %c0_i32_1 = arith.constant 0 : i32
    return %c0_i32, %c0_i32_0 : i32, i32
  }
  func.func @transform_15(%arg0: i32) -> (i32, i32) {
    %c0_i32 = arith.constant 0 : i32
    %c0_i32_0 = arith.constant 0 : i32
    %c0_i32_1 = arith.constant 0 : i32
    return %c0_i32, %c0_i32_0 : i32, i32
  }
  func.func @transform_16(%arg0: i32) -> (i32, i32) {
    %c0_i32 = arith.constant 0 : i32
    %c0_i32_0 = arith.constant 0 : i32
    %c0_i32_1 = arith.constant 0 : i32
    return %c0_i32, %c0_i32_0 : i32, i32
  }
  func.func @transform_17(%arg0: i32) -> (i32, i32) {
    %c0_i32 = arith.constant 0 : i32
    %c0_i32_0 = arith.constant 0 : i32
    %c0_i32_1 = arith.constant 0 : i32
    return %c0_i32, %c0_i32_0 : i32, i32
  }
  func.func @transform_18(%arg0: i32) -> (i32, i32) {
    %c0_i32 = arith.constant 0 : i32
    %c0_i32_0 = arith.constant 0 : i32
    %c0_i32_1 = arith.constant 0 : i32
    return %c0_i32, %c0_i32_0 : i32, i32
  }
  func.func @transform_19(%arg0: i32) -> (i32, i32) {
    %c0_i32 = arith.constant 0 : i32
    %c0_i32_0 = arith.constant 0 : i32
    %c0_i32_1 = arith.constant 0 : i32
    return %c0_i32, %c0_i32_0 : i32, i32
  }
  func.func @transform_20(%arg0: i32) -> (i32, i32) {
    %c0_i32 = arith.constant 0 : i32
    %c0_i32_0 = arith.constant 0 : i32
    %c0_i32_1 = arith.constant 0 : i32
    return %c0_i32, %c0_i32_0 : i32, i32
  }
  func.func @transform_21(%arg0: i32) -> (i32, i32) {
    %c0_i32 = arith.constant 0 : i32
    %c0_i32_0 = arith.constant 0 : i32
    %c0_i32_1 = arith.constant 0 : i32
    return %c0_i32, %c0_i32_0 : i32, i32
  }
  func.func @transform_22(%arg0: i32) -> (i32, i32, i32) {
    %c0_i32 = arith.constant 0 : i32
    %c0_i32_0 = arith.constant 0 : i32
    %c0_i32_1 = arith.constant 0 : i32
    %c0_i32_2 = arith.constant 0 : i32
    return %c0_i32, %c0_i32_0, %c0_i32_1 : i32, i32, i32
  }
  func.func @transform_23(%arg0: i32) -> (i32, i32) {
    %c0_i32 = arith.constant 0 : i32
    %c0_i32_0 = arith.constant 0 : i32
    %c0_i32_1 = arith.constant 0 : i32
    return %c0_i32, %c0_i32_0 : i32, i32
  }
  func.func @transform_24(%arg0: i32) -> (i32, i32, i32) {
    %c0_i32 = arith.constant 0 : i32
    %c0_i32_0 = arith.constant 0 : i32
    %c0_i32_1 = arith.constant 0 : i32
    return %arg0, %c0_i32, %c0_i32_0 : i32, i32, i32
  }
}

</mosaic_0001>

<llo_original>
// kernel: uconv1d_forward.1
$region0: #{uconv1d_forward.1}
  #allocation0 [shape = 'u32[]', space=smem, size = 0x4, offset = 0x4, fixed_abs, tag = 'smem constant byte address 0x4 - core index']
  #allocation1 [shape = 'u32[144,128]{1,0:T(1,128)}', space=vmem, size = 0x12000, scoped, tag = 'internal scratch']
  %s0 = inlined_call_operand.vmem [shape: f32[2,16,41], index: 0, kind: input, shape index: {}]
  %s1 = inlined_call_operand.vmem [shape: f32[3,41,32], index: 1, kind: input, shape index: {}]
  %s2 = inlined_call_operand.vmem [shape: f32[3,32], index: 2, kind: input, shape index: {}]
  %s3 = inlined_call_operand.vmem [shape: f32[3,32,64], index: 3, kind: input, shape index: {}]
  %s4 = inlined_call_operand.hbm [shape: f32[3,64], index: 4, kind: input, shape index: {}]
  %s5 = inlined_call_operand.vmem [shape: f32[3,64,128], index: 5, kind: input, shape index: {}]
  %s6 = inlined_call_operand.hbm [shape: f32[3,128], index: 6, kind: input, shape index: {}]
  %s7 = inlined_call_operand.vmem [shape: f32[384,256], index: 7, kind: input, shape index: {}]
  %s8 = inlined_call_operand.vmem [shape: f32[3,256], index: 8, kind: input, shape index: {}]
  %s9 = inlined_call_operand.vmem [shape: f32[768,128], index: 9, kind: input, shape index: {}]
  %s10 = inlined_call_operand.hbm [shape: f32[3,128], index: 10, kind: input, shape index: {}]
  %s11 = inlined_call_operand.vmem [shape: f32[384,64], index: 11, kind: input, shape index: {}]
  %s12 = inlined_call_operand.hbm [shape: f32[3,64], index: 12, kind: input, shape index: {}]
  %s13 = inlined_call_operand.vmem [shape: f32[3,64,32], index: 13, kind: input, shape index: {}]
  %s14 = inlined_call_operand.hbm [shape: f32[3,32], index: 14, kind: input, shape index: {}]
  %s15 = inlined_call_operand.hbm [shape: f32[8,16], index: 15, kind: input, shape index: {}]
  %s16 = inlined_call_operand.hbm [shape: f32[4,8], index: 16, kind: input, shape index: {}]
  %s17 = inlined_call_operand.vmem [shape: f32[8,4], index: 17, kind: input, shape index: {}]
  %s18 = inlined_call_operand.vmem [shape: f32[32,1024], index: 18, kind: input, shape index: {}]
  %s19 = inlined_call_operand.vmem [shape: f32[32,1024], index: 19, kind: input, shape index: {}]
  %s20 = inlined_call_operand.vmem [shape: f32[1024,30], index: 20, kind: input, shape index: {}]
  %s21 = inlined_call_operand.vmem [shape: f32[1,30], index: 21, kind: input, shape index: {}]
  %s22 = inlined_call_operand.vmem [shape: f32[2,30,30], index: 22, kind: input, shape index: {}]
  %s23 = inlined_call_operand.hbm [shape: f32[30,30], index: 23, kind: input, shape index: {}]
  %s24 = inlined_call_operand.vmem [shape: f32[2,1,30], index: 24, kind: output, shape index: {}]
  %s25 = sld [smem:[#allocation0]]
  $region161: #{uconv1d_forward.1} parent=0
    _
  %s27 = ssub.s32 1, %s25
  %s28 = scalar_select 0, %s27, %s25
  $region1: #{uconv1d_forward.1} parent=0
    #allocation2 [shape = 'u8[2048]{0}', space=vmem, size = 0x800, scoped, tag = 'input window, operand 4, single buffered']
    #allocation3 [shape = 's32[2]{0}', space=sflag, size = 0x8, scoped, tag = 'scoped memory for uconv1d_forward.1']
    #allocation4 [shape = 'u8[2048]{0}', space=vmem, size = 0x800, scoped, tag = 'input window, operand 6, single buffered']
    #allocation5 [shape = 's32[1]{0}', space=sflag, size = 0x4, scoped, tag = 'scoped memory for uconv1d_forward.1']
    #allocation6 [shape = 'u8[2048]{0}', space=vmem, size = 0x800, scoped, tag = 'input window, operand 10, single buffered']
    #allocation7 [shape = 'u8[2048]{0}', space=vmem, size = 0x800, scoped, tag = 'input window, operand 12, single buffered']
    #allocation8 [shape = 's32[1]{0}', space=sflag, size = 0x4, scoped, tag = 'scoped memory for uconv1d_forward.1']
    #allocation9 [shape = 'u8[2048]{0}', space=vmem, size = 0x800, scoped, tag = 'input window, operand 14, single buffered']
    #allocation10 [shape = 'u8[4096]{0}', space=vmem, size = 0x1000, scoped, tag = 'input window, operand 15, single buffered']
    #allocation11 [shape = 's32[1]{0}', space=sflag, size = 0x4, scoped, tag = 'scoped memory for uconv1d_forward.1']
    #allocation12 [shape = 'u8[2048]{0}', space=vmem, size = 0x800, scoped, tag = 'input window, operand 16, single buffered']
    #allocation13 [shape = 'u8[16384]{0}', space=vmem, size = 0x4000, scoped, tag = 'input window, operand 23, single buffered']
    #allocation14 [shape = 's32[1]{0}', space=sflag, size = 0x4, scoped, tag = 'scoped memory for uconv1d_forward.1']
    %29 = vsyncpa [#allocation3], 0
    %30 = vsyncpa [#allocation5], 0
    %31 = vsyncpa [#allocation8], 0
    %32 = vsyncpa [#allocation11], 0
    %33 = vsyncpa [#allocation14], 0
    loop: start=0, step=1, limit=4
    $region2: #{uconv1d_forward.1} parent=1 // loop_pre_header
      _
    $region3: #{uconv1d_forward.1} parent=1 // loop_header
      %s35 = sphi 0, %s39
      %p36 = scmp.ge.s32.totalorder %s35, 4
      %s45 = sphi 0, %s47
      %s48 = sphi 0, %s45
      %s49 = sphi 0, %s48
      %s65 = sphi 0, %s49
      %s69 = sphi 0, %s69
      %s71 = sphi 0, %s69
      %s72 = sphi 0, %s71
      %s86 = sphi 0, %s72
      %s90 = sphi 0, %s90
      %s92 = sphi 0, %s90
      %s93 = sphi 0, %s92
      %s107 = sphi 0, %s93
      %s111 = sphi 0, %s111
      %s113 = sphi 0, %s111
      %s114 = sphi 0, %s113
      %s128 = sphi 0, %s114
      %s132 = sphi 0, %s132
      %s134 = sphi 0, %s132
      %s135 = sphi 0, %s134
      %s149 = sphi 0, %s135
      %s153 = sphi 0, %s153
      %s155 = sphi 0, %s153
      %s156 = sphi 0, %s155
      %s170 = sphi 0, %s156
      %s174 = sphi 0, %s174
      %s176 = sphi 0, %s174
      %s177 = sphi 0, %s176
      %s191 = sphi 0, %s177
      %s195 = sphi 0, %s195
      %s197 = sphi 0, %s195
      %s198 = sphi 0, %s197
      %s212 = sphi 0, %s198
      %s216 = sphi 0, %s216
      %s218 = sphi 0, %s216
      %s219 = sphi 0, %s218
      %s233 = sphi 0, %s219
      %s237 = sphi 0, %s237
      %s239 = sphi 0, %s237
      %s240 = sphi 0, %s239
      %s254 = sphi 0, %s240
      %s258 = sphi 0, %s258
      %s260 = sphi 0, %s258
      %s261 = sphi 0, %s260
      %s275 = sphi 0, %s261
      %s279 = sphi 0, %s279
      %s281 = sphi 0, %s279
      %s282 = sphi 0, %s281
      %s296 = sphi 0, %s282
      %s300 = sphi 0, %s300
      %s302 = sphi 0, %s300
      %s303 = sphi 0, %s302
      %s317 = sphi 0, %s303
      %s321 = sphi 0, %s321
      %s323 = sphi 0, %s321
      %s324 = sphi 0, %s323
      %s338 = sphi 0, %s324
      %s342 = sphi 0, %s342
      %s344 = sphi 0, %s342
      %s345 = sphi 0, %s344
      %s359 = sphi 0, %s345
      %s363 = sphi 0, %s363
      %s365 = sphi 0, %s363
      %s366 = sphi 0, %s365
      %s380 = sphi 0, %s366
      %s384 = sphi 0, %s384
      %s386 = sphi 0, %s384
      %s387 = sphi 0, %s386
      %s401 = sphi 0, %s387
      %s405 = sphi 0, %s405
      %s407 = sphi 0, %s405
      %s408 = sphi 0, %s407
      %s422 = sphi 0, %s408
      %s426 = sphi 0, %s426
      %s428 = sphi 0, %s426
      %s429 = sphi 0, %s428
      %s443 = sphi 0, %s429
      %s447 = sphi 0, %s447
      %s449 = sphi 0, %s447
      %s450 = sphi 0, %s449
      %s464 = sphi 0, %s450
      %s468 = sphi 0, %s468
      %s470 = sphi 0, %s468
      %s471 = sphi 0, %s470
      %s485 = sphi 0, %s471
      %s489 = sphi 0, %s489
      %s491 = sphi 0, %s489
      %s492 = sphi 0, %s491
      %s506 = sphi 0, %s492
      %s510 = sphi 0, %s510
      %s512 = sphi 0, %s510
      %s513 = sphi 0, %s512
      %s527 = sphi 0, %s513
      %s531 = sphi 0, %s531
      %s533 = sphi 0, %s531
      %s534 = sphi 0, %s533
      %s548 = sphi 0, %s534
      %s554 = sphi 0, %s556
      %s557 = sphi 0, %s554
      %s558 = sphi 0, %s557
      %s574 = sphi 0, %s558
    $region4: #{uconv1d_forward.1} parent=1 // loop_header_branch
      %38 = sbr.rel (%p36) target = $region8
    $region5: #{uconv1d_forward.1} parent=1 // loop_body
      %s40 = ssub.s32 %s35, 1
      %s41 = ssub.s32 %s35, 2
      %s42 = sadd.s32 %s35, 1
      %s43 = ssub.s32 %s35, %s42
      %p44 = scmp.eq.s32.totalorder %s43, 0
      %s46 = sadd.s32 %s45, 1
      %s47 = scalar_select %p44, %s45, %s46
      %p50 = pneg %p44
      %p51 = scmp.eq.s32.totalorder %s35, 1
      %p52 = por %p50, %p51
      %p53 = scmp.ne.s32.totalorder %s45, %s48
      %p54 = scmp.eq.s32.totalorder %s35, 0
      %p55 = por %p53, %p54
      %p56 = scmp.ne.s32.totalorder %s45, %s48
      %p57 = scmp.eq.s32.totalorder %s40, 1
      %p58 = por %p56, %p57
      %p59 = scmp.ne.s32.totalorder %s48, %s49
      %p60 = scmp.eq.s32.totalorder %s40, 0
      %p61 = por %p59, %p60
      %p62 = scmp.ne.s32.totalorder %s48, %s49
      %p63 = scmp.eq.s32.totalorder %s41, 1
      %p64 = por %p62, %p63
      %p66 = scmp.ne.s32.totalorder %s49, %s65
      %p67 = scmp.eq.s32.totalorder %s41, 0
      %p68 = por %p66, %p67
      %s70 = sadd.s32 %s69, 1
      %p73 = scmp.eq.s32.totalorder %s35, 1
      %p74 = scmp.ne.s32.totalorder %s69, %s71
      %p75 = scmp.eq.s32.totalorder %s35, 0
      %p76 = por %p74, %p75
      %p77 = scmp.ne.s32.totalorder %s69, %s71
      %p78 = scmp.eq.s32.totalorder %s40, 1
      %p79 = por %p77, %p78
      %p80 = scmp.ne.s32.totalorder %s71, %s72
      %p81 = scmp.eq.s32.totalorder %s40, 0
      %p82 = por %p80, %p81
      %p83 = scmp.ne.s32.totalorder %s71, %s72
      %p84 = scmp.eq.s32.totalorder %s41, 1
      %p85 = por %p83, %p84
      %p87 = scmp.ne.s32.totalorder %s72, %s86
      %p88 = scmp.eq.s32.totalorder %s41, 0
      %p89 = por %p87, %p88
      %s91 = sadd.s32 %s90, 1
      %p94 = scmp.eq.s32.totalorder %s35, 1
      %p95 = scmp.ne.s32.totalorder %s90, %s92
      %p96 = scmp.eq.s32.totalorder %s35, 0
      %p97 = por %p95, %p96
      %p98 = scmp.ne.s32.totalorder %s90, %s92
      %p99 = scmp.eq.s32.totalorder %s40, 1
      %p100 = por %p98, %p99
      %p101 = scmp.ne.s32.totalorder %s92, %s93
      %p102 = scmp.eq.s32.totalorder %s40, 0
      %p103 = por %p101, %p102
      %p104 = scmp.ne.s32.totalorder %s92, %s93
      %p105 = scmp.eq.s32.totalorder %s41, 1
      %p106 = por %p104, %p105
      %p108 = scmp.ne.s32.totalorder %s93, %s107
      %p109 = scmp.eq.s32.totalorder %s41, 0
      %p110 = por %p108, %p109
      %s112 = sadd.s32 %s111, 1
      %p115 = scmp.eq.s32.totalorder %s35, 1
      %p116 = scmp.ne.s32.totalorder %s111, %s113
      %p117 = scmp.eq.s32.totalorder %s35, 0
      %p118 = por %p116, %p117
      %p119 = scmp.ne.s32.totalorder %s111, %s113
      %p120 = scmp.eq.s32.totalorder %s40, 1
      %p121 = por %p119, %p120
      %p122 = scmp.ne.s32.totalorder %s113, %s114
      %p123 = scmp.eq.s32.totalorder %s40, 0
      %p124 = por %p122, %p123
      %p125 = scmp.ne.s32.totalorder %s113, %s114
      %p126 = scmp.eq.s32.totalorder %s41, 1
      %p127 = por %p125, %p126
      %p129 = scmp.ne.s32.totalorder %s114, %s128
      %p130 = scmp.eq.s32.totalorder %s41, 0
      %p131 = por %p129, %p130
      %s133 = sadd.s32 %s132, 1
      %p136 = scmp.eq.s32.totalorder %s35, 1
      %p137 = scmp.ne.s32.totalorder %s132, %s134
      %p138 = scmp.eq.s32.totalorder %s35, 0
      %p139 = por %p137, %p138
      %p140 = scmp.ne.s32.totalorder %s132, %s134
      %p141 = scmp.eq.s32.totalorder %s40, 1
      %p142 = por %p140, %p141
      %p143 = scmp.ne.s32.totalorder %s134, %s135
      %p144 = scmp.eq.s32.totalorder %s40, 0
      %p145 = por %p143, %p144
      %p146 = scmp.ne.s32.totalorder %s134, %s135
      %p147 = scmp.eq.s32.totalorder %s41, 1
      %p148 = por %p146, %p147
      %p150 = scmp.ne.s32.totalorder %s135, %s149
      %p151 = scmp.eq.s32.totalorder %s41, 0
      %p152 = por %p150, %p151
      %s154 = sadd.s32 %s153, 1
      %p157 = scmp.eq.s32.totalorder %s35, 1
      %p158 = scmp.ne.s32.totalorder %s153, %s155
      %p159 = scmp.eq.s32.totalorder %s35, 0
      %p160 = por %p158, %p159
      %p161 = scmp.ne.s32.totalorder %s153, %s155
      %p162 = scmp.eq.s32.totalorder %s40, 1
      %p163 = por %p161, %p162
      %p164 = scmp.ne.s32.totalorder %s155, %s156
      %p165 = scmp.eq.s32.totalorder %s40, 0
      %p166 = por %p164, %p165
      %p167 = scmp.ne.s32.totalorder %s155, %s156
      %p168 = scmp.eq.s32.totalorder %s41, 1
      %p169 = por %p167, %p168
      %p171 = scmp.ne.s32.totalorder %s156, %s170
      %p172 = scmp.eq.s32.totalorder %s41, 0
      %p173 = por %p171, %p172
      %s175 = sadd.s32 %s174, 1
      %p178 = scmp.eq.s32.totalorder %s35, 1
      %p179 = scmp.ne.s32.totalorder %s174, %s176
      %p180 = scmp.eq.s32.totalorder %s35, 0
      %p181 = por %p179, %p180
      %p182 = scmp.ne.s32.totalorder %s174, %s176
      %p183 = scmp.eq.s32.totalorder %s40, 1
      %p184 = por %p182, %p183
      %p185 = scmp.ne.s32.totalorder %s176, %s177
      %p186 = scmp.eq.s32.totalorder %s40, 0
      %p187 = por %p185, %p186
      %p188 = scmp.ne.s32.totalorder %s176, %s177
      %p189 = scmp.eq.s32.totalorder %s41, 1
      %p190 = por %p188, %p189
      %p192 = scmp.ne.s32.totalorder %s177, %s191
      %p193 = scmp.eq.s32.totalorder %s41, 0
      %p194 = por %p192, %p193
      %s196 = sadd.s32 %s195, 1
      %p199 = scmp.eq.s32.totalorder %s35, 1
      %p200 = scmp.ne.s32.totalorder %s195, %s197
      %p201 = scmp.eq.s32.totalorder %s35, 0
      %p202 = por %p200, %p201
      %p203 = scmp.ne.s32.totalorder %s195, %s197
      %p204 = scmp.eq.s32.totalorder %s40, 1
      %p205 = por %p203, %p204
      %p206 = scmp.ne.s32.totalorder %s197, %s198
      %p207 = scmp.eq.s32.totalorder %s40, 0
      %p208 = por %p206, %p207
      %p209 = scmp.ne.s32.totalorder %s197, %s198
      %p210 = scmp.eq.s32.totalorder %s41, 1
      %p211 = por %p209, %p210
      %p213 = scmp.ne.s32.totalorder %s198, %s212
      %p214 = scmp.eq.s32.totalorder %s41, 0
      %p215 = por %p213, %p214
      %s217 = sadd.s32 %s216, 1
      %p220 = scmp.eq.s32.totalorder %s35, 1
      %p221 = scmp.ne.s32.totalorder %s216, %s218
      %p222 = scmp.eq.s32.totalorder %s35, 0
      %p223 = por %p221, %p222
      %p224 = scmp.ne.s32.totalorder %s216, %s218
      %p225 = scmp.eq.s32.totalorder %s40, 1
      %p226 = por %p224, %p225
      %p227 = scmp.ne.s32.totalorder %s218, %s219
      %p228 = scmp.eq.s32.totalorder %s40, 0
      %p229 = por %p227, %p228
      %p230 = scmp.ne.s32.totalorder %s218, %s219
      %p231 = scmp.eq.s32.totalorder %s41, 1
      %p232 = por %p230, %p231
      %p234 = scmp.ne.s32.totalorder %s219, %s233
      %p235 = scmp.eq.s32.totalorder %s41, 0
      %p236 = por %p234, %p235
      %s238 = sadd.s32 %s237, 1
      %p241 = scmp.eq.s32.totalorder %s35, 1
      %p242 = scmp.ne.s32.totalorder %s237, %s239
      %p243 = scmp.eq.s32.totalorder %s35, 0
      %p244 = por %p242, %p243
      %p245 = scmp.ne.s32.totalorder %s237, %s239
      %p246 = scmp.eq.s32.totalorder %s40, 1
      %p247 = por %p245, %p246
      %p248 = scmp.ne.s32.totalorder %s239, %s240
      %p249 = scmp.eq.s32.totalorder %s40, 0
      %p250 = por %p248, %p249
      %p251 = scmp.ne.s32.totalorder %s239, %s240
      %p252 = scmp.eq.s32.totalorder %s41, 1
      %p253 = por %p251, %p252
      %p255 = scmp.ne.s32.totalorder %s240, %s254
      %p256 = scmp.eq.s32.totalorder %s41, 0
      %p257 = por %p255, %p256
      %s259 = sadd.s32 %s258, 1
      %p262 = scmp.eq.s32.totalorder %s35, 1
      %p263 = scmp.ne.s32.totalorder %s258, %s260
      %p264 = scmp.eq.s32.totalorder %s35, 0
      %p265 = por %p263, %p264
      %p266 = scmp.ne.s32.totalorder %s258, %s260
      %p267 = scmp.eq.s32.totalorder %s40, 1
      %p268 = por %p266, %p267
      %p269 = scmp.ne.s32.totalorder %s260, %s261
      %p270 = scmp.eq.s32.totalorder %s40, 0
      %p271 = por %p269, %p270
      %p272 = scmp.ne.s32.totalorder %s260, %s261
      %p273 = scmp.eq.s32.totalorder %s41, 1
      %p274 = por %p272, %p273
      %p276 = scmp.ne.s32.totalorder %s261, %s275
      %p277 = scmp.eq.s32.totalorder %s41, 0
      %p278 = por %p276, %p277
      %s280 = sadd.s32 %s279, 1
      %p283 = scmp.eq.s32.totalorder %s35, 1
      %p284 = scmp.ne.s32.totalorder %s279, %s281
      %p285 = scmp.eq.s32.totalorder %s35, 0
      %p286 = por %p284, %p285
      %p287 = scmp.ne.s32.totalorder %s279, %s281
      %p288 = scmp.eq.s32.totalorder %s40, 1
      %p289 = por %p287, %p288
      %p290 = scmp.ne.s32.totalorder %s281, %s282
      %p291 = scmp.eq.s32.totalorder %s40, 0
      %p292 = por %p290, %p291
      %p293 = scmp.ne.s32.totalorder %s281, %s282
      %p294 = scmp.eq.s32.totalorder %s41, 1
      %p295 = por %p293, %p294
      %p297 = scmp.ne.s32.totalorder %s282, %s296
      %p298 = scmp.eq.s32.totalorder %s41, 0
      %p299 = por %p297, %p298
      %s301 = sadd.s32 %s300, 1
      %p304 = scmp.eq.s32.totalorder %s35, 1
      %p305 = scmp.ne.s32.totalorder %s300, %s302
      %p306 = scmp.eq.s32.totalorder %s35, 0
      %p307 = por %p305, %p306
      %p308 = scmp.ne.s32.totalorder %s300, %s302
      %p309 = scmp.eq.s32.totalorder %s40, 1
      %p310 = por %p308, %p309
      %p311 = scmp.ne.s32.totalorder %s302, %s303
      %p312 = scmp.eq.s32.totalorder %s40, 0
      %p313 = por %p311, %p312
      %p314 = scmp.ne.s32.totalorder %s302, %s303
      %p315 = scmp.eq.s32.totalorder %s41, 1
      %p316 = por %p314, %p315
      %p318 = scmp.ne.s32.totalorder %s303, %s317
      %p319 = scmp.eq.s32.totalorder %s41, 0
      %p320 = por %p318, %p319
      %s322 = sadd.s32 %s321, 1
      %p325 = scmp.eq.s32.totalorder %s35, 1
      %p326 = scmp.ne.s32.totalorder %s321, %s323
      %p327 = scmp.eq.s32.totalorder %s35, 0
      %p328 = por %p326, %p327
      %p329 = scmp.ne.s32.totalorder %s321, %s323
      %p330 = scmp.eq.s32.totalorder %s40, 1
      %p331 = por %p329, %p330
      %p332 = scmp.ne.s32.totalorder %s323, %s324
      %p333 = scmp.eq.s32.totalorder %s40, 0
      %p334 = por %p332, %p333
      %p335 = scmp.ne.s32.totalorder %s323, %s324
      %p336 = scmp.eq.s32.totalorder %s41, 1
      %p337 = por %p335, %p336
      %p339 = scmp.ne.s32.totalorder %s324, %s338
      %p340 = scmp.eq.s32.totalorder %s41, 0
      %p341 = por %p339, %p340
      %s343 = sadd.s32 %s342, 1
      %p346 = scmp.eq.s32.totalorder %s35, 1
      %p347 = scmp.ne.s32.totalorder %s342, %s344
      %p348 = scmp.eq.s32.totalorder %s35, 0
      %p349 = por %p347, %p348
      %p350 = scmp.ne.s32.totalorder %s342, %s344
      %p351 = scmp.eq.s32.totalorder %s40, 1
      %p352 = por %p350, %p351
      %p353 = scmp.ne.s32.totalorder %s344, %s345
      %p354 = scmp.eq.s32.totalorder %s40, 0
      %p355 = por %p353, %p354
      %p356 = scmp.ne.s32.totalorder %s344, %s345
      %p357 = scmp.eq.s32.totalorder %s41, 1
      %p358 = por %p356, %p357
      %p360 = scmp.ne.s32.totalorder %s345, %s359
      %p361 = scmp.eq.s32.totalorder %s41, 0
      %p362 = por %p360, %p361
      %s364 = sadd.s32 %s363, 1
      %p367 = scmp.eq.s32.totalorder %s35, 1
      %p368 = scmp.ne.s32.totalorder %s363, %s365
      %p369 = scmp.eq.s32.totalorder %s35, 0
      %p370 = por %p368, %p369
      %p371 = scmp.ne.s32.totalorder %s363, %s365
      %p372 = scmp.eq.s32.totalorder %s40, 1
      %p373 = por %p371, %p372
      %p374 = scmp.ne.s32.totalorder %s365, %s366
      %p375 = scmp.eq.s32.totalorder %s40, 0
      %p376 = por %p374, %p375
      %p377 = scmp.ne.s32.totalorder %s365, %s366
      %p378 = scmp.eq.s32.totalorder %s41, 1
      %p379 = por %p377, %p378
      %p381 = scmp.ne.s32.totalorder %s366, %s380
      %p382 = scmp.eq.s32.totalorder %s41, 0
      %p383 = por %p381, %p382
      %s385 = sadd.s32 %s384, 1
      %p388 = scmp.eq.s32.totalorder %s35, 1
      %p389 = scmp.ne.s32.totalorder %s384, %s386
      %p390 = scmp.eq.s32.totalorder %s35, 0
      %p391 = por %p389, %p390
      %p392 = scmp.ne.s32.totalorder %s384, %s386
      %p393 = scmp.eq.s32.totalorder %s40, 1
      %p394 = por %p392, %p393
      %p395 = scmp.ne.s32.totalorder %s386, %s387
      %p396 = scmp.eq.s32.totalorder %s40, 0
      %p397 = por %p395, %p396
      %p398 = scmp.ne.s32.totalorder %s386, %s387
      %p399 = scmp.eq.s32.totalorder %s41, 1
      %p400 = por %p398, %p399
      %p402 = scmp.ne.s32.totalorder %s387, %s401
      %p403 = scmp.eq.s32.totalorder %s41, 0
      %p404 = por %p402, %p403
      %s406 = sadd.s32 %s405, 1
      %p409 = scmp.eq.s32.totalorder %s35, 1
      %p410 = scmp.ne.s32.totalorder %s405, %s407
      %p411 = scmp.eq.s32.totalorder %s35, 0
      %p412 = por %p410, %p411
      %p413 = scmp.ne.s32.totalorder %s405, %s407
      %p414 = scmp.eq.s32.totalorder %s40, 1
      %p415 = por %p413, %p414
      %p416 = scmp.ne.s32.totalorder %s407, %s408
      %p417 = scmp.eq.s32.totalorder %s40, 0
      %p418 = por %p416, %p417
      %p419 = scmp.ne.s32.totalorder %s407, %s408
      %p420 = scmp.eq.s32.totalorder %s41, 1
      %p421 = por %p419, %p420
      %p423 = scmp.ne.s32.totalorder %s408, %s422
      %p424 = scmp.eq.s32.totalorder %s41, 0
      %p425 = por %p423, %p424
      %s427 = sadd.s32 %s426, 1
      %p430 = scmp.eq.s32.totalorder %s35, 1
      %p431 = scmp.ne.s32.totalorder %s426, %s428
      %p432 = scmp.eq.s32.totalorder %s35, 0
      %p433 = por %p431, %p432
      %p434 = scmp.ne.s32.totalorder %s426, %s428
      %p435 = scmp.eq.s32.totalorder %s40, 1
      %p436 = por %p434, %p435
      %p437 = scmp.ne.s32.totalorder %s428, %s429
      %p438 = scmp.eq.s32.totalorder %s40, 0
      %p439 = por %p437, %p438
      %p440 = scmp.ne.s32.totalorder %s428, %s429
      %p441 = scmp.eq.s32.totalorder %s41, 1
      %p442 = por %p440, %p441
      %p444 = scmp.ne.s32.totalorder %s429, %s443
      %p445 = scmp.eq.s32.totalorder %s41, 0
      %p446 = por %p444, %p445
      %s448 = sadd.s32 %s447, 1
      %p451 = scmp.eq.s32.totalorder %s35, 1
      %p452 = scmp.ne.s32.totalorder %s447, %s449
      %p453 = scmp.eq.s32.totalorder %s35, 0
      %p454 = por %p452, %p453
      %p455 = scmp.ne.s32.totalorder %s447, %s449
      %p456 = scmp.eq.s32.totalorder %s40, 1
      %p457 = por %p455, %p456
      %p458 = scmp.ne.s32.totalorder %s449, %s450
      %p459 = scmp.eq.s32.totalorder %s40, 0
      %p460 = por %p458, %p459
      %p461 = scmp.ne.s32.totalorder %s449, %s450
      %p462 = scmp.eq.s32.totalorder %s41, 1
      %p463 = por %p461, %p462
      %p465 = scmp.ne.s32.totalorder %s450, %s464
      %p466 = scmp.eq.s32.totalorder %s41, 0
      %p467 = por %p465, %p466
      %s469 = sadd.s32 %s468, 1
      %p472 = scmp.eq.s32.totalorder %s35, 1
      %p473 = scmp.ne.s32.totalorder %s468, %s470
      %p474 = scmp.eq.s32.totalorder %s35, 0
      %p475 = por %p473, %p474
      %p476 = scmp.ne.s32.totalorder %s468, %s470
      %p477 = scmp.eq.s32.totalorder %s40, 1
      %p478 = por %p476, %p477
      %p479 = scmp.ne.s32.totalorder %s470, %s471
      %p480 = scmp.eq.s32.totalorder %s40, 0
      %p481 = por %p479, %p480
      %p482 = scmp.ne.s32.totalorder %s470, %s471
      %p483 = scmp.eq.s32.totalorder %s41, 1
      %p484 = por %p482, %p483
      %p486 = scmp.ne.s32.totalorder %s471, %s485
      %p487 = scmp.eq.s32.totalorder %s41, 0
      %p488 = por %p486, %p487
      %s490 = sadd.s32 %s489, 1
      %p493 = scmp.eq.s32.totalorder %s35, 1
      %p494 = scmp.ne.s32.totalorder %s489, %s491
      %p495 = scmp.eq.s32.totalorder %s35, 0
      %p496 = por %p494, %p495
      %p497 = scmp.ne.s32.totalorder %s489, %s491
      %p498 = scmp.eq.s32.totalorder %s40, 1
      %p499 = por %p497, %p498
      %p500 = scmp.ne.s32.totalorder %s491, %s492
      %p501 = scmp.eq.s32.totalorder %s40, 0
      %p502 = por %p500, %p501
      %p503 = scmp.ne.s32.totalorder %s491, %s492
      %p504 = scmp.eq.s32.totalorder %s41, 1
      %p505 = por %p503, %p504
      %p507 = scmp.ne.s32.totalorder %s492, %s506
      %p508 = scmp.eq.s32.totalorder %s41, 0
      %p509 = por %p507, %p508
      %s511 = sadd.s32 %s510, 1
      %p514 = scmp.eq.s32.totalorder %s35, 1
      %p515 = scmp.ne.s32.totalorder %s510, %s512
      %p516 = scmp.eq.s32.totalorder %s35, 0
      %p517 = por %p515, %p516
      %p518 = scmp.ne.s32.totalorder %s510, %s512
      %p519 = scmp.eq.s32.totalorder %s40, 1
      %p520 = por %p518, %p519
      %p521 = scmp.ne.s32.totalorder %s512, %s513
      %p522 = scmp.eq.s32.totalorder %s40, 0
      %p523 = por %p521, %p522
      %p524 = scmp.ne.s32.totalorder %s512, %s513
      %p525 = scmp.eq.s32.totalorder %s41, 1
      %p526 = por %p524, %p525
      %p528 = scmp.ne.s32.totalorder %s513, %s527
      %p529 = scmp.eq.s32.totalorder %s41, 0
      %p530 = por %p528, %p529
      %s532 = sadd.s32 %s531, 1
      %p535 = scmp.eq.s32.totalorder %s35, 1
      %p536 = scmp.ne.s32.totalorder %s531, %s533
      %p537 = scmp.eq.s32.totalorder %s35, 0
      %p538 = por %p536, %p537
      %p539 = scmp.ne.s32.totalorder %s531, %s533
      %p540 = scmp.eq.s32.totalorder %s40, 1
      %p541 = por %p539, %p540
      %p542 = scmp.ne.s32.totalorder %s533, %s534
      %p543 = scmp.eq.s32.totalorder %s40, 0
      %p544 = por %p542, %p543
      %p545 = scmp.ne.s32.totalorder %s533, %s534
      %p546 = scmp.eq.s32.totalorder %s41, 1
      %p547 = por %p545, %p546
      %p549 = scmp.ne.s32.totalorder %s534, %s548
      %p550 = scmp.eq.s32.totalorder %s41, 0
      %p551 = por %p549, %p550
      %s552 = ssub.s32 %s35, %s42
      %p553 = scmp.eq.s32.totalorder %s552, 0
      %s555 = sadd.s32 %s554, 1
      %s556 = scalar_select %p553, %s554, %s555
      %p559 = pneg %p553
      %p560 = scmp.eq.s32.totalorder %s35, 1
      %p561 = por %p559, %p560
      %p562 = scmp.ne.s32.totalorder %s554, %s557
      %p563 = scmp.eq.s32.totalorder %s35, 0
      %p564 = por %p562, %p563
      %p565 = scmp.ne.s32.totalorder %s554, %s557
      %p566 = scmp.eq.s32.totalorder %s40, 1
      %p567 = por %p565, %p566
      %p568 = scmp.ne.s32.totalorder %s557, %s558
      %p569 = scmp.eq.s32.totalorder %s40, 0
      %p570 = por %p568, %p569
      %p571 = scmp.ne.s32.totalorder %s557, %s558
      %p572 = scmp.eq.s32.totalorder %s41, 1
      %p573 = por %p571, %p572
      %p575 = scmp.ne.s32.totalorder %s558, %s574
      %p576 = scmp.eq.s32.totalorder %s41, 0
      %p577 = por %p575, %p576
      %p578 = scmp.le.s32.totalorder 1, %s35
      %p579 = scmp.lt.s32.totalorder %s35, 3
      %p580 = pnand %p578, %p579
      %p581 = pneg %p580
      // Predicated region
      $region9: #{uconv1d_forward.1} parent=5 // pred_check
        _
      $region10: #{uconv1d_forward.1} parent=5 // pred_check_branch
        %583 = sbr.rel (%p580) target = $region12
      $region11: #{uconv1d_forward.1} parent=5 // pred_region
        %s584 = ssub.s32 %s35, 1
        // Predicated region
        $region13: #{uconv1d_forward.1} parent=11 // pred_check
          %p585 = pneg %p82
        $region14: #{uconv1d_forward.1} parent=11 // pred_check_branch
          %587 = sbr.rel (%p585) target = $region16
        $region15: #{uconv1d_forward.1} parent=11 // pred_region
          _
        $region16: #{uconv1d_forward.1} parent=11 // pred_fallthru
          _
        // Predicated region
        $region17: #{uconv1d_forward.1} parent=11 // pred_check
          %p588 = pneg %p103
        $region18: #{uconv1d_forward.1} parent=11 // pred_check_branch
          %590 = sbr.rel (%p588) target = $region20
        $region19: #{uconv1d_forward.1} parent=11 // pred_region
          _
        $region20: #{uconv1d_forward.1} parent=11 // pred_fallthru
          _
        // Predicated region
        $region21: #{uconv1d_forward.1} parent=11 // pred_check
          %p591 = pneg %p124
        $region22: #{uconv1d_forward.1} parent=11 // pred_check_branch
          %593 = sbr.rel (%p591) target = $region24
        $region23: #{uconv1d_forward.1} parent=11 // pred_region
          _
        $region24: #{uconv1d_forward.1} parent=11 // pred_fallthru
          _
        // Predicated region
        $region25: #{uconv1d_forward.1} parent=11 // pred_check
          %p594 = pneg %p145
        $region26: #{uconv1d_forward.1} parent=11 // pred_check_branch
          %596 = sbr.rel (%p594) target = $region28
        $region27: #{uconv1d_forward.1} parent=11 // pred_region
          %s598 = ssub.s32 64, 64
          %599 = vsyncadd [#allocation3], %s598
          %s601 = sshll.u32 [#allocation2], 4
          %s602 = int_to_ptr.vmem [resolvable:$true] %s601
          %604 = dma.hbm_to_vmem [thread:$0]  %s4, 64, %s602, [#allocation3]
        $region28: #{uconv1d_forward.1} parent=11 // pred_fallthru
          _
        // Predicated region
        $region29: #{uconv1d_forward.1} parent=11 // pred_check
          %p605 = pneg %p166
        $region30: #{uconv1d_forward.1} parent=11 // pred_check_branch
          %607 = sbr.rel (%p605) target = $region32
        $region31: #{uconv1d_forward.1} parent=11 // pred_region
          _
        $region32: #{uconv1d_forward.1} parent=11 // pred_fallthru
          _
        // Predicated region
        $region33: #{uconv1d_forward.1} parent=11 // pred_check
          %p608 = pneg %p187
        $region34: #{uconv1d_forward.1} parent=11 // pred_check_branch
          %610 = sbr.rel (%p608) target = $region36
        $region35: #{uconv1d_forward.1} parent=11 // pred_region
          %s612 = ssub.s32 64, 64
          %613 = vsyncadd [#allocation5], %s612
          %s615 = sshll.u32 [#allocation4], 4
          %s616 = int_to_ptr.vmem [resolvable:$true] %s615
          %618 = dma.hbm_to_vmem [thread:$0]  %s6, 64, %s616, [#allocation5]
        $region36: #{uconv1d_forward.1} parent=11 // pred_fallthru
          _
        // Predicated region
        $region37: #{uconv1d_forward.1} parent=11 // pred_check
          %p619 = pneg %p208
        $region38: #{uconv1d_forward.1} parent=11 // pred_check_branch
          %621 = sbr.rel (%p619) target = $region40
        $region39: #{uconv1d_forward.1} parent=11 // pred_region
          _
        $region40: #{uconv1d_forward.1} parent=11 // pred_fallthru
          _
        // Predicated region
        $region41: #{uconv1d_forward.1} parent=11 // pred_check
          %p622 = pneg %p229
        $region42: #{uconv1d_forward.1} parent=11 // pred_check_branch
          %624 = sbr.rel (%p622) target = $region44
        $region43: #{uconv1d_forward.1} parent=11 // pred_region
          _
        $region44: #{uconv1d_forward.1} parent=11 // pred_fallthru
          _
        // Predicated region
        $region45: #{uconv1d_forward.1} parent=11 // pred_check
          %p625 = pneg %p250
        $region46: #{uconv1d_forward.1} parent=11 // pred_check_branch
          %627 = sbr.rel (%p625) target = $region48
        $region47: #{uconv1d_forward.1} parent=11 // pred_region
          _
        $region48: #{uconv1d_forward.1} parent=11 // pred_fallthru
          _
        // Predicated region
        $region49: #{uconv1d_forward.1} parent=11 // pred_check
          %p628 = pneg %p271
        $region50: #{uconv1d_forward.1} parent=11 // pred_check_branch
          %630 = sbr.rel (%p628) target = $region52
        $region51: #{uconv1d_forward.1} parent=11 // pred_region
          %s632 = ssub.s32 64, 64
          %633 = vsyncadd [#allocation5], %s632
          %s635 = sshll.u32 [#allocation6], 4
          %s636 = int_to_ptr.vmem [resolvable:$true] %s635
          %638 = dma.hbm_to_vmem [thread:$0]  %s10, 64, %s636, [#allocation5]
        $region52: #{uconv1d_forward.1} parent=11 // pred_fallthru
          _
        // Predicated region
        $region53: #{uconv1d_forward.1} parent=11 // pred_check
          %p639 = pneg %p292
        $region54: #{uconv1d_forward.1} parent=11 // pred_check_branch
          %641 = sbr.rel (%p639) target = $region56
        $region55: #{uconv1d_forward.1} parent=11 // pred_region
          _
        $region56: #{uconv1d_forward.1} parent=11 // pred_fallthru
          _
        // Predicated region
        $region57: #{uconv1d_forward.1} parent=11 // pred_check
          %p642 = pneg %p313
        $region58: #{uconv1d_forward.1} parent=11 // pred_check_branch
          %644 = sbr.rel (%p642) target = $region60
        $region59: #{uconv1d_forward.1} parent=11 // pred_region
          %s646 = ssub.s32 64, 64
          %647 = vsyncadd [#allocation8], %s646
          %s649 = sshll.u32 [#allocation7], 4
          %s650 = int_to_ptr.vmem [resolvable:$true] %s649
          %652 = dma.hbm_to_vmem [thread:$0]  %s12, 64, %s650, [#allocation8]
        $region60: #{uconv1d_forward.1} parent=11 // pred_fallthru
          _
        // Predicated region
        $region61: #{uconv1d_forward.1} parent=11 // pred_check
          %p653 = pneg %p334
        $region62: #{uconv1d_forward.1} parent=11 // pred_check_branch
          %655 = sbr.rel (%p653) target = $region64
        $region63: #{uconv1d_forward.1} parent=11 // pred_region
          _
        $region64: #{uconv1d_forward.1} parent=11 // pred_fallthru
          _
        // Predicated region
        $region65: #{uconv1d_forward.1} parent=11 // pred_check
          %p656 = pneg %p355
        $region66: #{uconv1d_forward.1} parent=11 // pred_check_branch
          %658 = sbr.rel (%p656) target = $region68
        $region67: #{uconv1d_forward.1} parent=11 // pred_region
          %s660 = ssub.s32 64, 64
          %661 = vsyncadd [#allocation8], %s660
          %s663 = sshll.u32 [#allocation9], 4
          %s664 = int_to_ptr.vmem [resolvable:$true] %s663
          %666 = dma.hbm_to_vmem [thread:$0]  %s14, 64, %s664, [#allocation8]
        $region68: #{uconv1d_forward.1} parent=11 // pred_fallthru
          _
        // Predicated region
        $region69: #{uconv1d_forward.1} parent=11 // pred_check
          %p667 = pneg %p376
        $region70: #{uconv1d_forward.1} parent=11 // pred_check_branch
          %669 = sbr.rel (%p667) target = $region72
        $region71: #{uconv1d_forward.1} parent=11 // pred_region
          %s671 = ssub.s32 128, 128
          %672 = vsyncadd [#allocation11], %s671
          %s674 = sshll.u32 [#allocation10], 4
          %s675 = int_to_ptr.vmem [resolvable:$true] %s674
          %677 = dma.hbm_to_vmem [thread:$0]  %s15, 128, %s675, [#allocation11]
        $region72: #{uconv1d_forward.1} parent=11 // pred_fallthru
          _
        // Predicated region
        $region73: #{uconv1d_forward.1} parent=11 // pred_check
          %p678 = pneg %p397
        $region74: #{uconv1d_forward.1} parent=11 // pred_check_branch
          %680 = sbr.rel (%p678) target = $region76
        $region75: #{uconv1d_forward.1} parent=11 // pred_region
          %s682 = ssub.s32 64, 64
          %683 = vsyncadd [#allocation11], %s682
          %s685 = sshll.u32 [#allocation12], 4
          %s686 = int_to_ptr.vmem [resolvable:$true] %s685
          %688 = dma.hbm_to_vmem [thread:$0]  %s16, 64, %s686, [#allocation11]
        $region76: #{uconv1d_forward.1} parent=11 // pred_fallthru
          _
        // Predicated region
        $region77: #{uconv1d_forward.1} parent=11 // pred_check
          %p689 = pneg %p418
        $region78: #{uconv1d_forward.1} parent=11 // pred_check_branch
          %691 = sbr.rel (%p689) target = $region80
        $region79: #{uconv1d_forward.1} parent=11 // pred_region
          _
        $region80: #{uconv1d_forward.1} parent=11 // pred_fallthru
          _
        // Predicated region
        $region81: #{uconv1d_forward.1} parent=11 // pred_check
          %p692 = pneg %p439
        $region82: #{uconv1d_forward.1} parent=11 // pred_check_branch
          %694 = sbr.rel (%p692) target = $region84
        $region83: #{uconv1d_forward.1} parent=11 // pred_region
          _
        $region84: #{uconv1d_forward.1} parent=11 // pred_fallthru
          _
        // Predicated region
        $region85: #{uconv1d_forward.1} parent=11 // pred_check
          %p695 = pneg %p460
        $region86: #{uconv1d_forward.1} parent=11 // pred_check_branch
          %697 = sbr.rel (%p695) target = $region88
        $region87: #{uconv1d_forward.1} parent=11 // pred_region
          _
        $region88: #{uconv1d_forward.1} parent=11 // pred_fallthru
          _
        // Predicated region
        $region89: #{uconv1d_forward.1} parent=11 // pred_check
          %p698 = pneg %p481
        $region90: #{uconv1d_forward.1} parent=11 // pred_check_branch
          %700 = sbr.rel (%p698) target = $region92
        $region91: #{uconv1d_forward.1} parent=11 // pred_region
          _
        $region92: #{uconv1d_forward.1} parent=11 // pred_fallthru
          _
        // Predicated region
        $region93: #{uconv1d_forward.1} parent=11 // pred_check
          %p701 = pneg %p502
        $region94: #{uconv1d_forward.1} parent=11 // pred_check_branch
          %703 = sbr.rel (%p701) target = $region96
        $region95: #{uconv1d_forward.1} parent=11 // pred_region
          _
        $region96: #{uconv1d_forward.1} parent=11 // pred_fallthru
          _
        // Predicated region
        $region97: #{uconv1d_forward.1} parent=11 // pred_check
          %p704 = pneg %p523
        $region98: #{uconv1d_forward.1} parent=11 // pred_check_branch
          %706 = sbr.rel (%p704) target = $region100
        $region99: #{uconv1d_forward.1} parent=11 // pred_region
          _
        $region100: #{uconv1d_forward.1} parent=11 // pred_fallthru
          _
        // Predicated region
        $region101: #{uconv1d_forward.1} parent=11 // pred_check
          %p707 = pneg %p544
        $region102: #{uconv1d_forward.1} parent=11 // pred_check_branch
          %709 = sbr.rel (%p707) target = $region104
        $region103: #{uconv1d_forward.1} parent=11 // pred_region
          %s711 = ssub.s32 512, 512
          %712 = vsyncadd [#allocation14], %s711
          %s713 = sshll.u32 [#allocation13], 4
          %s714 = int_to_ptr.vmem [resolvable:$true] %s713
          %719 = dma.hbm_to_vmem [thread:$0]  %s23, 512, %s714, [#allocation14], 128, 128, 8
        $region104: #{uconv1d_forward.1} parent=11 // pred_fallthru
          _
      $region12: #{uconv1d_forward.1} parent=5 // pred_fallthru
        _
      %p720 = scmp.lt.s32.totalorder %s35, 2
      // Predicated region
      $region105: #{uconv1d_forward.1} parent=5 // pred_check
        %p721 = pneg %p720
      $region106: #{uconv1d_forward.1} parent=5 // pred_check_branch
        %723 = sbr.rel (%p721) target = $region108
      $region107: #{uconv1d_forward.1} parent=5 // pred_region
        // Predicated region
        $region109: #{uconv1d_forward.1} parent=107 // pred_check
          %p724 = pneg %p55
        $region110: #{uconv1d_forward.1} parent=107 // pred_check_branch
          %726 = sbr.rel (%p724) target = $region112
        $region111: #{uconv1d_forward.1} parent=107 // pred_region
          %p727 = scmp.lt.s32.totalorder %s35, 1
          %s728 = scalar_select %p727, %s35, 1
          %s729 = smul.addr %s728, 2
          %s730 = smul.addr %s729, 8
          %s731 = scalar_lea.vmem %s0, %s730
        $region112: #{uconv1d_forward.1} parent=107 // pred_fallthru
          _
      $region108: #{uconv1d_forward.1} parent=5 // pred_fallthru
        _
      %p732 = scmp.le.s32.totalorder 1, %s35
      %p733 = scmp.lt.s32.totalorder %s35, 3
      %p734 = pnand %p732, %p733
      %p735 = pneg %p734
      // Predicated region
      $region113: #{uconv1d_forward.1} parent=5 // pred_check
        _
      $region114: #{uconv1d_forward.1} parent=5 // pred_check_branch
        %737 = sbr.rel (%p734) target = $region116
      $region115: #{uconv1d_forward.1} parent=5 // pred_region
        %s738 = ssub.s32 %s35, 1
        // Predicated region
        $region117: #{uconv1d_forward.1} parent=115 // pred_check
          %p739 = pneg %p145
        $region118: #{uconv1d_forward.1} parent=115 // pred_check_branch
          %741 = sbr.rel (%p739) target = $region120
        $region119: #{uconv1d_forward.1} parent=115 // pred_region
          %742 = dma.done [#allocation3], 64
        $region120: #{uconv1d_forward.1} parent=115 // pred_fallthru
          _
        // Predicated region
        $region121: #{uconv1d_forward.1} parent=115 // pred_check
          %p743 = pneg %p187
        $region122: #{uconv1d_forward.1} parent=115 // pred_check_branch
          %745 = sbr.rel (%p743) target = $region124
        $region123: #{uconv1d_forward.1} parent=115 // pred_region
          %746 = dma.done [#allocation5], 64
        $region124: #{uconv1d_forward.1} parent=115 // pred_fallthru
          _
        // Predicated region
        $region125: #{uconv1d_forward.1} parent=115 // pred_check
          %p747 = pneg %p271
        $region126: #{uconv1d_forward.1} parent=115 // pred_check_branch
          %749 = sbr.rel (%p747) target = $region128
        $region127: #{uconv1d_forward.1} parent=115 // pred_region
          %750 = dma.done [#allocation5], 64
        $region128: #{uconv1d_forward.1} parent=115 // pred_fallthru
          _
        // Predicated region
        $region129: #{uconv1d_forward.1} parent=115 // pred_check
          %p751 = pneg %p313
        $region130: #{uconv1d_forward.1} parent=115 // pred_check_branch
          %753 = sbr.rel (%p751) target = $region132
        $region131: #{uconv1d_forward.1} parent=115 // pred_region
          %754 = dma.done [#allocation8], 64
        $region132: #{uconv1d_forward.1} parent=115 // pred_fallthru
          _
        // Predicated region
        $region133: #{uconv1d_forward.1} parent=115 // pred_check
          %p755 = pneg %p355
        $region134: #{uconv1d_forward.1} parent=115 // pred_check_branch
          %757 = sbr.rel (%p755) target = $region136
        $region135: #{uconv1d_forward.1} parent=115 // pred_region
          %758 = dma.done [#allocation8], 64
        $region136: #{uconv1d_forward.1} parent=115 // pred_fallthru
          _
        // Predicated region
        $region137: #{uconv1d_forward.1} parent=115 // pred_check
          %p759 = pneg %p376
        $region138: #{uconv1d_forward.1} parent=115 // pred_check_branch
          %761 = sbr.rel (%p759) target = $region140
        $region139: #{uconv1d_forward.1} parent=115 // pred_region
          %762 = dma.done [#allocation11], 128
        $region140: #{uconv1d_forward.1} parent=115 // pred_fallthru
          _
        // Predicated region
        $region141: #{uconv1d_forward.1} parent=115 // pred_check
          %p763 = pneg %p397
        $region142: #{uconv1d_forward.1} parent=115 // pred_check_branch
          %765 = sbr.rel (%p763) target = $region144
        $region143: #{uconv1d_forward.1} parent=115 // pred_region
          %766 = dma.done [#allocation11], 64
        $region144: #{uconv1d_forward.1} parent=115 // pred_fallthru
          _
        // Predicated region
        $region145: #{uconv1d_forward.1} parent=115 // pred_check
          %p767 = pneg %p544
        $region146: #{uconv1d_forward.1} parent=115 // pred_check_branch
          %769 = sbr.rel (%p767) target = $region148
        $region147: #{uconv1d_forward.1} parent=115 // pred_region
          %770 = dma.done [#allocation14], 512
        $region148: #{uconv1d_forward.1} parent=115 // pred_fallthru
          _
        %p771 = scmp.lt.s32.totalorder %s40, 1
        %s772 = scalar_select %p771, %s40, 1
        %s773 = smul.addr %s772, 2
        %s774 = smul.addr %s773, 8
        %s775 = scalar_lea.vmem %s0, %s774
        %p776 = pneg %p61
        %p777 = pneg %p58
        %p778 = pneg %p82
        %p779 = pneg %p79
        %p780 = pneg %p103
        %p781 = pneg %p100
        %p782 = pneg %p124
        %p783 = pneg %p121
        %p784 = pneg %p145
        %p785 = pneg %p142
        %p786 = pneg %p166
        %p787 = pneg %p163
        %p788 = pneg %p187
        %p789 = pneg %p184
        %p790 = pneg %p208
        %p791 = pneg %p205
        %p792 = pneg %p229
        %p793 = pneg %p226
        %p794 = pneg %p250
        %p795 = pneg %p247
        %p796 = pneg %p271
        %p797 = pneg %p268
        %p798 = pneg %p292
        %p799 = pneg %p289
        %p800 = pneg %p313
        %p801 = pneg %p310
        %p802 = pneg %p334
        %p803 = pneg %p331
        %p804 = pneg %p355
        %p805 = pneg %p352
        %p806 = pneg %p376
        %p807 = pneg %p373
        %p808 = pneg %p397
        %p809 = pneg %p394
        %p810 = pneg %p418
        %p811 = pneg %p415
        %p812 = pneg %p439
        %p813 = pneg %p436
        %p814 = pneg %p460
        %p815 = pneg %p457
        %p816 = pneg %p481
        %p817 = pneg %p478
        %p818 = pneg %p502
        %p819 = pneg %p499
        %p820 = pneg %p523
        %p821 = pneg %p520
        %p822 = pneg %p544
        %p823 = pneg %p541
        %p824 = pneg %p570
        %p825 = pneg %p567
        %p826 = scmp.lt.s32.totalorder %s40, 1
        %s827 = scalar_select %p826, %s40, 1
        %s828 = scalar_lea.vmem %s24, %s827
        %p829 = scmp.lt.s32.totalorder %s40, 1
        %s830 = scalar_select %p829, %s40, 1
        %s831 = smul.addr %s830, 2
        %s832 = smul.addr %s831, 8
        %s833 = scalar_lea.vmem %s0, %s832
        %p834 = scmp.lt.s32.totalorder %s40, 1
        %s835 = scalar_select %p834, %s40, 1
        %s836 = scalar_lea.vmem %s24, %s835
        %v837 = vld [vmem:[%s833] sm:$0xff]
        %v838 = vld [vmem:[%s833 + $0x8] sm:$0xff]
        %v839 = vlaneseq
        %v840 = vshrl.u32 %v839, 7
        %v841 = vadd.s32 %v840, 8
        %vm842 = vcmp.eq.s32.totalorder %v840, 0
        %vm843 = vcmp.eq.s32.totalorder %v841, 0
        %v844 = vrot.slane %v837, 7
        %v845 = vrot.slane %v838, 7
        %vm846 = vcmp.lt.s32.totalorder %v840, 1
        %v847 = vsel %vm846, %v844, %v845
        %v848 = vsel %vm846, %v845, %v844
        %v849 = vsel %vm842, 1, 0
        %v850 = vsel %vm843, 1, 0
        %vm851 = vcmp.eq.s32.totalorder %v849, 1
        %vm852 = vcmp.eq.s32.totalorder %v850, 1
        %v853 = vsel %vm851, 0.0, %v848
        %v854 = vsel %vm852, 0.0, %v847
        %vm855 = vcmp.eq.s32.totalorder %v840, 15
        %vm856 = vcmp.eq.s32.totalorder %v841, 15
        %v857 = vrot.slane %v837, 1
        %v858 = vrot.slane %v838, 1
        %vm859 = vcmp.lt.s32.totalorder %v840, 7
        %v860 = vsel %vm859, %v857, %v858
        %v861 = vsel %vm859, %v858, %v857
        %v862 = vsel %vm855, 1, 0
        %v863 = vsel %vm856, 1, 0
        %vm864 = vcmp.eq.s32.totalorder %v862, 1
        %vm865 = vcmp.eq.s32.totalorder %v863, 1
        %v866 = vsel %vm864, 0.0, %v860
        %v867 = vsel %vm865, 0.0, %v861
        %v868 = vld [vmem:[%s1] sm:$0xff]
        %v869 = vld [vmem:[%s1 + $0x8] sm:$0xff]
        %v870 = vld [vmem:[%s1 + $0x10] sm:$0xff]
        %v871 = vld [vmem:[%s1 + $0x18] sm:$0xff]
        %v872 = vld [vmem:[%s1 + $0x20] sm:$0xff]
        %v873 = vld [vmem:[%s1 + $0x28] sm:$0x1]
        %s874 = scalar_lea.vmem %s1, 48
        %v875 = vld [vmem:[%s874] sm:$0xff]
        %v876 = vld [vmem:[%s874 + $0x8] sm:$0xff]
        %v877 = vld [vmem:[%s874 + $0x10] sm:$0xff]
        %v878 = vld [vmem:[%s874 + $0x18] sm:$0xff]
        %v879 = vld [vmem:[%s874 + $0x20] sm:$0xff]
        %v880 = vld [vmem:[%s874 + $0x28] sm:$0x1]
        %vm881 = vcmask 334848
        %v883 = vsel %vm881, %v837, 0
        %v886 = vsel %vm881, %v838, 0
        %vm888 = vcmask 1040384
        %v890 = vsel %vm888, %v880, 0
        %892 = vmatprep.subr.mxu0 0.0
        %893 = vmatpush1.msra.mxu0 0.0
        %894 = vmatprep.subr.mxu0 0.0
        %895 = vmatpush1.msra.mxu0 0.0
        %896 = vmatprep.subr.mxu0 0.0
        %897 = vmatpush1.msra.mxu0 0.0
        %898 = vmatprep.subr.mxu0 0.0
        %899 = vmatpush1.msra.mxu0 0.0
        %900 = vmatprep.subr.mxu0 0.0
        %901 = vmatpush1.msra.mxu0 0.0
        %902 = vmatprep.subr.mxu0 0.0
        %903 = vmatpush1.msra.mxu0 0.0
        %904 = vmatprep.subr.mxu0 0.0
        %905 = vmatpush1.msra.mxu0 0.0
        %906 = vmatprep.subr.mxu0 0.0
        %907 = vmatpush1.msra.mxu0 0.0
        %908 = vmatprep.subr.mxu0 0.0
        %909 = vmatpush1.msra.mxu0 0.0
        %910 = vmatprep.subr.mxu0 0.0
        %911 = vmatpush1.msra.mxu0 0.0
        %912 = vmatprep.subr.mxu0 0.0
        %913 = vmatpush1.msra.mxu0 %v890
        %914 = vmatprep.subr.mxu0 0.0
        %915 = vmatpush1.msra.mxu0 %v879
        %916 = vmatprep.subr.mxu0 0.0
        %917 = vmatpush1.msra.mxu0 %v878
        %918 = vmatprep.subr.mxu0 0.0
        %919 = vmatpush1.msra.mxu0 %v877
        %920 = vmatprep.subr.mxu0 0.0
        %921 = vmatpush1.msra.mxu0 %v876
        %922 = vmatprep.subr.mxu0 0.0
        %923 = vmatpush1.msra.mxu0 %v875
        %924 = vmatprep.subr.mxu0 0.0
        %925 = vmatpush2.msra.mxu0 0.0
        %926 = vmatprep.subr.mxu0 0.0
        %927 = vmatpush2.msra.mxu0 0.0
        %928 = vmatprep.subr.mxu0 0.0
        %929 = vmatpush2.msra.mxu0 0.0
        %930 = vmatprep.subr.mxu0 0.0
        %931 = vmatpush2.msra.mxu0 0.0
        %932 = vmatprep.subr.mxu0 0.0
        %933 = vmatpush2.msra.mxu0 0.0
        %934 = vmatprep.subr.mxu0 0.0
        %935 = vmatpush2.msra.mxu0 0.0
        %936 = vmatprep.subr.mxu0 0.0
        %937 = vmatpush2.msra.mxu0 0.0
        %938 = vmatprep.subr.mxu0 0.0
        %939 = vmatpush2.msra.mxu0 0.0
        %940 = vmatprep.subr.mxu0 0.0
        %941 = vmatpush2.msra.mxu0 0.0
        %942 = vmatprep.subr.mxu0 0.0
        %943 = vmatpush2.msra.mxu0 0.0
        %944 = vmatprep.subr.mxu0 0.0
        %945 = vmatpush2.msra.mxu0 0.0
        %946 = vmatprep.subr.mxu0 0.0
        %947 = vmatpush2.msra.mxu0 0.0
        %948 = vmatprep.subr.mxu0 0.0
        %949 = vmatpush2.msra.mxu0 0.0
        %950 = vmatprep.subr.mxu0 0.0
        %951 = vmatpush2.msra.mxu0 0.0
        %952 = vmatprep.subr.mxu0 0.0
        %953 = vmatpush2.msra.mxu0 0.0
        %954 = vmatprep.subr.mxu0 0.0
        %955 = vmatpush2.msra.mxu0 0.0
        %956 = vmatprep.mubr.f32.mxu0 0.0
        %957 = vmatmul.mubr.f32.gmra.mxu0 %v883
        %v958 = vpop.f32.mrf.mxu0
        %v959 = vadd.f32 0.0, %v958
        %v960 = vpop.f32.mrf.mxu0
        %961 = vmatprep.mubr.f32.mxu0 0.0
        %962 = vmatmul.mubr.f32.gmra.mxu0 %v886
        %v963 = vpop.f32.mrf.mxu0
        %v964 = vadd.f32 0.0, %v963
        %v965 = vpop.f32.mrf.mxu0
        %966 = vdwg.mxu0
        %v968 = vsel %vm881, %v853, 0
        %v971 = vsel %vm881, %v854, 0
        %v974 = vsel %vm888, %v873, 0
        %976 = vmatprep.subr.mxu0 0.0
        %977 = vmatpush1.msra.mxu0 0.0
        %978 = vmatprep.subr.mxu0 0.0
        %979 = vmatpush1.msra.mxu0 0.0
        %980 = vmatprep.subr.mxu0 0.0
        %981 = vmatpush1.msra.mxu0 0.0
        %982 = vmatprep.subr.mxu0 0.0
        %983 = vmatpush1.msra.mxu0 0.0
        %984 = vmatprep.subr.mxu0 0.0
        %985 = vmatpush1.msra.mxu0 0.0
        %986 = vmatprep.subr.mxu0 0.0
        %987 = vmatpush1.msra.mxu0 0.0
        %988 = vmatprep.subr.mxu0 0.0
        %989 = vmatpush1.msra.mxu0 0.0
        %990 = vmatprep.subr.mxu0 0.0
        %991 = vmatpush1.msra.mxu0 0.0
        %992 = vmatprep.subr.mxu0 0.0
        %993 = vmatpush1.msra.mxu0 0.0
        %994 = vmatprep.subr.mxu0 0.0
        %995 = vmatpush1.msra.mxu0 0.0
        %996 = vmatprep.subr.mxu0 0.0
        %997 = vmatpush1.msra.mxu0 %v974
        %998 = vmatprep.subr.mxu0 0.0
        %999 = vmatpush1.msra.mxu0 %v872
        %1000 = vmatprep.subr.mxu0 0.0
        %1001 = vmatpush1.msra.mxu0 %v871
        %1002 = vmatprep.subr.mxu0 0.0
        %1003 = vmatpush1.msra.mxu0 %v870
        %1004 = vmatprep.subr.mxu0 0.0
        %1005 = vmatpush1.msra.mxu0 %v869
        %1006 = vmatprep.subr.mxu0 0.0
        %1007 = vmatpush1.msra.mxu0 %v868
        %1008 = vmatprep.subr.mxu0 0.0
        %1009 = vmatpush2.msra.mxu0 0.0
        %1010 = vmatprep.subr.mxu0 0.0
        %1011 = vmatpush2.msra.mxu0 0.0
        %1012 = vmatprep.subr.mxu0 0.0
        %1013 = vmatpush2.msra.mxu0 0.0
        %1014 = vmatprep.subr.mxu0 0.0
        %1015 = vmatpush2.msra.mxu0 0.0
        %1016 = vmatprep.subr.mxu0 0.0
        %1017 = vmatpush2.msra.mxu0 0.0
        %1018 = vmatprep.subr.mxu0 0.0
        %1019 = vmatpush2.msra.mxu0 0.0
        %1020 = vmatprep.subr.mxu0 0.0
        %1021 = vmatpush2.msra.mxu0 0.0
        %1022 = vmatprep.subr.mxu0 0.0
        %1023 = vmatpush2.msra.mxu0 0.0
        %1024 = vmatprep.subr.mxu0 0.0
        %1025 = vmatpush2.msra.mxu0 0.0
        %1026 = vmatprep.subr.mxu0 0.0
        %1027 = vmatpush2.msra.mxu0 0.0
        %1028 = vmatprep.subr.mxu0 0.0
        %1029 = vmatpush2.msra.mxu0 0.0
        %1030 = vmatprep.subr.mxu0 0.0
        %1031 = vmatpush2.msra.mxu0 0.0
        %1032 = vmatprep.subr.mxu0 0.0
        %1033 = vmatpush2.msra.mxu0 0.0
        %1034 = vmatprep.subr.mxu0 0.0
        %1035 = vmatpush2.msra.mxu0 0.0
        %1036 = vmatprep.subr.mxu0 0.0
        %1037 = vmatpush2.msra.mxu0 0.0
        %1038 = vmatprep.subr.mxu0 0.0
        %1039 = vmatpush2.msra.mxu0 0.0
        %1040 = vmatprep.mubr.f32.mxu0 0.0
        %1041 = vmatmul.mubr.f32.gmra.mxu0 %v968
        %v1042 = vpop.f32.mrf.mxu0
        %v1043 = vadd.f32 %v959, %v1042
        %v1044 = vpop.f32.mrf.mxu0
        %1045 = vmatprep.mubr.f32.mxu0 0.0
        %1046 = vmatmul.mubr.f32.gmra.mxu0 %v971
        %v1047 = vpop.f32.mrf.mxu0
        %v1048 = vadd.f32 %v964, %v1047
        %v1049 = vpop.f32.mrf.mxu0
        %1050 = vdwg.mxu0
        %s1051 = scalar_lea.vmem %s1, 96
        %v1052 = vld [vmem:[%s1051] sm:$0xff]
        %v1053 = vld [vmem:[%s1051 + $0x8] sm:$0xff]
        %v1054 = vld [vmem:[%s1051 + $0x10] sm:$0xff]
        %v1055 = vld [vmem:[%s1051 + $0x18] sm:$0xff]
        %v1056 = vld [vmem:[%s1051 + $0x20] sm:$0xff]
        %v1057 = vld [vmem:[%s1051 + $0x28] sm:$0x1]
        %v1059 = vsel %vm881, %v866, 0
        %v1062 = vsel %vm881, %v867, 0
        %v1065 = vsel %vm888, %v1057, 0
        %1067 = vmatprep.subr.mxu0 0.0
        %1068 = vmatpush1.msra.mxu0 0.0
        %1069 = vmatprep.subr.mxu0 0.0
        %1070 = vmatpush1.msra.mxu0 0.0
        %1071 = vmatprep.subr.mxu0 0.0
        %1072 = vmatpush1.msra.mxu0 0.0
        %1073 = vmatprep.subr.mxu0 0.0
        %1074 = vmatpush1.msra.mxu0 0.0
        %1075 = vmatprep.subr.mxu0 0.0
        %1076 = vmatpush1.msra.mxu0 0.0
        %1077 = vmatprep.subr.mxu0 0.0
        %1078 = vmatpush1.msra.mxu0 0.0
        %1079 = vmatprep.subr.mxu0 0.0
        %1080 = vmatpush1.msra.mxu0 0.0
        %1081 = vmatprep.subr.mxu0 0.0
        %1082 = vmatpush1.msra.mxu0 0.0
        %1083 = vmatprep.subr.mxu0 0.0
        %1084 = vmatpush1.msra.mxu0 0.0
        %1085 = vmatprep.subr.mxu0 0.0
        %1086 = vmatpush1.msra.mxu0 0.0
        %1087 = vmatprep.subr.mxu0 0.0
        %1088 = vmatpush1.msra.mxu0 %v1065
        %1089 = vmatprep.subr.mxu0 0.0
        %1090 = vmatpush1.msra.mxu0 %v1056
        %1091 = vmatprep.subr.mxu0 0.0
        %1092 = vmatpush1.msra.mxu0 %v1055
        %1093 = vmatprep.subr.mxu0 0.0
        %1094 = vmatpush1.msra.mxu0 %v1054
        %1095 = vmatprep.subr.mxu0 0.0
        %1096 = vmatpush1.msra.mxu0 %v1053
        %1097 = vmatprep.subr.mxu0 0.0
        %1098 = vmatpush1.msra.mxu0 %v1052
        %1099 = vmatprep.subr.mxu0 0.0
        %1100 = vmatpush2.msra.mxu0 0.0
        %1101 = vmatprep.subr.mxu0 0.0
        %1102 = vmatpush2.msra.mxu0 0.0
        %1103 = vmatprep.subr.mxu0 0.0
        %1104 = vmatpush2.msra.mxu0 0.0
        %1105 = vmatprep.subr.mxu0 0.0
        %1106 = vmatpush2.msra.mxu0 0.0
        %1107 = vmatprep.subr.mxu0 0.0
        %1108 = vmatpush2.msra.mxu0 0.0
        %1109 = vmatprep.subr.mxu0 0.0
        %1110 = vmatpush2.msra.mxu0 0.0
        %1111 = vmatprep.subr.mxu0 0.0
        %1112 = vmatpush2.msra.mxu0 0.0
        %1113 = vmatprep.subr.mxu0 0.0
        %1114 = vmatpush2.msra.mxu0 0.0
        %1115 = vmatprep.subr.mxu0 0.0
        %1116 = vmatpush2.msra.mxu0 0.0
        %1117 = vmatprep.subr.mxu0 0.0
        %1118 = vmatpush2.msra.mxu0 0.0
        %1119 = vmatprep.subr.mxu0 0.0
        %1120 = vmatpush2.msra.mxu0 0.0
        %1121 = vmatprep.subr.mxu0 0.0
        %1122 = vmatpush2.msra.mxu0 0.0
        %1123 = vmatprep.subr.mxu0 0.0
        %1124 = vmatpush2.msra.mxu0 0.0
        %1125 = vmatprep.subr.mxu0 0.0
        %1126 = vmatpush2.msra.mxu0 0.0
        %1127 = vmatprep.subr.mxu0 0.0
        %1128 = vmatpush2.msra.mxu0 0.0
        %1129 = vmatprep.subr.mxu0 0.0
        %1130 = vmatpush2.msra.mxu0 0.0
        %1131 = vmatprep.mubr.f32.mxu0 0.0
        %1132 = vmatmul.mubr.f32.gmra.mxu0 %v1059
        %v1133 = vpop.f32.mrf.mxu0
        %v1134 = vadd.f32 0.0, %v1133
        %v1135 = vpop.f32.mrf.mxu0
        %1136 = vmatprep.mubr.f32.mxu0 0.0
        %1137 = vmatmul.mubr.f32.gmra.mxu0 %v1062
        %v1138 = vpop.f32.mrf.mxu0
        %v1139 = vadd.f32 0.0, %v1138
        %v1140 = vpop.f32.mrf.mxu0
        %1141 = vdwg.mxu0
        %v1142 = vadd.f32 %v1043, %v1134
        %v1143 = vadd.f32 %v1048, %v1139
        %v1144 = vld [vmem:[%s2] sm:$0x7]
        %v1145 = vlaneseq
        %v1146 = vshrl.u32 %v1145, 7
        %v1147 = vsub.s32 0, %v1146
        %v1148 = vrot.slane %v1144, %v1147
        %v1149 = vadd.f32 %v1142, %v1148
        %v1150 = vadd.f32 %v1143, %v1148
        %v1151 = vmax.f32 %v1149, 0.0
        %v1152 = vmax.f32 %v1150, 0.0
        %v1153 = vlaneseq
        %v1154 = vshrl.u32 %v1153, 7
        %v1155 = vsub.s32 1, %v1154
        %v1156 = vrot.slane %v1144, %v1155
        %v1157 = vmul.f32 %v1151, %v1156
        %v1158 = vmul.f32 %v1152, %v1156
        %v1159 = vlaneseq
        %v1160 = vshrl.u32 %v1159, 7
        %v1161 = vsub.s32 2, %v1160
        %v1162 = vrot.slane %v1144, %v1161
        %v1163 = vadd.f32 %v1157, %v1162
        %v1164 = vadd.f32 %v1158, %v1162
        %v1165 = vrot.slane %v1163, 7
        %v1166 = vrot.slane %v1164, 7
        %v1167 = vsel %vm846, %v1165, %v1166
        %v1168 = vsel %vm846, %v1166, %v1165
        %v1169 = vsel %vm851, 0.0, %v1168
        %v1170 = vsel %vm852, 0.0, %v1167
        %v1171 = vrot.slane %v1163, 1
        %v1172 = vrot.slane %v1164, 1
        %v1173 = vsel %vm859, %v1171, %v1172
        %v1174 = vsel %vm859, %v1172, %v1171
        %v1175 = vsel %vm864, 0.0, %v1173
        %v1176 = vsel %vm865, 0.0, %v1174
        %v1177 = vld [vmem:[%s3] sm:$0xff]
        %v1178 = vld [vmem:[%s3 + $0x8] sm:$0xff]
        %v1179 = vld [vmem:[%s3 + $0x10] sm:$0xff]
        %v1180 = vld [vmem:[%s3 + $0x18] sm:$0xff]
        %s1181 = scalar_lea.vmem %s3, 32
        %v1182 = vld [vmem:[%s1181] sm:$0xff]
        %v1183 = vld [vmem:[%s1181 + $0x8] sm:$0xff]
        %v1184 = vld [vmem:[%s1181 + $0x10] sm:$0xff]
        %v1185 = vld [vmem:[%s1181 + $0x18] sm:$0xff]
        %vm1186 = vcmask 261120
        %v1188 = vsel %vm1186, %v1163, 0
        %v1191 = vsel %vm1186, %v1164, 0
        %1193 = vmatprep.subr.mxu0 0.0
        %1194 = vmatpush1.msra.mxu0 0.0
        %1195 = vmatprep.subr.mxu0 0.0
        %1196 = vmatpush1.msra.mxu0 0.0
        %1197 = vmatprep.subr.mxu0 0.0
        %1198 = vmatpush1.msra.mxu0 0.0
        %1199 = vmatprep.subr.mxu0 0.0
        %1200 = vmatpush1.msra.mxu0 0.0
        %1201 = vmatprep.subr.mxu0 0.0
        %1202 = vmatpush1.msra.mxu0 0.0
        %1203 = vmatprep.subr.mxu0 0.0
        %1204 = vmatpush1.msra.mxu0 0.0
        %1205 = vmatprep.subr.mxu0 0.0
        %1206 = vmatpush1.msra.mxu0 0.0
        %1207 = vmatprep.subr.mxu0 0.0
        %1208 = vmatpush1.msra.mxu0 0.0
        %1209 = vmatprep.subr.mxu0 0.0
        %1210 = vmatpush1.msra.mxu0 0.0
        %1211 = vmatprep.subr.mxu0 0.0
        %1212 = vmatpush1.msra.mxu0 0.0
        %1213 = vmatprep.subr.mxu0 0.0
        %1214 = vmatpush1.msra.mxu0 0.0
        %1215 = vmatprep.subr.mxu0 0.0
        %1216 = vmatpush1.msra.mxu0 0.0
        %1217 = vmatprep.subr.mxu0 0.0
        %1218 = vmatpush1.msra.mxu0 %v1185
        %1219 = vmatprep.subr.mxu0 0.0
        %1220 = vmatpush1.msra.mxu0 %v1184
        %1221 = vmatprep.subr.mxu0 0.0
        %1222 = vmatpush1.msra.mxu0 %v1183
        %1223 = vmatprep.subr.mxu0 0.0
        %1224 = vmatpush1.msra.mxu0 %v1182
        %1225 = vmatprep.subr.mxu0 0.0
        %1226 = vmatpush2.msra.mxu0 0.0
        %1227 = vmatprep.subr.mxu0 0.0
        %1228 = vmatpush2.msra.mxu0 0.0
        %1229 = vmatprep.subr.mxu0 0.0
        %1230 = vmatpush2.msra.mxu0 0.0
        %1231 = vmatprep.subr.mxu0 0.0
        %1232 = vmatpush2.msra.mxu0 0.0
        %1233 = vmatprep.subr.mxu0 0.0
        %1234 = vmatpush2.msra.mxu0 0.0
        %1235 = vmatprep.subr.mxu0 0.0
        %1236 = vmatpush2.msra.mxu0 0.0
        %1237 = vmatprep.subr.mxu0 0.0
        %1238 = vmatpush2.msra.mxu0 0.0
        %1239 = vmatprep.subr.mxu0 0.0
        %1240 = vmatpush2.msra.mxu0 0.0
        %1241 = vmatprep.subr.mxu0 0.0
        %1242 = vmatpush2.msra.mxu0 0.0
        %1243 = vmatprep.subr.mxu0 0.0
        %1244 = vmatpush2.msra.mxu0 0.0
        %1245 = vmatprep.subr.mxu0 0.0
        %1246 = vmatpush2.msra.mxu0 0.0
        %1247 = vmatprep.subr.mxu0 0.0
        %1248 = vmatpush2.msra.mxu0 0.0
        %1249 = vmatprep.subr.mxu0 0.0
        %1250 = vmatpush2.msra.mxu0 0.0
        %1251 = vmatprep.subr.mxu0 0.0
        %1252 = vmatpush2.msra.mxu0 0.0
        %1253 = vmatprep.subr.mxu0 0.0
        %1254 = vmatpush2.msra.mxu0 0.0
        %1255 = vmatprep.subr.mxu0 0.0
        %1256 = vmatpush2.msra.mxu0 0.0
        %1257 = vmatprep.mubr.f32.mxu0 0.0
        %1258 = vmatmul.mubr.f32.gmra.mxu0 %v1188
        %v1259 = vpop.f32.mrf.mxu0
        %v1260 = vadd.f32 0.0, %v1259
        %v1261 = vpop.f32.mrf.mxu0
        %1262 = vmatprep.mubr.f32.mxu0 0.0
        %1263 = vmatmul.mubr.f32.gmra.mxu0 %v1191
        %v1264 = vpop.f32.mrf.mxu0
        %v1265 = vadd.f32 0.0, %v1264
        %v1266 = vpop.f32.mrf.mxu0
        %1267 = vdwg.mxu0
        %v1269 = vsel %vm1186, %v1169, 0
        %v1272 = vsel %vm1186, %v1170, 0
        %1274 = vmatprep.subr.mxu0 0.0
        %1275 = vmatpush1.msra.mxu0 0.0
        %1276 = vmatprep.subr.mxu0 0.0
        %1277 = vmatpush1.msra.mxu0 0.0
        %1278 = vmatprep.subr.mxu0 0.0
        %1279 = vmatpush1.msra.mxu0 0.0
        %1280 = vmatprep.subr.mxu0 0.0
        %1281 = vmatpush1.msra.mxu0 0.0
        %1282 = vmatprep.subr.mxu0 0.0
        %1283 = vmatpush1.msra.mxu0 0.0
        %1284 = vmatprep.subr.mxu0 0.0
        %1285 = vmatpush1.msra.mxu0 0.0
        %1286 = vmatprep.subr.mxu0 0.0
        %1287 = vmatpush1.msra.mxu0 0.0
        %1288 = vmatprep.subr.mxu0 0.0
        %1289 = vmatpush1.msra.mxu0 0.0
        %1290 = vmatprep.subr.mxu0 0.0
        %1291 = vmatpush1.msra.mxu0 0.0
        %1292 = vmatprep.subr.mxu0 0.0
        %1293 = vmatpush1.msra.mxu0 0.0
        %1294 = vmatprep.subr.mxu0 0.0
        %1295 = vmatpush1.msra.mxu0 0.0
        %1296 = vmatprep.subr.mxu0 0.0
        %1297 = vmatpush1.msra.mxu0 0.0
        %1298 = vmatprep.subr.mxu0 0.0
        %1299 = vmatpush1.msra.mxu0 %v1180
        %1300 = vmatprep.subr.mxu0 0.0
        %1301 = vmatpush1.msra.mxu0 %v1179
        %1302 = vmatprep.subr.mxu0 0.0
        %1303 = vmatpush1.msra.mxu0 %v1178
        %1304 = vmatprep.subr.mxu0 0.0
        %1305 = vmatpush1.msra.mxu0 %v1177
        %1306 = vmatprep.subr.mxu0 0.0
        %1307 = vmatpush2.msra.mxu0 0.0
        %1308 = vmatprep.subr.mxu0 0.0
        %1309 = vmatpush2.msra.mxu0 0.0
        %1310 = vmatprep.subr.mxu0 0.0
        %1311 = vmatpush2.msra.mxu0 0.0
        %1312 = vmatprep.subr.mxu0 0.0
        %1313 = vmatpush2.msra.mxu0 0.0
        %1314 = vmatprep.subr.mxu0 0.0
        %1315 = vmatpush2.msra.mxu0 0.0
        %1316 = vmatprep.subr.mxu0 0.0
        %1317 = vmatpush2.msra.mxu0 0.0
        %1318 = vmatprep.subr.mxu0 0.0
        %1319 = vmatpush2.msra.mxu0 0.0
        %1320 = vmatprep.subr.mxu0 0.0
        %1321 = vmatpush2.msra.mxu0 0.0
        %1322 = vmatprep.subr.mxu0 0.0
        %1323 = vmatpush2.msra.mxu0 0.0
        %1324 = vmatprep.subr.mxu0 0.0
        %1325 = vmatpush2.msra.mxu0 0.0
        %1326 = vmatprep.subr.mxu0 0.0
        %1327 = vmatpush2.msra.mxu0 0.0
        %1328 = vmatprep.subr.mxu0 0.0
        %1329 = vmatpush2.msra.mxu0 0.0
        %1330 = vmatprep.subr.mxu0 0.0
        %1331 = vmatpush2.msra.mxu0 0.0
        %1332 = vmatprep.subr.mxu0 0.0
        %1333 = vmatpush2.msra.mxu0 0.0
        %1334 = vmatprep.subr.mxu0 0.0
        %1335 = vmatpush2.msra.mxu0 0.0
        %1336 = vmatprep.subr.mxu0 0.0
        %1337 = vmatpush2.msra.mxu0 0.0
        %1338 = vmatprep.mubr.f32.mxu0 0.0
        %1339 = vmatmul.mubr.f32.gmra.mxu0 %v1269
        %v1340 = vpop.f32.mrf.mxu0
        %v1341 = vadd.f32 %v1260, %v1340
        %v1342 = vpop.f32.mrf.mxu0
        %1343 = vmatprep.mubr.f32.mxu0 0.0
        %1344 = vmatmul.mubr.f32.gmra.mxu0 %v1272
        %v1345 = vpop.f32.mrf.mxu0
        %v1346 = vadd.f32 %v1265, %v1345
        %v1347 = vpop.f32.mrf.mxu0
        %1348 = vdwg.mxu0
        %s1349 = scalar_lea.vmem %s3, 64
        %v1350 = vld [vmem:[%s1349] sm:$0xff]
        %v1351 = vld [vmem:[%s1349 + $0x8] sm:$0xff]
        %v1352 = vld [vmem:[%s1349 + $0x10] sm:$0xff]
        %v1353 = vld [vmem:[%s1349 + $0x18] sm:$0xff]
        %v1355 = vsel %vm1186, %v1175, 0
        %v1358 = vsel %vm1186, %v1176, 0
        %1360 = vmatprep.subr.mxu0 0.0
        %1361 = vmatpush1.msra.mxu0 0.0
        %1362 = vmatprep.subr.mxu0 0.0
        %1363 = vmatpush1.msra.mxu0 0.0
        %1364 = vmatprep.subr.mxu0 0.0
        %1365 = vmatpush1.msra.mxu0 0.0
        %1366 = vmatprep.subr.mxu0 0.0
        %1367 = vmatpush1.msra.mxu0 0.0
        %1368 = vmatprep.subr.mxu0 0.0
        %1369 = vmatpush1.msra.mxu0 0.0
        %1370 = vmatprep.subr.mxu0 0.0
        %1371 = vmatpush1.msra.mxu0 0.0
        %1372 = vmatprep.subr.mxu0 0.0
        %1373 = vmatpush1.msra.mxu0 0.0
        %1374 = vmatprep.subr.mxu0 0.0
        %1375 = vmatpush1.msra.mxu0 0.0
        %1376 = vmatprep.subr.mxu0 0.0
        %1377 = vmatpush1.msra.mxu0 0.0
        %1378 = vmatprep.subr.mxu0 0.0
        %1379 = vmatpush1.msra.mxu0 0.0
        %1380 = vmatprep.subr.mxu0 0.0
        %1381 = vmatpush1.msra.mxu0 0.0
        %1382 = vmatprep.subr.mxu0 0.0
        %1383 = vmatpush1.msra.mxu0 0.0
        %1384 = vmatprep.subr.mxu0 0.0
        %1385 = vmatpush1.msra.mxu0 %v1353
        %1386 = vmatprep.subr.mxu0 0.0
        %1387 = vmatpush1.msra.mxu0 %v1352
        %1388 = vmatprep.subr.mxu0 0.0
        %1389 = vmatpush1.msra.mxu0 %v1351
        %1390 = vmatprep.subr.mxu0 0.0
        %1391 = vmatpush1.msra.mxu0 %v1350
        %1392 = vmatprep.subr.mxu0 0.0
        %1393 = vmatpush2.msra.mxu0 0.0
        %1394 = vmatprep.subr.mxu0 0.0
        %1395 = vmatpush2.msra.mxu0 0.0
        %1396 = vmatprep.subr.mxu0 0.0
        %1397 = vmatpush2.msra.mxu0 0.0
        %1398 = vmatprep.subr.mxu0 0.0
        %1399 = vmatpush2.msra.mxu0 0.0
        %1400 = vmatprep.subr.mxu0 0.0
        %1401 = vmatpush2.msra.mxu0 0.0
        %1402 = vmatprep.subr.mxu0 0.0
        %1403 = vmatpush2.msra.mxu0 0.0
        %1404 = vmatprep.subr.mxu0 0.0
        %1405 = vmatpush2.msra.mxu0 0.0
        %1406 = vmatprep.subr.mxu0 0.0
        %1407 = vmatpush2.msra.mxu0 0.0
        %1408 = vmatprep.subr.mxu0 0.0
        %1409 = vmatpush2.msra.mxu0 0.0
        %1410 = vmatprep.subr.mxu0 0.0
        %1411 = vmatpush2.msra.mxu0 0.0
        %1412 = vmatprep.subr.mxu0 0.0
        %1413 = vmatpush2.msra.mxu0 0.0
        %1414 = vmatprep.subr.mxu0 0.0
        %1415 = vmatpush2.msra.mxu0 0.0
        %1416 = vmatprep.subr.mxu0 0.0
        %1417 = vmatpush2.msra.mxu0 0.0
        %1418 = vmatprep.subr.mxu0 0.0
        %1419 = vmatpush2.msra.mxu0 0.0
        %1420 = vmatprep.subr.mxu0 0.0
        %1421 = vmatpush2.msra.mxu0 0.0
        %1422 = vmatprep.subr.mxu0 0.0
        %1423 = vmatpush2.msra.mxu0 0.0
        %1424 = vmatprep.mubr.f32.mxu0 0.0
        %1425 = vmatmul.mubr.f32.gmra.mxu0 %v1355
        %v1426 = vpop.f32.mrf.mxu0
        %v1427 = vadd.f32 0.0, %v1426
        %v1428 = vpop.f32.mrf.mxu0
        %1429 = vmatprep.mubr.f32.mxu0 0.0
        %1430 = vmatmul.mubr.f32.gmra.mxu0 %v1358
        %v1431 = vpop.f32.mrf.mxu0
        %v1432 = vadd.f32 0.0, %v1431
        %v1433 = vpop.f32.mrf.mxu0
        %1434 = vdwg.mxu0
        %v1435 = vadd.f32 %v1341, %v1427
        %v1436 = vadd.f32 %v1346, %v1432
        %v1437 = vld [vmem:[#allocation2] sm:$0x7]
        %v1438 = vlaneseq
        %v1439 = vshrl.u32 %v1438, 7
        %v1440 = vsub.s32 0, %v1439
        %v1441 = vrot.slane %v1437, %v1440
        %v1442 = vadd.f32 %v1435, %v1441
        %v1443 = vadd.f32 %v1436, %v1441
        %v1444 = vmax.f32 %v1442, 0.0
        %v1445 = vmax.f32 %v1443, 0.0
        %v1446 = vlaneseq
        %v1447 = vshrl.u32 %v1446, 7
        %v1448 = vsub.s32 1, %v1447
        %v1449 = vrot.slane %v1437, %v1448
        %v1450 = vmul.f32 %v1444, %v1449
        %v1451 = vmul.f32 %v1445, %v1449
        %v1452 = vlaneseq
        %v1453 = vshrl.u32 %v1452, 7
        %v1454 = vsub.s32 2, %v1453
        %v1455 = vrot.slane %v1437, %v1454
        %v1456 = vadd.f32 %v1450, %v1455
        %v1457 = vadd.f32 %v1451, %v1455
        %v1458 = vrot.slane %v1456, 1
        %v1459 = vrot.slane %v1457, 1
        %v1460 = vsel %vm859, %v1458, %v1459
        %v1461 = vsel %vm859, %v1459, %v1458
        %v1462 = vmax.f32 %v1456, %v1460
        %v1463 = vmax.f32 %v1457, %v1461
        %v1464 = vld [vmem:[#allocation10] sm:$0xff]
        %vm1465 = vcmask 130048
        %v1467 = vsel %vm1465, %v1464, 0
        %1469 = vmatprep.subr.mxu0 0.0
        %1470 = vmatpush1.msra.mxu0 0.0
        %1471 = vmatprep.subr.mxu0 0.0
        %1472 = vmatpush1.msra.mxu0 0.0
        %1473 = vmatprep.subr.mxu0 0.0
        %1474 = vmatpush1.msra.mxu0 0.0
        %1475 = vmatprep.subr.mxu0 0.0
        %1476 = vmatpush1.msra.mxu0 0.0
        %1477 = vmatprep.subr.mxu0 0.0
        %1478 = vmatpush1.msra.mxu0 0.0
        %1479 = vmatprep.subr.mxu0 0.0
        %1480 = vmatpush1.msra.mxu0 0.0
        %1481 = vmatprep.subr.mxu0 0.0
        %1482 = vmatpush1.msra.mxu0 0.0
        %1483 = vmatprep.subr.mxu0 0.0
        %1484 = vmatpush1.msra.mxu0 0.0
        %1485 = vmatprep.subr.mxu0 0.0
        %1486 = vmatpush1.msra.mxu0 0.0
        %1487 = vmatprep.subr.mxu0 0.0
        %1488 = vmatpush1.msra.mxu0 0.0
        %1489 = vmatprep.subr.mxu0 0.0
        %1490 = vmatpush1.msra.mxu0 0.0
        %1491 = vmatprep.subr.mxu0 0.0
        %1492 = vmatpush1.msra.mxu0 0.0
        %1493 = vmatprep.subr.mxu0 0.0
        %1494 = vmatpush1.msra.mxu0 0.0
        %1495 = vmatprep.subr.mxu0 0.0
        %1496 = vmatpush1.msra.mxu0 0.0
        %1497 = vmatprep.subr.mxu0 0.0
        %1498 = vmatpush1.msra.mxu0 %v1463
        %1499 = vmatprep.subr.mxu0 0.0
        %1500 = vmatpush1.msra.mxu0 %v1462
        %1501 = vmatprep.subr.mxu0 0.0
        %1502 = vmatpush2.msra.mxu0 0.0
        %1503 = vmatprep.subr.mxu0 0.0
        %1504 = vmatpush2.msra.mxu0 0.0
        %1505 = vmatprep.subr.mxu0 0.0
        %1506 = vmatpush2.msra.mxu0 0.0
        %1507 = vmatprep.subr.mxu0 0.0
        %1508 = vmatpush2.msra.mxu0 0.0
        %1509 = vmatprep.subr.mxu0 0.0
        %1510 = vmatpush2.msra.mxu0 0.0
        %1511 = vmatprep.subr.mxu0 0.0
        %1512 = vmatpush2.msra.mxu0 0.0
        %1513 = vmatprep.subr.mxu0 0.0
        %1514 = vmatpush2.msra.mxu0 0.0
        %1515 = vmatprep.subr.mxu0 0.0
        %1516 = vmatpush2.msra.mxu0 0.0
        %1517 = vmatprep.subr.mxu0 0.0
        %1518 = vmatpush2.msra.mxu0 0.0
        %1519 = vmatprep.subr.mxu0 0.0
        %1520 = vmatpush2.msra.mxu0 0.0
        %1521 = vmatprep.subr.mxu0 0.0
        %1522 = vmatpush2.msra.mxu0 0.0
        %1523 = vmatprep.subr.mxu0 0.0
        %1524 = vmatpush2.msra.mxu0 0.0
        %1525 = vmatprep.subr.mxu0 0.0
        %1526 = vmatpush2.msra.mxu0 0.0
        %1527 = vmatprep.subr.mxu0 0.0
        %1528 = vmatpush2.msra.mxu0 0.0
        %1529 = vmatprep.subr.mxu0 0.0
        %1530 = vmatpush2.msra.mxu0 0.0
        %1531 = vmatprep.subr.mxu0 0.0
        %1532 = vmatpush2.msra.mxu0 0.0
        %1533 = vmatprep.mubr.f32.mxu0 0.0
        %1534 = vmatmul.mubr.f32.gmra.mxu0 %v1467
        %v1535 = vpop.f32.mrf.mxu0
        %v1536 = vadd.f32 0.0, %v1535
        %v1537 = vpop.f32.mrf.mxu0
        %1538 = vdwg.mxu0
        %v1539 = vrot.slane %v1536, 7
        %v1540 = vsel %vm851, 0.0, %v1539
        %vm1541 = vcmp.eq.s32.totalorder %v840, 7
        %v1542 = vrot.slane %v1536, 1
        %v1543 = vsel %vm1541, 1, 0
        %vm1544 = vcmp.eq.s32.totalorder %v1543, 1
        %v1545 = vsel %vm1544, 0.0, %v1542
        %v1546 = vld [vmem:[%s5] sm:$0xff]
        %v1547 = vld [vmem:[%s5 + $0x8] sm:$0xff]
        %v1548 = vld [vmem:[%s5 + $0x10] sm:$0xff]
        %v1549 = vld [vmem:[%s5 + $0x18] sm:$0xff]
        %v1550 = vld [vmem:[%s5 + $0x20] sm:$0xff]
        %v1551 = vld [vmem:[%s5 + $0x28] sm:$0xff]
        %v1552 = vld [vmem:[%s5 + $0x30] sm:$0xff]
        %v1553 = vld [vmem:[%s5 + $0x38] sm:$0xff]
        %s1554 = scalar_lea.vmem %s5, 64
        %v1555 = vld [vmem:[%s1554] sm:$0xff]
        %v1556 = vld [vmem:[%s1554 + $0x8] sm:$0xff]
        %v1557 = vld [vmem:[%s1554 + $0x10] sm:$0xff]
        %v1558 = vld [vmem:[%s1554 + $0x18] sm:$0xff]
        %v1559 = vld [vmem:[%s1554 + $0x20] sm:$0xff]
        %v1560 = vld [vmem:[%s1554 + $0x28] sm:$0xff]
        %v1561 = vld [vmem:[%s1554 + $0x30] sm:$0xff]
        %v1562 = vld [vmem:[%s1554 + $0x38] sm:$0xff]
        %vm1563 = vcmask 523264
        %v1565 = vsel %vm1563, %v1536, 0
        %1567 = vmatprep.subr.mxu0 0.0
        %1568 = vmatpush1.msra.mxu0 0.0
        %1569 = vmatprep.subr.mxu0 0.0
        %1570 = vmatpush1.msra.mxu0 0.0
        %1571 = vmatprep.subr.mxu0 0.0
        %1572 = vmatpush1.msra.mxu0 0.0
        %1573 = vmatprep.subr.mxu0 0.0
        %1574 = vmatpush1.msra.mxu0 0.0
        %1575 = vmatprep.subr.mxu0 0.0
        %1576 = vmatpush1.msra.mxu0 0.0
        %1577 = vmatprep.subr.mxu0 0.0
        %1578 = vmatpush1.msra.mxu0 0.0
        %1579 = vmatprep.subr.mxu0 0.0
        %1580 = vmatpush1.msra.mxu0 0.0
        %1581 = vmatprep.subr.mxu0 0.0
        %1582 = vmatpush1.msra.mxu0 0.0
        %1583 = vmatprep.subr.mxu0 0.0
        %1584 = vmatpush1.msra.mxu0 %v1562
        %1585 = vmatprep.subr.mxu0 0.0
        %1586 = vmatpush1.msra.mxu0 %v1561
        %1587 = vmatprep.subr.mxu0 0.0
        %1588 = vmatpush1.msra.mxu0 %v1560
        %1589 = vmatprep.subr.mxu0 0.0
        %1590 = vmatpush1.msra.mxu0 %v1559
        %1591 = vmatprep.subr.mxu0 0.0
        %1592 = vmatpush1.msra.mxu0 %v1558
        %1593 = vmatprep.subr.mxu0 0.0
        %1594 = vmatpush1.msra.mxu0 %v1557
        %1595 = vmatprep.subr.mxu0 0.0
        %1596 = vmatpush1.msra.mxu0 %v1556
        %1597 = vmatprep.subr.mxu0 0.0
        %1598 = vmatpush1.msra.mxu0 %v1555
        %1599 = vmatprep.subr.mxu0 0.0
        %1600 = vmatpush2.msra.mxu0 0.0
        %1601 = vmatprep.subr.mxu0 0.0
        %1602 = vmatpush2.msra.mxu0 0.0
        %1603 = vmatprep.subr.mxu0 0.0
        %1604 = vmatpush2.msra.mxu0 0.0
        %1605 = vmatprep.subr.mxu0 0.0
        %1606 = vmatpush2.msra.mxu0 0.0
        %1607 = vmatprep.subr.mxu0 0.0
        %1608 = vmatpush2.msra.mxu0 0.0
        %1609 = vmatprep.subr.mxu0 0.0
        %1610 = vmatpush2.msra.mxu0 0.0
        %1611 = vmatprep.subr.mxu0 0.0
        %1612 = vmatpush2.msra.mxu0 0.0
        %1613 = vmatprep.subr.mxu0 0.0
        %1614 = vmatpush2.msra.mxu0 0.0
        %1615 = vmatprep.subr.mxu0 0.0
        %1616 = vmatpush2.msra.mxu0 0.0
        %1617 = vmatprep.subr.mxu0 0.0
        %1618 = vmatpush2.msra.mxu0 0.0
        %1619 = vmatprep.subr.mxu0 0.0
        %1620 = vmatpush2.msra.mxu0 0.0
        %1621 = vmatprep.subr.mxu0 0.0
        %1622 = vmatpush2.msra.mxu0 0.0
        %1623 = vmatprep.subr.mxu0 0.0
        %1624 = vmatpush2.msra.mxu0 0.0
        %1625 = vmatprep.subr.mxu0 0.0
        %1626 = vmatpush2.msra.mxu0 0.0
        %1627 = vmatprep.subr.mxu0 0.0
        %1628 = vmatpush2.msra.mxu0 0.0
        %1629 = vmatprep.subr.mxu0 0.0
        %1630 = vmatpush2.msra.mxu0 0.0
        %1631 = vmatprep.mubr.f32.mxu0 0.0
        %1632 = vmatmul.mubr.f32.gmra.mxu0 %v1565
        %v1633 = vpop.f32.mrf.mxu0
        %v1634 = vadd.f32 0.0, %v1633
        %v1635 = vpop.f32.mrf.mxu0
        %1636 = vdwg.mxu0
        %v1638 = vsel %vm1563, %v1540, 0
        %1640 = vmatprep.subr.mxu0 0.0
        %1641 = vmatpush1.msra.mxu0 0.0
        %1642 = vmatprep.subr.mxu0 0.0
        %1643 = vmatpush1.msra.mxu0 0.0
        %1644 = vmatprep.subr.mxu0 0.0
        %1645 = vmatpush1.msra.mxu0 0.0
        %1646 = vmatprep.subr.mxu0 0.0
        %1647 = vmatpush1.msra.mxu0 0.0
        %1648 = vmatprep.subr.mxu0 0.0
        %1649 = vmatpush1.msra.mxu0 0.0
        %1650 = vmatprep.subr.mxu0 0.0
        %1651 = vmatpush1.msra.mxu0 0.0
        %1652 = vmatprep.subr.mxu0 0.0
        %1653 = vmatpush1.msra.mxu0 0.0
        %1654 = vmatprep.subr.mxu0 0.0
        %1655 = vmatpush1.msra.mxu0 0.0
        %1656 = vmatprep.subr.mxu0 0.0
        %1657 = vmatpush1.msra.mxu0 %v1553
        %1658 = vmatprep.subr.mxu0 0.0
        %1659 = vmatpush1.msra.mxu0 %v1552
        %1660 = vmatprep.subr.mxu0 0.0
        %1661 = vmatpush1.msra.mxu0 %v1551
        %1662 = vmatprep.subr.mxu0 0.0
        %1663 = vmatpush1.msra.mxu0 %v1550
        %1664 = vmatprep.subr.mxu0 0.0
        %1665 = vmatpush1.msra.mxu0 %v1549
        %1666 = vmatprep.subr.mxu0 0.0
        %1667 = vmatpush1.msra.mxu0 %v1548
        %1668 = vmatprep.subr.mxu0 0.0
        %1669 = vmatpush1.msra.mxu0 %v1547
        %1670 = vmatprep.subr.mxu0 0.0
        %1671 = vmatpush1.msra.mxu0 %v1546
        %1672 = vmatprep.subr.mxu0 0.0
        %1673 = vmatpush2.msra.mxu0 0.0
        %1674 = vmatprep.subr.mxu0 0.0
        %1675 = vmatpush2.msra.mxu0 0.0
        %1676 = vmatprep.subr.mxu0 0.0
        %1677 = vmatpush2.msra.mxu0 0.0
        %1678 = vmatprep.subr.mxu0 0.0
        %1679 = vmatpush2.msra.mxu0 0.0
        %1680 = vmatprep.subr.mxu0 0.0
        %1681 = vmatpush2.msra.mxu0 0.0
        %1682 = vmatprep.subr.mxu0 0.0
        %1683 = vmatpush2.msra.mxu0 0.0
        %1684 = vmatprep.subr.mxu0 0.0
        %1685 = vmatpush2.msra.mxu0 0.0
        %1686 = vmatprep.subr.mxu0 0.0
        %1687 = vmatpush2.msra.mxu0 0.0
        %1688 = vmatprep.subr.mxu0 0.0
        %1689 = vmatpush2.msra.mxu0 0.0
        %1690 = vmatprep.subr.mxu0 0.0
        %1691 = vmatpush2.msra.mxu0 0.0
        %1692 = vmatprep.subr.mxu0 0.0
        %1693 = vmatpush2.msra.mxu0 0.0
        %1694 = vmatprep.subr.mxu0 0.0
        %1695 = vmatpush2.msra.mxu0 0.0
        %1696 = vmatprep.subr.mxu0 0.0
        %1697 = vmatpush2.msra.mxu0 0.0
        %1698 = vmatprep.subr.mxu0 0.0
        %1699 = vmatpush2.msra.mxu0 0.0
        %1700 = vmatprep.subr.mxu0 0.0
        %1701 = vmatpush2.msra.mxu0 0.0
        %1702 = vmatprep.subr.mxu0 0.0
        %1703 = vmatpush2.msra.mxu0 0.0
        %1704 = vmatprep.mubr.f32.mxu0 0.0
        %1705 = vmatmul.mubr.f32.gmra.mxu0 %v1638
        %v1706 = vpop.f32.mrf.mxu0
        %v1707 = vadd.f32 %v1634, %v1706
        %v1708 = vpop.f32.mrf.mxu0
        %1709 = vdwg.mxu0
        %s1710 = scalar_lea.vmem %s5, 128
        %v1711 = vld [vmem:[%s1710] sm:$0xff]
        %v1712 = vld [vmem:[%s1710 + $0x8] sm:$0xff]
        %v1713 = vld [vmem:[%s1710 + $0x10] sm:$0xff]
        %v1714 = vld [vmem:[%s1710 + $0x18] sm:$0xff]
        %v1715 = vld [vmem:[%s1710 + $0x20] sm:$0xff]
        %v1716 = vld [vmem:[%s1710 + $0x28] sm:$0xff]
        %v1717 = vld [vmem:[%s1710 + $0x30] sm:$0xff]
        %v1718 = vld [vmem:[%s1710 + $0x38] sm:$0xff]
        %v1720 = vsel %vm1563, %v1545, 0
        %1722 = vmatprep.subr.mxu0 0.0
        %1723 = vmatpush1.msra.mxu0 0.0
        %1724 = vmatprep.subr.mxu0 0.0
        %1725 = vmatpush1.msra.mxu0 0.0
        %1726 = vmatprep.subr.mxu0 0.0
        %1727 = vmatpush1.msra.mxu0 0.0
        %1728 = vmatprep.subr.mxu0 0.0
        %1729 = vmatpush1.msra.mxu0 0.0
        %1730 = vmatprep.subr.mxu0 0.0
        %1731 = vmatpush1.msra.mxu0 0.0
        %1732 = vmatprep.subr.mxu0 0.0
        %1733 = vmatpush1.msra.mxu0 0.0
        %1734 = vmatprep.subr.mxu0 0.0
        %1735 = vmatpush1.msra.mxu0 0.0
        %1736 = vmatprep.subr.mxu0 0.0
        %1737 = vmatpush1.msra.mxu0 0.0
        %1738 = vmatprep.subr.mxu0 0.0
        %1739 = vmatpush1.msra.mxu0 %v1718
        %1740 = vmatprep.subr.mxu0 0.0
        %1741 = vmatpush1.msra.mxu0 %v1717
        %1742 = vmatprep.subr.mxu0 0.0
        %1743 = vmatpush1.msra.mxu0 %v1716
        %1744 = vmatprep.subr.mxu0 0.0
        %1745 = vmatpush1.msra.mxu0 %v1715
        %1746 = vmatprep.subr.mxu0 0.0
        %1747 = vmatpush1.msra.mxu0 %v1714
        %1748 = vmatprep.subr.mxu0 0.0
        %1749 = vmatpush1.msra.mxu0 %v1713
        %1750 = vmatprep.subr.mxu0 0.0
        %1751 = vmatpush1.msra.mxu0 %v1712
        %1752 = vmatprep.subr.mxu0 0.0
        %1753 = vmatpush1.msra.mxu0 %v1711
        %1754 = vmatprep.subr.mxu0 0.0
        %1755 = vmatpush2.msra.mxu0 0.0
        %1756 = vmatprep.subr.mxu0 0.0
        %1757 = vmatpush2.msra.mxu0 0.0
        %1758 = vmatprep.subr.mxu0 0.0
        %1759 = vmatpush2.msra.mxu0 0.0
        %1760 = vmatprep.subr.mxu0 0.0
        %1761 = vmatpush2.msra.mxu0 0.0
        %1762 = vmatprep.subr.mxu0 0.0
        %1763 = vmatpush2.msra.mxu0 0.0
        %1764 = vmatprep.subr.mxu0 0.0
        %1765 = vmatpush2.msra.mxu0 0.0
        %1766 = vmatprep.subr.mxu0 0.0
        %1767 = vmatpush2.msra.mxu0 0.0
        %1768 = vmatprep.subr.mxu0 0.0
        %1769 = vmatpush2.msra.mxu0 0.0
        %1770 = vmatprep.subr.mxu0 0.0
        %1771 = vmatpush2.msra.mxu0 0.0
        %1772 = vmatprep.subr.mxu0 0.0
        %1773 = vmatpush2.msra.mxu0 0.0
        %1774 = vmatprep.subr.mxu0 0.0
        %1775 = vmatpush2.msra.mxu0 0.0
        %1776 = vmatprep.subr.mxu0 0.0
        %1777 = vmatpush2.msra.mxu0 0.0
        %1778 = vmatprep.subr.mxu0 0.0
        %1779 = vmatpush2.msra.mxu0 0.0
        %1780 = vmatprep.subr.mxu0 0.0
        %1781 = vmatpush2.msra.mxu0 0.0
        %1782 = vmatprep.subr.mxu0 0.0
        %1783 = vmatpush2.msra.mxu0 0.0
        %1784 = vmatprep.subr.mxu0 0.0
        %1785 = vmatpush2.msra.mxu0 0.0
        %1786 = vmatprep.mubr.f32.mxu0 0.0
        %1787 = vmatmul.mubr.f32.gmra.mxu0 %v1720
        %v1788 = vpop.f32.mrf.mxu0
        %v1789 = vadd.f32 0.0, %v1788
        %v1790 = vpop.f32.mrf.mxu0
        %1791 = vdwg.mxu0
        %v1792 = vadd.f32 %v1707, %v1789
        %v1793 = vld [vmem:[#allocation4] sm:$0x7]
        %v1794 = vlaneseq
        %v1795 = vshrl.u32 %v1794, 7
        %v1796 = vsub.s32 0, %v1795
        %v1797 = vrot.slane %v1793, %v1796
        %v1798 = vadd.f32 %v1792, %v1797
        %v1799 = vmax.f32 %v1798, 0.0
        %v1800 = vlaneseq
        %v1801 = vshrl.u32 %v1800, 7
        %v1802 = vsub.s32 1, %v1801
        %v1803 = vrot.slane %v1793, %v1802
        %v1804 = vmul.f32 %v1799, %v1803
        %v1805 = vlaneseq
        %v1806 = vshrl.u32 %v1805, 7
        %v1807 = vsub.s32 2, %v1806
        %v1808 = vrot.slane %v1793, %v1807
        %v1809 = vadd.f32 %v1804, %v1808
        %v1810 = vrot.slane %v1809, 1
        %v1811 = vmax.f32 %v1809, %v1810
        %v1812 = vld [vmem:[#allocation12] sm:$0xf]
        %vm1813 = vcmask 64512
        %v1815 = vsel %vm1813, %v1812, 0
        %1817 = vmatprep.subr.mxu0 0.0
        %1818 = vmatpush1.msra.mxu0 0.0
        %1819 = vmatprep.subr.mxu0 0.0
        %1820 = vmatpush1.msra.mxu0 0.0
        %1821 = vmatprep.subr.mxu0 0.0
        %1822 = vmatpush1.msra.mxu0 0.0
        %1823 = vmatprep.subr.mxu0 0.0
        %1824 = vmatpush1.msra.mxu0 0.0
        %1825 = vmatprep.subr.mxu0 0.0
        %1826 = vmatpush1.msra.mxu0 0.0
        %1827 = vmatprep.subr.mxu0 0.0
        %1828 = vmatpush1.msra.mxu0 0.0
        %1829 = vmatprep.subr.mxu0 0.0
        %1830 = vmatpush1.msra.mxu0 0.0
        %1831 = vmatprep.subr.mxu0 0.0
        %1832 = vmatpush1.msra.mxu0 0.0
        %1833 = vmatprep.subr.mxu0 0.0
        %1834 = vmatpush1.msra.mxu0 0.0
        %1835 = vmatprep.subr.mxu0 0.0
        %1836 = vmatpush1.msra.mxu0 0.0
        %1837 = vmatprep.subr.mxu0 0.0
        %1838 = vmatpush1.msra.mxu0 0.0
        %1839 = vmatprep.subr.mxu0 0.0
        %1840 = vmatpush1.msra.mxu0 0.0
        %1841 = vmatprep.subr.mxu0 0.0
        %1842 = vmatpush1.msra.mxu0 0.0
        %1843 = vmatprep.subr.mxu0 0.0
        %1844 = vmatpush1.msra.mxu0 0.0
        %1845 = vmatprep.subr.mxu0 0.0
        %1846 = vmatpush1.msra.mxu0 0.0
        %1847 = vmatprep.subr.mxu0 0.0
        %1848 = vmatpush1.msra.mxu0 %v1811
        %1849 = vmatprep.subr.mxu0 0.0
        %1850 = vmatpush2.msra.mxu0 0.0
        %1851 = vmatprep.subr.mxu0 0.0
        %1852 = vmatpush2.msra.mxu0 0.0
        %1853 = vmatprep.subr.mxu0 0.0
        %1854 = vmatpush2.msra.mxu0 0.0
        %1855 = vmatprep.subr.mxu0 0.0
        %1856 = vmatpush2.msra.mxu0 0.0
        %1857 = vmatprep.subr.mxu0 0.0
        %1858 = vmatpush2.msra.mxu0 0.0
        %1859 = vmatprep.subr.mxu0 0.0
        %1860 = vmatpush2.msra.mxu0 0.0
        %1861 = vmatprep.subr.mxu0 0.0
        %1862 = vmatpush2.msra.mxu0 0.0
        %1863 = vmatprep.subr.mxu0 0.0
        %1864 = vmatpush2.msra.mxu0 0.0
        %1865 = vmatprep.subr.mxu0 0.0
        %1866 = vmatpush2.msra.mxu0 0.0
        %1867 = vmatprep.subr.mxu0 0.0
        %1868 = vmatpush2.msra.mxu0 0.0
        %1869 = vmatprep.subr.mxu0 0.0
        %1870 = vmatpush2.msra.mxu0 0.0
        %1871 = vmatprep.subr.mxu0 0.0
        %1872 = vmatpush2.msra.mxu0 0.0
        %1873 = vmatprep.subr.mxu0 0.0
        %1874 = vmatpush2.msra.mxu0 0.0
        %1875 = vmatprep.subr.mxu0 0.0
        %1876 = vmatpush2.msra.mxu0 0.0
        %1877 = vmatprep.subr.mxu0 0.0
        %1878 = vmatpush2.msra.mxu0 0.0
        %1879 = vmatprep.subr.mxu0 0.0
        %1880 = vmatpush2.msra.mxu0 0.0
        %1881 = vmatprep.mubr.f32.mxu0 0.0
        %1882 = vmatmul.mubr.f32.gmra.mxu0 %v1815
        %v1883 = vpop.f32.mrf.mxu0
        %v1884 = vadd.f32 0.0, %v1883
        %v1885 = vpop.f32.mrf.mxu0
        %1886 = vdwg.mxu0
        %v1887 = vlaneseq
        %v1888 = vand.u32 %v1887, 127
        %v1889 = vsub.s32 %v840, 1
        %vm1890 = vcmp.eq.s32.totalorder %v1888, %v1889
        %v1891 = vsel %vm1890, 1, 0
        %v1892 = vcvt.s32.f32 %v1891
        %v1893 = vadd.s32 %v840, 1
        %vm1894 = vcmp.eq.s32.totalorder %v1888, %v1893
        %v1895 = vsel %vm1894, 1, 0
        %v1896 = vcvt.s32.f32 %v1895
        %vm1897 = vcmask 31744
        %v1899 = vsel %vm1897, %v1892, 0
        %vm1901 = vcmask 1043456
        %v1903 = vsel %vm1901, %v1884, 0
        %1905 = vmatprep.subr.mxu0 0.0
        %1906 = vmatpush1.msra.mxu0 0.0
        %1907 = vmatprep.subr.mxu0 0.0
        %1908 = vmatpush1.msra.mxu0 0.0
        %1909 = vmatprep.subr.mxu0 0.0
        %1910 = vmatpush1.msra.mxu0 0.0
        %1911 = vmatprep.subr.mxu0 0.0
        %1912 = vmatpush1.msra.mxu0 0.0
        %1913 = vmatprep.subr.mxu0 0.0
        %1914 = vmatpush1.msra.mxu0 0.0
        %1915 = vmatprep.subr.mxu0 0.0
        %1916 = vmatpush1.msra.mxu0 0.0
        %1917 = vmatprep.subr.mxu0 0.0
        %1918 = vmatpush1.msra.mxu0 0.0
        %1919 = vmatprep.subr.mxu0 0.0
        %1920 = vmatpush1.msra.mxu0 0.0
        %1921 = vmatprep.subr.mxu0 0.0
        %1922 = vmatpush1.msra.mxu0 0.0
        %1923 = vmatprep.subr.mxu0 0.0
        %1924 = vmatpush1.msra.mxu0 0.0
        %1925 = vmatprep.subr.mxu0 0.0
        %1926 = vmatpush1.msra.mxu0 0.0
        %1927 = vmatprep.subr.mxu0 0.0
        %1928 = vmatpush1.msra.mxu0 0.0
        %1929 = vmatprep.subr.mxu0 0.0
        %1930 = vmatpush1.msra.mxu0 0.0
        %1931 = vmatprep.subr.mxu0 0.0
        %1932 = vmatpush1.msra.mxu0 0.0
        %1933 = vmatprep.subr.mxu0 0.0
        %1934 = vmatpush1.msra.mxu0 0.0
        %1935 = vmatprep.subr.mxu0 0.0
        %1936 = vmatpush1.msra.mxu0 %v1903
        %1937 = vmatprep.subr.mxu0 0.0
        %1938 = vmatpush2.msra.mxu0 0.0
        %1939 = vmatprep.subr.mxu0 0.0
        %1940 = vmatpush2.msra.mxu0 0.0
        %1941 = vmatprep.subr.mxu0 0.0
        %1942 = vmatpush2.msra.mxu0 0.0
        %1943 = vmatprep.subr.mxu0 0.0
        %1944 = vmatpush2.msra.mxu0 0.0
        %1945 = vmatprep.subr.mxu0 0.0
        %1946 = vmatpush2.msra.mxu0 0.0
        %1947 = vmatprep.subr.mxu0 0.0
        %1948 = vmatpush2.msra.mxu0 0.0
        %1949 = vmatprep.subr.mxu0 0.0
        %1950 = vmatpush2.msra.mxu0 0.0
        %1951 = vmatprep.subr.mxu0 0.0
        %1952 = vmatpush2.msra.mxu0 0.0
        %1953 = vmatprep.subr.mxu0 0.0
        %1954 = vmatpush2.msra.mxu0 0.0
        %1955 = vmatprep.subr.mxu0 0.0
        %1956 = vmatpush2.msra.mxu0 0.0
        %1957 = vmatprep.subr.mxu0 0.0
        %1958 = vmatpush2.msra.mxu0 0.0
        %1959 = vmatprep.subr.mxu0 0.0
        %1960 = vmatpush2.msra.mxu0 0.0
        %1961 = vmatprep.subr.mxu0 0.0
        %1962 = vmatpush2.msra.mxu0 0.0
        %1963 = vmatprep.subr.mxu0 0.0
        %1964 = vmatpush2.msra.mxu0 0.0
        %1965 = vmatprep.subr.mxu0 0.0
        %1966 = vmatpush2.msra.mxu0 0.0
        %1967 = vmatprep.subr.mxu0 0.0
        %1968 = vmatpush2.msra.mxu0 0.0
        %1969 = vmatprep.mubr.f32.mxu0 0.0
        %1970 = vmatmul.mubr.f32.gmra.mxu0 %v1899
        %v1971 = vpop.f32.mrf.mxu0
        %v1972 = vadd.f32 0.0, %v1971
        %v1973 = vpop.f32.mrf.mxu0
        %1974 = vdwg.mxu0
        %v1976 = vsel %vm1897, %v1896, 0
        %1978 = vmatprep.subr.mxu0 0.0
        %1979 = vmatpush1.msra.mxu0 0.0
        %1980 = vmatprep.subr.mxu0 0.0
        %1981 = vmatpush1.msra.mxu0 0.0
        %1982 = vmatprep.subr.mxu0 0.0
        %1983 = vmatpush1.msra.mxu0 0.0
        %1984 = vmatprep.subr.mxu0 0.0
        %1985 = vmatpush1.msra.mxu0 0.0
        %1986 = vmatprep.subr.mxu0 0.0
        %1987 = vmatpush1.msra.mxu0 0.0
        %1988 = vmatprep.subr.mxu0 0.0
        %1989 = vmatpush1.msra.mxu0 0.0
        %1990 = vmatprep.subr.mxu0 0.0
        %1991 = vmatpush1.msra.mxu0 0.0
        %1992 = vmatprep.subr.mxu0 0.0
        %1993 = vmatpush1.msra.mxu0 0.0
        %1994 = vmatprep.subr.mxu0 0.0
        %1995 = vmatpush1.msra.mxu0 0.0
        %1996 = vmatprep.subr.mxu0 0.0
        %1997 = vmatpush1.msra.mxu0 0.0
        %1998 = vmatprep.subr.mxu0 0.0
        %1999 = vmatpush1.msra.mxu0 0.0
        %2000 = vmatprep.subr.mxu0 0.0
        %2001 = vmatpush1.msra.mxu0 0.0
        %2002 = vmatprep.subr.mxu0 0.0
        %2003 = vmatpush1.msra.mxu0 0.0
        %2004 = vmatprep.subr.mxu0 0.0
        %2005 = vmatpush1.msra.mxu0 0.0
        %2006 = vmatprep.subr.mxu0 0.0
        %2007 = vmatpush1.msra.mxu0 0.0
        %2008 = vmatprep.subr.mxu0 0.0
        %2009 = vmatpush1.msra.mxu0 %v1903
        %2010 = vmatprep.subr.mxu0 0.0
        %2011 = vmatpush2.msra.mxu0 0.0
        %2012 = vmatprep.subr.mxu0 0.0
        %2013 = vmatpush2.msra.mxu0 0.0
        %2014 = vmatprep.subr.mxu0 0.0
        %2015 = vmatpush2.msra.mxu0 0.0
        %2016 = vmatprep.subr.mxu0 0.0
        %2017 = vmatpush2.msra.mxu0 0.0
        %2018 = vmatprep.subr.mxu0 0.0
        %2019 = vmatpush2.msra.mxu0 0.0
        %2020 = vmatprep.subr.mxu0 0.0
        %2021 = vmatpush2.msra.mxu0 0.0
        %2022 = vmatprep.subr.mxu0 0.0
        %2023 = vmatpush2.msra.mxu0 0.0
        %2024 = vmatprep.subr.mxu0 0.0
        %2025 = vmatpush2.msra.mxu0 0.0
        %2026 = vmatprep.subr.mxu0 0.0
        %2027 = vmatpush2.msra.mxu0 0.0
        %2028 = vmatprep.subr.mxu0 0.0
        %2029 = vmatpush2.msra.mxu0 0.0
        %2030 = vmatprep.subr.mxu0 0.0
        %2031 = vmatpush2.msra.mxu0 0.0
        %2032 = vmatprep.subr.mxu0 0.0
        %2033 = vmatpush2.msra.mxu0 0.0
        %2034 = vmatprep.subr.mxu0 0.0
        %2035 = vmatpush2.msra.mxu0 0.0
        %2036 = vmatprep.subr.mxu0 0.0
        %2037 = vmatpush2.msra.mxu0 0.0
        %2038 = vmatprep.subr.mxu0 0.0
        %2039 = vmatpush2.msra.mxu0 0.0
        %2040 = vmatprep.subr.mxu0 0.0
        %2041 = vmatpush2.msra.mxu0 0.0
        %2042 = vmatprep.mubr.f32.mxu0 0.0
        %2043 = vmatmul.mubr.f32.gmra.mxu0 %v1976
        %v2044 = vpop.f32.mrf.mxu0
        %v2045 = vadd.f32 0.0, %v2044
        %v2046 = vpop.f32.mrf.mxu0
        %2047 = vdwg.mxu0
        %v2048 = vld [vmem:[%s7] sm:$0xff]
        %v2049 = vld [vmem:[%s7 + $0x8] sm:$0xff]
        %v2050 = vld [vmem:[%s7 + $0x10] sm:$0xff]
        %v2051 = vld [vmem:[%s7 + $0x18] sm:$0xff]
        %v2052 = vld [vmem:[%s7 + $0x20] sm:$0xff]
        %v2053 = vld [vmem:[%s7 + $0x28] sm:$0xff]
        %v2054 = vld [vmem:[%s7 + $0x30] sm:$0xff]
        %v2055 = vld [vmem:[%s7 + $0x38] sm:$0xff]
        %v2056 = vld [vmem:[%s7 + $0x40] sm:$0xff]
        %v2057 = vld [vmem:[%s7 + $0x48] sm:$0xff]
        %v2058 = vld [vmem:[%s7 + $0x50] sm:$0xff]
        %v2059 = vld [vmem:[%s7 + $0x58] sm:$0xff]
        %v2060 = vld [vmem:[%s7 + $0x60] sm:$0xff]
        %v2061 = vld [vmem:[%s7 + $0x68] sm:$0xff]
        %v2062 = vld [vmem:[%s7 + $0x70] sm:$0xff]
        %v2063 = vld [vmem:[%s7 + $0x78] sm:$0xff]
        %v2064 = vld [vmem:[%s7 + $0x80] sm:$0xff]
        %v2065 = vld [vmem:[%s7 + $0x88] sm:$0xff]
        %v2066 = vld [vmem:[%s7 + $0x90] sm:$0xff]
        %v2067 = vld [vmem:[%s7 + $0x98] sm:$0xff]
        %v2068 = vld [vmem:[%s7 + $0xa0] sm:$0xff]
        %v2069 = vld [vmem:[%s7 + $0xa8] sm:$0xff]
        %v2070 = vld [vmem:[%s7 + $0xb0] sm:$0xff]
        %v2071 = vld [vmem:[%s7 + $0xb8] sm:$0xff]
        %v2072 = vld [vmem:[%s7 + $0xc0] sm:$0xff]
        %v2073 = vld [vmem:[%s7 + $0xc8] sm:$0xff]
        %v2074 = vld [vmem:[%s7 + $0xd0] sm:$0xff]
        %v2075 = vld [vmem:[%s7 + $0xd8] sm:$0xff]
        %v2076 = vld [vmem:[%s7 + $0xe0] sm:$0xff]
        %v2077 = vld [vmem:[%s7 + $0xe8] sm:$0xff]
        %v2078 = vld [vmem:[%s7 + $0xf0] sm:$0xff]
        %v2079 = vld [vmem:[%s7 + $0xf8] sm:$0xff]
        %v2080 = vld [vmem:[%s7 + $0x100] sm:$0xff]
        %v2081 = vld [vmem:[%s7 + $0x108] sm:$0xff]
        %v2082 = vld [vmem:[%s7 + $0x110] sm:$0xff]
        %v2083 = vld [vmem:[%s7 + $0x118] sm:$0xff]
        %v2084 = vld [vmem:[%s7 + $0x120] sm:$0xff]
        %v2085 = vld [vmem:[%s7 + $0x128] sm:$0xff]
        %v2086 = vld [vmem:[%s7 + $0x130] sm:$0xff]
        %v2087 = vld [vmem:[%s7 + $0x138] sm:$0xff]
        %v2088 = vld [vmem:[%s7 + $0x140] sm:$0xff]
        %v2089 = vld [vmem:[%s7 + $0x148] sm:$0xff]
        %v2090 = vld [vmem:[%s7 + $0x150] sm:$0xff]
        %v2091 = vld [vmem:[%s7 + $0x158] sm:$0xff]
        %v2092 = vld [vmem:[%s7 + $0x160] sm:$0xff]
        %v2093 = vld [vmem:[%s7 + $0x168] sm:$0xff]
        %v2094 = vld [vmem:[%s7 + $0x170] sm:$0xff]
        %v2095 = vld [vmem:[%s7 + $0x178] sm:$0xff]
        %v2096 = vld [vmem:[%s7 + $0x180] sm:$0xff]
        %v2097 = vld [vmem:[%s7 + $0x188] sm:$0xff]
        %v2098 = vld [vmem:[%s7 + $0x190] sm:$0xff]
        %v2099 = vld [vmem:[%s7 + $0x198] sm:$0xff]
        %v2100 = vld [vmem:[%s7 + $0x1a0] sm:$0xff]
        %v2101 = vld [vmem:[%s7 + $0x1a8] sm:$0xff]
        %v2102 = vld [vmem:[%s7 + $0x1b0] sm:$0xff]
        %v2103 = vld [vmem:[%s7 + $0x1b8] sm:$0xff]
        %v2104 = vld [vmem:[%s7 + $0x1c0] sm:$0xff]
        %v2105 = vld [vmem:[%s7 + $0x1c8] sm:$0xff]
        %v2106 = vld [vmem:[%s7 + $0x1d0] sm:$0xff]
        %v2107 = vld [vmem:[%s7 + $0x1d8] sm:$0xff]
        %v2108 = vld [vmem:[%s7 + $0x1e0] sm:$0xff]
        %v2109 = vld [vmem:[%s7 + $0x1e8] sm:$0xff]
        %v2110 = vld [vmem:[%s7 + $0x1f0] sm:$0xff]
        %v2111 = vld [vmem:[%s7 + $0x1f8] sm:$0xff]
        %v2112 = vld [vmem:[%s7 + $0x200] sm:$0xff]
        %v2113 = vld [vmem:[%s7 + $0x208] sm:$0xff]
        %v2114 = vld [vmem:[%s7 + $0x210] sm:$0xff]
        %v2115 = vld [vmem:[%s7 + $0x218] sm:$0xff]
        %v2116 = vld [vmem:[%s7 + $0x220] sm:$0xff]
        %v2117 = vld [vmem:[%s7 + $0x228] sm:$0xff]
        %v2118 = vld [vmem:[%s7 + $0x230] sm:$0xff]
        %v2119 = vld [vmem:[%s7 + $0x238] sm:$0xff]
        %v2120 = vld [vmem:[%s7 + $0x240] sm:$0xff]
        %v2121 = vld [vmem:[%s7 + $0x248] sm:$0xff]
        %v2122 = vld [vmem:[%s7 + $0x250] sm:$0xff]
        %v2123 = vld [vmem:[%s7 + $0x258] sm:$0xff]
        %v2124 = vld [vmem:[%s7 + $0x260] sm:$0xff]
        %v2125 = vld [vmem:[%s7 + $0x268] sm:$0xff]
        %v2126 = vld [vmem:[%s7 + $0x270] sm:$0xff]
        %v2127 = vld [vmem:[%s7 + $0x278] sm:$0xff]
        %v2128 = vld [vmem:[%s7 + $0x280] sm:$0xff]
        %v2129 = vld [vmem:[%s7 + $0x288] sm:$0xff]
        %v2130 = vld [vmem:[%s7 + $0x290] sm:$0xff]
        %v2131 = vld [vmem:[%s7 + $0x298] sm:$0xff]
        %v2132 = vld [vmem:[%s7 + $0x2a0] sm:$0xff]
        %v2133 = vld [vmem:[%s7 + $0x2a8] sm:$0xff]
        %v2134 = vld [vmem:[%s7 + $0x2b0] sm:$0xff]
        %v2135 = vld [vmem:[%s7 + $0x2b8] sm:$0xff]
        %v2136 = vld [vmem:[%s7 + $0x2c0] sm:$0xff]
        %v2137 = vld [vmem:[%s7 + $0x2c8] sm:$0xff]
        %v2138 = vld [vmem:[%s7 + $0x2d0] sm:$0xff]
        %v2139 = vld [vmem:[%s7 + $0x2d8] sm:$0xff]
        %v2140 = vld [vmem:[%s7 + $0x2e0] sm:$0xff]
        %v2141 = vld [vmem:[%s7 + $0x2e8] sm:$0xff]
        %v2142 = vld [vmem:[%s7 + $0x2f0] sm:$0xff]
        %v2143 = vld [vmem:[%s7 + $0x2f8] sm:$0xff]
        %v2144 = vld [vmem:[%s8] sm:$0x77]
        %v2146 = vlaneseq
        %v2147 = vshrl.u32 %v2146, 7
        %v2148 = vsub.s32 0, %v2147
        %v2149 = vrot.slane %v2144, %v2148
        %v2150 = vlaneseq
        %v2151 = vshrl.u32 %v2150, 7
        %v2152 = vsub.s32 4, %v2151
        %v2153 = vrot.slane %v2144, %v2152
        %v2156 = vlaneseq
        %v2157 = vshrl.u32 %v2156, 7
        %v2158 = vsub.s32 0, %v2157
        %v2159 = vrot.slane %v2149, %v2158
        %v2160 = vlaneseq
        %v2161 = vshrl.u32 %v2160, 7
        %v2162 = vsub.s32 0, %v2161
        %v2163 = vrot.slane %v2153, %v2162
        %2164 = vmatprep.subr.mxu0 %v2079
        %2165 = vmatpush1.msra.mxu0 %v2078
        %2166 = vmatprep.subr.mxu0 %v2077
        %2167 = vmatpush1.msra.mxu0 %v2076
        %2168 = vmatprep.subr.mxu0 %v2075
        %2169 = vmatpush1.msra.mxu0 %v2074
        %2170 = vmatprep.subr.mxu0 %v2073
        %2171 = vmatpush1.msra.mxu0 %v2072
        %2172 = vmatprep.subr.mxu0 %v2071
        %2173 = vmatpush1.msra.mxu0 %v2070
        %2174 = vmatprep.subr.mxu0 %v2069
        %2175 = vmatpush1.msra.mxu0 %v2068
        %2176 = vmatprep.subr.mxu0 %v2067
        %2177 = vmatpush1.msra.mxu0 %v2066
        %2178 = vmatprep.subr.mxu0 %v2065
        %2179 = vmatpush1.msra.mxu0 %v2064
        %2180 = vmatprep.subr.mxu0 %v2063
        %2181 = vmatpush1.msra.mxu0 %v2062
        %2182 = vmatprep.subr.mxu0 %v2061
        %2183 = vmatpush1.msra.mxu0 %v2060
        %2184 = vmatprep.subr.mxu0 %v2059
        %2185 = vmatpush1.msra.mxu0 %v2058
        %2186 = vmatprep.subr.mxu0 %v2057
        %2187 = vmatpush1.msra.mxu0 %v2056
        %2188 = vmatprep.subr.mxu0 %v2055
        %2189 = vmatpush1.msra.mxu0 %v2054
        %2190 = vmatprep.subr.mxu0 %v2053
        %2191 = vmatpush1.msra.mxu0 %v2052
        %2192 = vmatprep.subr.mxu0 %v2051
        %2193 = vmatpush1.msra.mxu0 %v2050
        %2194 = vmatprep.subr.mxu0 %v2049
        %2195 = vmatpush1.msra.mxu0 %v2048
        %2196 = vmatprep.subr.mxu0 %v2111
        %2197 = vmatpush2.msra.mxu0 %v2110
        %2198 = vmatprep.subr.mxu0 %v2109
        %2199 = vmatpush2.msra.mxu0 %v2108
        %2200 = vmatprep.subr.mxu0 %v2107
        %2201 = vmatpush2.msra.mxu0 %v2106
        %2202 = vmatprep.subr.mxu0 %v2105
        %2203 = vmatpush2.msra.mxu0 %v2104
        %2204 = vmatprep.subr.mxu0 %v2103
        %2205 = vmatpush2.msra.mxu0 %v2102
        %2206 = vmatprep.subr.mxu0 %v2101
        %2207 = vmatpush2.msra.mxu0 %v2100
        %2208 = vmatprep.subr.mxu0 %v2099
        %2209 = vmatpush2.msra.mxu0 %v2098
        %2210 = vmatprep.subr.mxu0 %v2097
        %2211 = vmatpush2.msra.mxu0 %v2096
        %2212 = vmatprep.subr.mxu0 %v2095
        %2213 = vmatpush2.msra.mxu0 %v2094
        %2214 = vmatprep.subr.mxu0 %v2093
        %2215 = vmatpush2.msra.mxu0 %v2092
        %2216 = vmatprep.subr.mxu0 %v2091
        %2217 = vmatpush2.msra.mxu0 %v2090
        %2218 = vmatprep.subr.mxu0 %v2089
        %2219 = vmatpush2.msra.mxu0 %v2088
        %2220 = vmatprep.subr.mxu0 %v2087
        %2221 = vmatpush2.msra.mxu0 %v2086
        %2222 = vmatprep.subr.mxu0 %v2085
        %2223 = vmatpush2.msra.mxu0 %v2084
        %2224 = vmatprep.subr.mxu0 %v2083
        %2225 = vmatpush2.msra.mxu0 %v2082
        %2226 = vmatprep.subr.mxu0 %v2081
        %2227 = vmatpush2.msra.mxu0 %v2080
        %2228 = vmatprep.mubr.f32.mxu0 %v1884
        %2229 = vmatmul.mubr.f32.gmra.mxu0 %v1972
        %v2230 = vpop.f32.mrf.mxu0
        %v2231 = vadd.f32 %v2159, %v2230
        %v2232 = vpop.f32.mrf.mxu0
        %v2233 = vadd.f32 %v2163, %v2232
        %2234 = vdwg.mxu0
        %2235 = vmatprep.subr.mxu0 %v2143
        %2236 = vmatpush1.msra.mxu0 %v2142
        %2237 = vmatprep.subr.mxu0 %v2141
        %2238 = vmatpush1.msra.mxu0 %v2140
        %2239 = vmatprep.subr.mxu0 %v2139
        %2240 = vmatpush1.msra.mxu0 %v2138
        %2241 = vmatprep.subr.mxu0 %v2137
        %2242 = vmatpush1.msra.mxu0 %v2136
        %2243 = vmatprep.subr.mxu0 %v2135
        %2244 = vmatpush1.msra.mxu0 %v2134
        %2245 = vmatprep.subr.mxu0 %v2133
        %2246 = vmatpush1.msra.mxu0 %v2132
        %2247 = vmatprep.subr.mxu0 %v2131
        %2248 = vmatpush1.msra.mxu0 %v2130
        %2249 = vmatprep.subr.mxu0 %v2129
        %2250 = vmatpush1.msra.mxu0 %v2128
        %2251 = vmatprep.subr.mxu0 %v2127
        %2252 = vmatpush1.msra.mxu0 %v2126
        %2253 = vmatprep.subr.mxu0 %v2125
        %2254 = vmatpush1.msra.mxu0 %v2124
        %2255 = vmatprep.subr.mxu0 %v2123
        %2256 = vmatpush1.msra.mxu0 %v2122
        %2257 = vmatprep.subr.mxu0 %v2121
        %2258 = vmatpush1.msra.mxu0 %v2120
        %2259 = vmatprep.subr.mxu0 %v2119
        %2260 = vmatpush1.msra.mxu0 %v2118
        %2261 = vmatprep.subr.mxu0 %v2117
        %2262 = vmatpush1.msra.mxu0 %v2116
        %2263 = vmatprep.subr.mxu0 %v2115
        %2264 = vmatpush1.msra.mxu0 %v2114
        %2265 = vmatprep.subr.mxu0 %v2113
        %2266 = vmatpush1.msra.mxu0 %v2112
        %2267 = vmatprep.subr.mxu0 0.0
        %2268 = vmatpush2.msra.mxu0 0.0
        %2269 = vmatprep.subr.mxu0 0.0
        %2270 = vmatpush2.msra.mxu0 0.0
        %2271 = vmatprep.subr.mxu0 0.0
        %2272 = vmatpush2.msra.mxu0 0.0
        %2273 = vmatprep.subr.mxu0 0.0
        %2274 = vmatpush2.msra.mxu0 0.0
        %2275 = vmatprep.subr.mxu0 0.0
        %2276 = vmatpush2.msra.mxu0 0.0
        %2277 = vmatprep.subr.mxu0 0.0
        %2278 = vmatpush2.msra.mxu0 0.0
        %2279 = vmatprep.subr.mxu0 0.0
        %2280 = vmatpush2.msra.mxu0 0.0
        %2281 = vmatprep.subr.mxu0 0.0
        %2282 = vmatpush2.msra.mxu0 0.0
        %2283 = vmatprep.subr.mxu0 0.0
        %2284 = vmatpush2.msra.mxu0 0.0
        %2285 = vmatprep.subr.mxu0 0.0
        %2286 = vmatpush2.msra.mxu0 0.0
        %2287 = vmatprep.subr.mxu0 0.0
        %2288 = vmatpush2.msra.mxu0 0.0
        %2289 = vmatprep.subr.mxu0 0.0
        %2290 = vmatpush2.msra.mxu0 0.0
        %2291 = vmatprep.subr.mxu0 0.0
        %2292 = vmatpush2.msra.mxu0 0.0
        %2293 = vmatprep.subr.mxu0 0.0
        %2294 = vmatpush2.msra.mxu0 0.0
        %2295 = vmatprep.subr.mxu0 0.0
        %2296 = vmatpush2.msra.mxu0 0.0
        %2297 = vmatprep.subr.mxu0 0.0
        %2298 = vmatpush2.msra.mxu0 0.0
        %2299 = vmatprep.mubr.f32.mxu0 0.0
        %2300 = vmatmul.mubr.f32.gmra.mxu0 %v2045
        %v2301 = vpop.f32.mrf.mxu0
        %v2302 = vadd.f32 %v2231, %v2301
        %v2303 = vpop.f32.mrf.mxu0
        %v2304 = vadd.f32 %v2233, %v2303
        %2305 = vdwg.mxu0
        %v2306 = vmax.f32 %v2302, 0.0
        %v2307 = vmax.f32 %v2304, 0.0
        %v2308 = vlaneseq
        %v2309 = vshrl.u32 %v2308, 7
        %v2310 = vsub.s32 1, %v2309
        %v2311 = vrot.slane %v2144, %v2310
        %v2312 = vlaneseq
        %v2313 = vshrl.u32 %v2312, 7
        %v2314 = vsub.s32 5, %v2313
        %v2315 = vrot.slane %v2144, %v2314
        %v2318 = vlaneseq
        %v2319 = vshrl.u32 %v2318, 7
        %v2320 = vsub.s32 1, %v2319
        %v2321 = vrot.slane %v2311, %v2320
        %v2322 = vlaneseq
        %v2323 = vshrl.u32 %v2322, 7
        %v2324 = vsub.s32 1, %v2323
        %v2325 = vrot.slane %v2315, %v2324
        %v2326 = vmul.f32 %v2306, %v2321
        %v2327 = vmul.f32 %v2307, %v2325
        %v2328 = vlaneseq
        %v2329 = vshrl.u32 %v2328, 7
        %v2330 = vsub.s32 2, %v2329
        %v2331 = vrot.slane %v2144, %v2330
        %v2332 = vlaneseq
        %v2333 = vshrl.u32 %v2332, 7
        %v2334 = vsub.s32 6, %v2333
        %v2335 = vrot.slane %v2144, %v2334
        %v2338 = vlaneseq
        %v2339 = vshrl.u32 %v2338, 7
        %v2340 = vsub.s32 2, %v2339
        %v2341 = vrot.slane %v2331, %v2340
        %v2342 = vlaneseq
        %v2343 = vshrl.u32 %v2342, 7
        %v2344 = vsub.s32 2, %v2343
        %v2345 = vrot.slane %v2335, %v2344
        %v2346 = vadd.f32 %v2326, %v2341
        %v2347 = vadd.f32 %v2327, %v2345
        %v2348 = vld [vmem:[%s17] sm:$0xff]
        %v2350 = vsel %vm1897, %v2348, 0
        %v2353 = vsel %vm1901, %v2346, 0
        %v2356 = vsel %vm1901, %v2347, 0
        %2358 = vmatprep.subr.mxu0 0.0
        %2359 = vmatpush1.msra.mxu0 0.0
        %2360 = vmatprep.subr.mxu0 0.0
        %2361 = vmatpush1.msra.mxu0 0.0
        %2362 = vmatprep.subr.mxu0 0.0
        %2363 = vmatpush1.msra.mxu0 0.0
        %2364 = vmatprep.subr.mxu0 0.0
        %2365 = vmatpush1.msra.mxu0 0.0
        %2366 = vmatprep.subr.mxu0 0.0
        %2367 = vmatpush1.msra.mxu0 0.0
        %2368 = vmatprep.subr.mxu0 0.0
        %2369 = vmatpush1.msra.mxu0 0.0
        %2370 = vmatprep.subr.mxu0 0.0
        %2371 = vmatpush1.msra.mxu0 0.0
        %2372 = vmatprep.subr.mxu0 0.0
        %2373 = vmatpush1.msra.mxu0 0.0
        %2374 = vmatprep.subr.mxu0 0.0
        %2375 = vmatpush1.msra.mxu0 0.0
        %2376 = vmatprep.subr.mxu0 0.0
        %2377 = vmatpush1.msra.mxu0 0.0
        %2378 = vmatprep.subr.mxu0 0.0
        %2379 = vmatpush1.msra.mxu0 0.0
        %2380 = vmatprep.subr.mxu0 0.0
        %2381 = vmatpush1.msra.mxu0 0.0
        %2382 = vmatprep.subr.mxu0 0.0
        %2383 = vmatpush1.msra.mxu0 0.0
        %2384 = vmatprep.subr.mxu0 0.0
        %2385 = vmatpush1.msra.mxu0 0.0
        %2386 = vmatprep.subr.mxu0 0.0
        %2387 = vmatpush1.msra.mxu0 0.0
        %2388 = vmatprep.subr.mxu0 %v2356
        %2389 = vmatpush1.msra.mxu0 %v2353
        %2390 = vmatprep.subr.mxu0 0.0
        %2391 = vmatpush2.msra.mxu0 0.0
        %2392 = vmatprep.subr.mxu0 0.0
        %2393 = vmatpush2.msra.mxu0 0.0
        %2394 = vmatprep.subr.mxu0 0.0
        %2395 = vmatpush2.msra.mxu0 0.0
        %2396 = vmatprep.subr.mxu0 0.0
        %2397 = vmatpush2.msra.mxu0 0.0
        %2398 = vmatprep.subr.mxu0 0.0
        %2399 = vmatpush2.msra.mxu0 0.0
        %2400 = vmatprep.subr.mxu0 0.0
        %2401 = vmatpush2.msra.mxu0 0.0
        %2402 = vmatprep.subr.mxu0 0.0
        %2403 = vmatpush2.msra.mxu0 0.0
        %2404 = vmatprep.subr.mxu0 0.0
        %2405 = vmatpush2.msra.mxu0 0.0
        %2406 = vmatprep.subr.mxu0 0.0
        %2407 = vmatpush2.msra.mxu0 0.0
        %2408 = vmatprep.subr.mxu0 0.0
        %2409 = vmatpush2.msra.mxu0 0.0
        %2410 = vmatprep.subr.mxu0 0.0
        %2411 = vmatpush2.msra.mxu0 0.0
        %2412 = vmatprep.subr.mxu0 0.0
        %2413 = vmatpush2.msra.mxu0 0.0
        %2414 = vmatprep.subr.mxu0 0.0
        %2415 = vmatpush2.msra.mxu0 0.0
        %2416 = vmatprep.subr.mxu0 0.0
        %2417 = vmatpush2.msra.mxu0 0.0
        %2418 = vmatprep.subr.mxu0 0.0
        %2419 = vmatpush2.msra.mxu0 0.0
        %2420 = vmatprep.subr.mxu0 0.0
        %2421 = vmatpush2.msra.mxu0 0.0
        %2422 = vmatprep.mubr.f32.mxu0 0.0
        %2423 = vmatmul.mubr.f32.gmra.mxu0 %v2350
        %v2424 = vpop.f32.mrf.mxu0
        %v2425 = vadd.f32 0.0, %v2424
        %v2426 = vpop.f32.mrf.mxu0
        %v2427 = vadd.f32 0.0, %v2426
        %2428 = vdwg.mxu0
        %v2429 = vrot.slane %v2425, 7
        %v2430 = vrot.slane %v2427, 7
        %v2431 = vsel %vm851, 0.0, %v2429
        %v2432 = vsel %vm851, 0.0, %v2430
        %v2433 = vrot.slane %v2425, 1
        %v2434 = vrot.slane %v2427, 1
        %v2435 = vsel %vm1544, 0.0, %v2433
        %v2436 = vsel %vm1544, 0.0, %v2434
        %v2437 = vld [vmem:[%s9] sm:$0xff]
        %v2438 = vld [vmem:[%s9 + $0x8] sm:$0xff]
        %v2439 = vld [vmem:[%s9 + $0x10] sm:$0xff]
        %v2440 = vld [vmem:[%s9 + $0x18] sm:$0xff]
        %v2441 = vld [vmem:[%s9 + $0x20] sm:$0xff]
        %v2442 = vld [vmem:[%s9 + $0x28] sm:$0xff]
        %v2443 = vld [vmem:[%s9 + $0x30] sm:$0xff]
        %v2444 = vld [vmem:[%s9 + $0x38] sm:$0xff]
        %v2445 = vld [vmem:[%s9 + $0x40] sm:$0xff]
        %v2446 = vld [vmem:[%s9 + $0x48] sm:$0xff]
        %v2447 = vld [vmem:[%s9 + $0x50] sm:$0xff]
        %v2448 = vld [vmem:[%s9 + $0x58] sm:$0xff]
        %v2449 = vld [vmem:[%s9 + $0x60] sm:$0xff]
        %v2450 = vld [vmem:[%s9 + $0x68] sm:$0xff]
        %v2451 = vld [vmem:[%s9 + $0x70] sm:$0xff]
        %v2452 = vld [vmem:[%s9 + $0x78] sm:$0xff]
        %v2453 = vld [vmem:[%s9 + $0x80] sm:$0xff]
        %v2454 = vld [vmem:[%s9 + $0x88] sm:$0xff]
        %v2455 = vld [vmem:[%s9 + $0x90] sm:$0xff]
        %v2456 = vld [vmem:[%s9 + $0x98] sm:$0xff]
        %v2457 = vld [vmem:[%s9 + $0xa0] sm:$0xff]
        %v2458 = vld [vmem:[%s9 + $0xa8] sm:$0xff]
        %v2459 = vld [vmem:[%s9 + $0xb0] sm:$0xff]
        %v2460 = vld [vmem:[%s9 + $0xb8] sm:$0xff]
        %v2461 = vld [vmem:[%s9 + $0xc0] sm:$0xff]
        %v2462 = vld [vmem:[%s9 + $0xc8] sm:$0xff]
        %v2463 = vld [vmem:[%s9 + $0xd0] sm:$0xff]
        %v2464 = vld [vmem:[%s9 + $0xd8] sm:$0xff]
        %v2465 = vld [vmem:[%s9 + $0xe0] sm:$0xff]
        %v2466 = vld [vmem:[%s9 + $0xe8] sm:$0xff]
        %v2467 = vld [vmem:[%s9 + $0xf0] sm:$0xff]
        %v2468 = vld [vmem:[%s9 + $0xf8] sm:$0xff]
        %v2469 = vld [vmem:[%s9 + $0x100] sm:$0xff]
        %v2470 = vld [vmem:[%s9 + $0x108] sm:$0xff]
        %v2471 = vld [vmem:[%s9 + $0x110] sm:$0xff]
        %v2472 = vld [vmem:[%s9 + $0x118] sm:$0xff]
        %v2473 = vld [vmem:[%s9 + $0x120] sm:$0xff]
        %v2474 = vld [vmem:[%s9 + $0x128] sm:$0xff]
        %v2475 = vld [vmem:[%s9 + $0x130] sm:$0xff]
        %v2476 = vld [vmem:[%s9 + $0x138] sm:$0xff]
        %v2477 = vld [vmem:[%s9 + $0x140] sm:$0xff]
        %v2478 = vld [vmem:[%s9 + $0x148] sm:$0xff]
        %v2479 = vld [vmem:[%s9 + $0x150] sm:$0xff]
        %v2480 = vld [vmem:[%s9 + $0x158] sm:$0xff]
        %v2481 = vld [vmem:[%s9 + $0x160] sm:$0xff]
        %v2482 = vld [vmem:[%s9 + $0x168] sm:$0xff]
        %v2483 = vld [vmem:[%s9 + $0x170] sm:$0xff]
        %v2484 = vld [vmem:[%s9 + $0x178] sm:$0xff]
        %v2485 = vld [vmem:[%s9 + $0x180] sm:$0xff]
        %v2486 = vld [vmem:[%s9 + $0x188] sm:$0xff]
        %v2487 = vld [vmem:[%s9 + $0x190] sm:$0xff]
        %v2488 = vld [vmem:[%s9 + $0x198] sm:$0xff]
        %v2489 = vld [vmem:[%s9 + $0x1a0] sm:$0xff]
        %v2490 = vld [vmem:[%s9 + $0x1a8] sm:$0xff]
        %v2491 = vld [vmem:[%s9 + $0x1b0] sm:$0xff]
        %v2492 = vld [vmem:[%s9 + $0x1b8] sm:$0xff]
        %v2493 = vld [vmem:[%s9 + $0x1c0] sm:$0xff]
        %v2494 = vld [vmem:[%s9 + $0x1c8] sm:$0xff]
        %v2495 = vld [vmem:[%s9 + $0x1d0] sm:$0xff]
        %v2496 = vld [vmem:[%s9 + $0x1d8] sm:$0xff]
        %v2497 = vld [vmem:[%s9 + $0x1e0] sm:$0xff]
        %v2498 = vld [vmem:[%s9 + $0x1e8] sm:$0xff]
        %v2499 = vld [vmem:[%s9 + $0x1f0] sm:$0xff]
        %v2500 = vld [vmem:[%s9 + $0x1f8] sm:$0xff]
        %v2501 = vld [vmem:[%s9 + $0x200] sm:$0xff]
        %v2502 = vld [vmem:[%s9 + $0x208] sm:$0xff]
        %v2503 = vld [vmem:[%s9 + $0x210] sm:$0xff]
        %v2504 = vld [vmem:[%s9 + $0x218] sm:$0xff]
        %v2505 = vld [vmem:[%s9 + $0x220] sm:$0xff]
        %v2506 = vld [vmem:[%s9 + $0x228] sm:$0xff]
        %v2507 = vld [vmem:[%s9 + $0x230] sm:$0xff]
        %v2508 = vld [vmem:[%s9 + $0x238] sm:$0xff]
        %v2509 = vld [vmem:[%s9 + $0x240] sm:$0xff]
        %v2510 = vld [vmem:[%s9 + $0x248] sm:$0xff]
        %v2511 = vld [vmem:[%s9 + $0x250] sm:$0xff]
        %v2512 = vld [vmem:[%s9 + $0x258] sm:$0xff]
        %v2513 = vld [vmem:[%s9 + $0x260] sm:$0xff]
        %v2514 = vld [vmem:[%s9 + $0x268] sm:$0xff]
        %v2515 = vld [vmem:[%s9 + $0x270] sm:$0xff]
        %v2516 = vld [vmem:[%s9 + $0x278] sm:$0xff]
        %v2517 = vld [vmem:[%s9 + $0x280] sm:$0xff]
        %v2518 = vld [vmem:[%s9 + $0x288] sm:$0xff]
        %v2519 = vld [vmem:[%s9 + $0x290] sm:$0xff]
        %v2520 = vld [vmem:[%s9 + $0x298] sm:$0xff]
        %v2521 = vld [vmem:[%s9 + $0x2a0] sm:$0xff]
        %v2522 = vld [vmem:[%s9 + $0x2a8] sm:$0xff]
        %v2523 = vld [vmem:[%s9 + $0x2b0] sm:$0xff]
        %v2524 = vld [vmem:[%s9 + $0x2b8] sm:$0xff]
        %v2525 = vld [vmem:[%s9 + $0x2c0] sm:$0xff]
        %v2526 = vld [vmem:[%s9 + $0x2c8] sm:$0xff]
        %v2527 = vld [vmem:[%s9 + $0x2d0] sm:$0xff]
        %v2528 = vld [vmem:[%s9 + $0x2d8] sm:$0xff]
        %v2529 = vld [vmem:[%s9 + $0x2e0] sm:$0xff]
        %v2530 = vld [vmem:[%s9 + $0x2e8] sm:$0xff]
        %v2531 = vld [vmem:[%s9 + $0x2f0] sm:$0xff]
        %v2532 = vld [vmem:[%s9 + $0x2f8] sm:$0xff]
        %v2533 = vld [vmem:[#allocation6] sm:$0x7]
        %v2534 = vlaneseq
        %v2535 = vshrl.u32 %v2534, 7
        %v2536 = vsub.s32 0, %v2535
        %v2537 = vrot.slane %v2533, %v2536
        %2538 = vmatprep.subr.mxu0 0.0
        %2539 = vmatpush1.msra.mxu0 %v2452
        %2540 = vmatprep.subr.mxu0 0.0
        %2541 = vmatpush1.msra.mxu0 %v2451
        %2542 = vmatprep.subr.mxu0 0.0
        %2543 = vmatpush1.msra.mxu0 %v2450
        %2544 = vmatprep.subr.mxu0 0.0
        %2545 = vmatpush1.msra.mxu0 %v2449
        %2546 = vmatprep.subr.mxu0 0.0
        %2547 = vmatpush1.msra.mxu0 %v2448
        %2548 = vmatprep.subr.mxu0 0.0
        %2549 = vmatpush1.msra.mxu0 %v2447
        %2550 = vmatprep.subr.mxu0 0.0
        %2551 = vmatpush1.msra.mxu0 %v2446
        %2552 = vmatprep.subr.mxu0 0.0
        %2553 = vmatpush1.msra.mxu0 %v2445
        %2554 = vmatprep.subr.mxu0 0.0
        %2555 = vmatpush1.msra.mxu0 %v2444
        %2556 = vmatprep.subr.mxu0 0.0
        %2557 = vmatpush1.msra.mxu0 %v2443
        %2558 = vmatprep.subr.mxu0 0.0
        %2559 = vmatpush1.msra.mxu0 %v2442
        %2560 = vmatprep.subr.mxu0 0.0
        %2561 = vmatpush1.msra.mxu0 %v2441
        %2562 = vmatprep.subr.mxu0 0.0
        %2563 = vmatpush1.msra.mxu0 %v2440
        %2564 = vmatprep.subr.mxu0 0.0
        %2565 = vmatpush1.msra.mxu0 %v2439
        %2566 = vmatprep.subr.mxu0 0.0
        %2567 = vmatpush1.msra.mxu0 %v2438
        %2568 = vmatprep.subr.mxu0 0.0
        %2569 = vmatpush1.msra.mxu0 %v2437
        %2570 = vmatprep.subr.mxu0 0.0
        %2571 = vmatpush2.msra.mxu0 %v2468
        %2572 = vmatprep.subr.mxu0 0.0
        %2573 = vmatpush2.msra.mxu0 %v2467
        %2574 = vmatprep.subr.mxu0 0.0
        %2575 = vmatpush2.msra.mxu0 %v2466
        %2576 = vmatprep.subr.mxu0 0.0
        %2577 = vmatpush2.msra.mxu0 %v2465
        %2578 = vmatprep.subr.mxu0 0.0
        %2579 = vmatpush2.msra.mxu0 %v2464
        %2580 = vmatprep.subr.mxu0 0.0
        %2581 = vmatpush2.msra.mxu0 %v2463
        %2582 = vmatprep.subr.mxu0 0.0
        %2583 = vmatpush2.msra.mxu0 %v2462
        %2584 = vmatprep.subr.mxu0 0.0
        %2585 = vmatpush2.msra.mxu0 %v2461
        %2586 = vmatprep.subr.mxu0 0.0
        %2587 = vmatpush2.msra.mxu0 %v2460
        %2588 = vmatprep.subr.mxu0 0.0
        %2589 = vmatpush2.msra.mxu0 %v2459
        %2590 = vmatprep.subr.mxu0 0.0
        %2591 = vmatpush2.msra.mxu0 %v2458
        %2592 = vmatprep.subr.mxu0 0.0
        %2593 = vmatpush2.msra.mxu0 %v2457
        %2594 = vmatprep.subr.mxu0 0.0
        %2595 = vmatpush2.msra.mxu0 %v2456
        %2596 = vmatprep.subr.mxu0 0.0
        %2597 = vmatpush2.msra.mxu0 %v2455
        %2598 = vmatprep.subr.mxu0 0.0
        %2599 = vmatpush2.msra.mxu0 %v2454
        %2600 = vmatprep.subr.mxu0 0.0
        %2601 = vmatpush2.msra.mxu0 %v2453
        %2602 = vmatprep.mubr.f32.mxu0 %v2432
        %2603 = vmatmul.mubr.f32.gmra.mxu0 %v2431
        %v2604 = vpop.f32.mrf.mxu0
        %v2605 = vadd.f32 %v2537, %v2604
        %v2606 = vpop.f32.mrf.mxu0
        %2607 = vdwg.mxu0
        %2608 = vmatprep.subr.mxu0 0.0
        %2609 = vmatpush1.msra.mxu0 %v2484
        %2610 = vmatprep.subr.mxu0 0.0
        %2611 = vmatpush1.msra.mxu0 %v2483
        %2612 = vmatprep.subr.mxu0 0.0
        %2613 = vmatpush1.msra.mxu0 %v2482
        %2614 = vmatprep.subr.mxu0 0.0
        %2615 = vmatpush1.msra.mxu0 %v2481
        %2616 = vmatprep.subr.mxu0 0.0
        %2617 = vmatpush1.msra.mxu0 %v2480
        %2618 = vmatprep.subr.mxu0 0.0
        %2619 = vmatpush1.msra.mxu0 %v2479
        %2620 = vmatprep.subr.mxu0 0.0
        %2621 = vmatpush1.msra.mxu0 %v2478
        %2622 = vmatprep.subr.mxu0 0.0
        %2623 = vmatpush1.msra.mxu0 %v2477
        %2624 = vmatprep.subr.mxu0 0.0
        %2625 = vmatpush1.msra.mxu0 %v2476
        %2626 = vmatprep.subr.mxu0 0.0
        %2627 = vmatpush1.msra.mxu0 %v2475
        %2628 = vmatprep.subr.mxu0 0.0
        %2629 = vmatpush1.msra.mxu0 %v2474
        %2630 = vmatprep.subr.mxu0 0.0
        %2631 = vmatpush1.msra.mxu0 %v2473
        %2632 = vmatprep.subr.mxu0 0.0
        %2633 = vmatpush1.msra.mxu0 %v2472
        %2634 = vmatprep.subr.mxu0 0.0
        %2635 = vmatpush1.msra.mxu0 %v2471
        %2636 = vmatprep.subr.mxu0 0.0
        %2637 = vmatpush1.msra.mxu0 %v2470
        %2638 = vmatprep.subr.mxu0 0.0
        %2639 = vmatpush1.msra.mxu0 %v2469
        %2640 = vmatprep.subr.mxu0 0.0
        %2641 = vmatpush2.msra.mxu0 %v2500
        %2642 = vmatprep.subr.mxu0 0.0
        %2643 = vmatpush2.msra.mxu0 %v2499
        %2644 = vmatprep.subr.mxu0 0.0
        %2645 = vmatpush2.msra.mxu0 %v2498
        %2646 = vmatprep.subr.mxu0 0.0
        %2647 = vmatpush2.msra.mxu0 %v2497
        %2648 = vmatprep.subr.mxu0 0.0
        %2649 = vmatpush2.msra.mxu0 %v2496
        %2650 = vmatprep.subr.mxu0 0.0
        %2651 = vmatpush2.msra.mxu0 %v2495
        %2652 = vmatprep.subr.mxu0 0.0
        %2653 = vmatpush2.msra.mxu0 %v2494
        %2654 = vmatprep.subr.mxu0 0.0
        %2655 = vmatpush2.msra.mxu0 %v2493
        %2656 = vmatprep.subr.mxu0 0.0
        %2657 = vmatpush2.msra.mxu0 %v2492
        %2658 = vmatprep.subr.mxu0 0.0
        %2659 = vmatpush2.msra.mxu0 %v2491
        %2660 = vmatprep.subr.mxu0 0.0
        %2661 = vmatpush2.msra.mxu0 %v2490
        %2662 = vmatprep.subr.mxu0 0.0
        %2663 = vmatpush2.msra.mxu0 %v2489
        %2664 = vmatprep.subr.mxu0 0.0
        %2665 = vmatpush2.msra.mxu0 %v2488
        %2666 = vmatprep.subr.mxu0 0.0
        %2667 = vmatpush2.msra.mxu0 %v2487
        %2668 = vmatprep.subr.mxu0 0.0
        %2669 = vmatpush2.msra.mxu0 %v2486
        %2670 = vmatprep.subr.mxu0 0.0
        %2671 = vmatpush2.msra.mxu0 %v2485
        %2672 = vmatprep.mubr.f32.mxu0 %v2427
        %2673 = vmatmul.mubr.f32.gmra.mxu0 %v2425
        %v2674 = vpop.f32.mrf.mxu0
        %v2675 = vadd.f32 %v2605, %v2674
        %v2676 = vpop.f32.mrf.mxu0
        %2677 = vdwg.mxu0
        %2678 = vmatprep.subr.mxu0 0.0
        %2679 = vmatpush1.msra.mxu0 %v2516
        %2680 = vmatprep.subr.mxu0 0.0
        %2681 = vmatpush1.msra.mxu0 %v2515
        %2682 = vmatprep.subr.mxu0 0.0
        %2683 = vmatpush1.msra.mxu0 %v2514
        %2684 = vmatprep.subr.mxu0 0.0
        %2685 = vmatpush1.msra.mxu0 %v2513
        %2686 = vmatprep.subr.mxu0 0.0
        %2687 = vmatpush1.msra.mxu0 %v2512
        %2688 = vmatprep.subr.mxu0 0.0
        %2689 = vmatpush1.msra.mxu0 %v2511
        %2690 = vmatprep.subr.mxu0 0.0
        %2691 = vmatpush1.msra.mxu0 %v2510
        %2692 = vmatprep.subr.mxu0 0.0
        %2693 = vmatpush1.msra.mxu0 %v2509
        %2694 = vmatprep.subr.mxu0 0.0
        %2695 = vmatpush1.msra.mxu0 %v2508
        %2696 = vmatprep.subr.mxu0 0.0
        %2697 = vmatpush1.msra.mxu0 %v2507
        %2698 = vmatprep.subr.mxu0 0.0
        %2699 = vmatpush1.msra.mxu0 %v2506
        %2700 = vmatprep.subr.mxu0 0.0
        %2701 = vmatpush1.msra.mxu0 %v2505
        %2702 = vmatprep.subr.mxu0 0.0
        %2703 = vmatpush1.msra.mxu0 %v2504
        %2704 = vmatprep.subr.mxu0 0.0
        %2705 = vmatpush1.msra.mxu0 %v2503
        %2706 = vmatprep.subr.mxu0 0.0
        %2707 = vmatpush1.msra.mxu0 %v2502
        %2708 = vmatprep.subr.mxu0 0.0
        %2709 = vmatpush1.msra.mxu0 %v2501
        %2710 = vmatprep.subr.mxu0 0.0
        %2711 = vmatpush2.msra.mxu0 %v2532
        %2712 = vmatprep.subr.mxu0 0.0
        %2713 = vmatpush2.msra.mxu0 %v2531
        %2714 = vmatprep.subr.mxu0 0.0
        %2715 = vmatpush2.msra.mxu0 %v2530
        %2716 = vmatprep.subr.mxu0 0.0
        %2717 = vmatpush2.msra.mxu0 %v2529
        %2718 = vmatprep.subr.mxu0 0.0
        %2719 = vmatpush2.msra.mxu0 %v2528
        %2720 = vmatprep.subr.mxu0 0.0
        %2721 = vmatpush2.msra.mxu0 %v2527
        %2722 = vmatprep.subr.mxu0 0.0
        %2723 = vmatpush2.msra.mxu0 %v2526
        %2724 = vmatprep.subr.mxu0 0.0
        %2725 = vmatpush2.msra.mxu0 %v2525
        %2726 = vmatprep.subr.mxu0 0.0
        %2727 = vmatpush2.msra.mxu0 %v2524
        %2728 = vmatprep.subr.mxu0 0.0
        %2729 = vmatpush2.msra.mxu0 %v2523
        %2730 = vmatprep.subr.mxu0 0.0
        %2731 = vmatpush2.msra.mxu0 %v2522
        %2732 = vmatprep.subr.mxu0 0.0
        %2733 = vmatpush2.msra.mxu0 %v2521
        %2734 = vmatprep.subr.mxu0 0.0
        %2735 = vmatpush2.msra.mxu0 %v2520
        %2736 = vmatprep.subr.mxu0 0.0
        %2737 = vmatpush2.msra.mxu0 %v2519
        %2738 = vmatprep.subr.mxu0 0.0
        %2739 = vmatpush2.msra.mxu0 %v2518
        %2740 = vmatprep.subr.mxu0 0.0
        %2741 = vmatpush2.msra.mxu0 %v2517
        %2742 = vmatprep.mubr.f32.mxu0 %v2436
        %2743 = vmatmul.mubr.f32.gmra.mxu0 %v2435
        %v2744 = vpop.f32.mrf.mxu0
        %v2745 = vadd.f32 %v2675, %v2744
        %v2746 = vpop.f32.mrf.mxu0
        %2747 = vdwg.mxu0
        %v2748 = vmax.f32 %v2745, 0.0
        %v2749 = vlaneseq
        %v2750 = vshrl.u32 %v2749, 7
        %v2751 = vsub.s32 1, %v2750
        %v2752 = vrot.slane %v2533, %v2751
        %v2753 = vmul.f32 %v2748, %v2752
        %v2754 = vlaneseq
        %v2755 = vshrl.u32 %v2754, 7
        %v2756 = vsub.s32 2, %v2755
        %v2757 = vrot.slane %v2533, %v2756
        %v2758 = vadd.f32 %v2753, %v2757
        %v2759 = vrot.slane %v1809, 7
        %v2760 = vrot.slane %v2758, 7
        %v2761 = vsel %vm846, %v2759, %v2760
        %v2762 = vsel %vm846, %v2760, %v2759
        %v2763 = vsel %vm851, 0.0, %v2762
        %v2764 = vsel %vm852, 0.0, %v2761
        %v2765 = vrot.slane %v2758, 1
        %v2766 = vsel %vm859, %v1810, %v2765
        %v2767 = vsel %vm859, %v2765, %v1810
        %v2768 = vsel %vm864, 0.0, %v2766
        %v2769 = vsel %vm865, 0.0, %v2767
        %v2770 = vld [vmem:[%s11] sm:$0xff]
        %v2771 = vld [vmem:[%s11 + $0x8] sm:$0xff]
        %v2772 = vld [vmem:[%s11 + $0x10] sm:$0xff]
        %v2773 = vld [vmem:[%s11 + $0x18] sm:$0xff]
        %v2774 = vld [vmem:[%s11 + $0x20] sm:$0xff]
        %v2775 = vld [vmem:[%s11 + $0x28] sm:$0xff]
        %v2776 = vld [vmem:[%s11 + $0x30] sm:$0xff]
        %v2777 = vld [vmem:[%s11 + $0x38] sm:$0xff]
        %v2778 = vld [vmem:[%s11 + $0x40] sm:$0xff]
        %v2779 = vld [vmem:[%s11 + $0x48] sm:$0xff]
        %v2780 = vld [vmem:[%s11 + $0x50] sm:$0xff]
        %v2781 = vld [vmem:[%s11 + $0x58] sm:$0xff]
        %v2782 = vld [vmem:[%s11 + $0x60] sm:$0xff]
        %v2783 = vld [vmem:[%s11 + $0x68] sm:$0xff]
        %v2784 = vld [vmem:[%s11 + $0x70] sm:$0xff]
        %v2785 = vld [vmem:[%s11 + $0x78] sm:$0xff]
        %v2786 = vld [vmem:[%s11 + $0x80] sm:$0xff]
        %v2787 = vld [vmem:[%s11 + $0x88] sm:$0xff]
        %v2788 = vld [vmem:[%s11 + $0x90] sm:$0xff]
        %v2789 = vld [vmem:[%s11 + $0x98] sm:$0xff]
        %v2790 = vld [vmem:[%s11 + $0xa0] sm:$0xff]
        %v2791 = vld [vmem:[%s11 + $0xa8] sm:$0xff]
        %v2792 = vld [vmem:[%s11 + $0xb0] sm:$0xff]
        %v2793 = vld [vmem:[%s11 + $0xb8] sm:$0xff]
        %v2794 = vld [vmem:[%s11 + $0xc0] sm:$0xff]
        %v2795 = vld [vmem:[%s11 + $0xc8] sm:$0xff]
        %v2796 = vld [vmem:[%s11 + $0xd0] sm:$0xff]
        %v2797 = vld [vmem:[%s11 + $0xd8] sm:$0xff]
        %v2798 = vld [vmem:[%s11 + $0xe0] sm:$0xff]
        %v2799 = vld [vmem:[%s11 + $0xe8] sm:$0xff]
        %v2800 = vld [vmem:[%s11 + $0xf0] sm:$0xff]
        %v2801 = vld [vmem:[%s11 + $0xf8] sm:$0xff]
        %v2802 = vld [vmem:[%s11 + $0x100] sm:$0xff]
        %v2803 = vld [vmem:[%s11 + $0x108] sm:$0xff]
        %v2804 = vld [vmem:[%s11 + $0x110] sm:$0xff]
        %v2805 = vld [vmem:[%s11 + $0x118] sm:$0xff]
        %v2806 = vld [vmem:[%s11 + $0x120] sm:$0xff]
        %v2807 = vld [vmem:[%s11 + $0x128] sm:$0xff]
        %v2808 = vld [vmem:[%s11 + $0x130] sm:$0xff]
        %v2809 = vld [vmem:[%s11 + $0x138] sm:$0xff]
        %v2810 = vld [vmem:[%s11 + $0x140] sm:$0xff]
        %v2811 = vld [vmem:[%s11 + $0x148] sm:$0xff]
        %v2812 = vld [vmem:[%s11 + $0x150] sm:$0xff]
        %v2813 = vld [vmem:[%s11 + $0x158] sm:$0xff]
        %v2814 = vld [vmem:[%s11 + $0x160] sm:$0xff]
        %v2815 = vld [vmem:[%s11 + $0x168] sm:$0xff]
        %v2816 = vld [vmem:[%s11 + $0x170] sm:$0xff]
        %v2817 = vld [vmem:[%s11 + $0x178] sm:$0xff]
        %v2818 = vld [vmem:[#allocation7] sm:$0x7]
        %v2819 = vlaneseq
        %v2820 = vshrl.u32 %v2819, 7
        %v2821 = vsub.s32 0, %v2820
        %v2822 = vrot.slane %v2818, %v2821
        %2823 = vmatprep.subr.mxu0 0.0
        %2824 = vmatpush1.msra.mxu0 %v2785
        %2825 = vmatprep.subr.mxu0 0.0
        %2826 = vmatpush1.msra.mxu0 %v2784
        %2827 = vmatprep.subr.mxu0 0.0
        %2828 = vmatpush1.msra.mxu0 %v2783
        %2829 = vmatprep.subr.mxu0 0.0
        %2830 = vmatpush1.msra.mxu0 %v2782
        %2831 = vmatprep.subr.mxu0 0.0
        %2832 = vmatpush1.msra.mxu0 %v2781
        %2833 = vmatprep.subr.mxu0 0.0
        %2834 = vmatpush1.msra.mxu0 %v2780
        %2835 = vmatprep.subr.mxu0 0.0
        %2836 = vmatpush1.msra.mxu0 %v2779
        %2837 = vmatprep.subr.mxu0 0.0
        %2838 = vmatpush1.msra.mxu0 %v2778
        %2839 = vmatprep.subr.mxu0 0.0
        %2840 = vmatpush1.msra.mxu0 %v2777
        %2841 = vmatprep.subr.mxu0 0.0
        %2842 = vmatpush1.msra.mxu0 %v2776
        %2843 = vmatprep.subr.mxu0 0.0
        %2844 = vmatpush1.msra.mxu0 %v2775
        %2845 = vmatprep.subr.mxu0 0.0
        %2846 = vmatpush1.msra.mxu0 %v2774
        %2847 = vmatprep.subr.mxu0 0.0
        %2848 = vmatpush1.msra.mxu0 %v2773
        %2849 = vmatprep.subr.mxu0 0.0
        %2850 = vmatpush1.msra.mxu0 %v2772
        %2851 = vmatprep.subr.mxu0 0.0
        %2852 = vmatpush1.msra.mxu0 %v2771
        %2853 = vmatprep.subr.mxu0 0.0
        %2854 = vmatpush1.msra.mxu0 %v2770
        %2855 = vmatprep.subr.mxu0 0.0
        %2856 = vmatpush2.msra.mxu0 %v2801
        %2857 = vmatprep.subr.mxu0 0.0
        %2858 = vmatpush2.msra.mxu0 %v2800
        %2859 = vmatprep.subr.mxu0 0.0
        %2860 = vmatpush2.msra.mxu0 %v2799
        %2861 = vmatprep.subr.mxu0 0.0
        %2862 = vmatpush2.msra.mxu0 %v2798
        %2863 = vmatprep.subr.mxu0 0.0
        %2864 = vmatpush2.msra.mxu0 %v2797
        %2865 = vmatprep.subr.mxu0 0.0
        %2866 = vmatpush2.msra.mxu0 %v2796
        %2867 = vmatprep.subr.mxu0 0.0
        %2868 = vmatpush2.msra.mxu0 %v2795
        %2869 = vmatprep.subr.mxu0 0.0
        %2870 = vmatpush2.msra.mxu0 %v2794
        %2871 = vmatprep.subr.mxu0 0.0
        %2872 = vmatpush2.msra.mxu0 %v2793
        %2873 = vmatprep.subr.mxu0 0.0
        %2874 = vmatpush2.msra.mxu0 %v2792
        %2875 = vmatprep.subr.mxu0 0.0
        %2876 = vmatpush2.msra.mxu0 %v2791
        %2877 = vmatprep.subr.mxu0 0.0
        %2878 = vmatpush2.msra.mxu0 %v2790
        %2879 = vmatprep.subr.mxu0 0.0
        %2880 = vmatpush2.msra.mxu0 %v2789
        %2881 = vmatprep.subr.mxu0 0.0
        %2882 = vmatpush2.msra.mxu0 %v2788
        %2883 = vmatprep.subr.mxu0 0.0
        %2884 = vmatpush2.msra.mxu0 %v2787
        %2885 = vmatprep.subr.mxu0 0.0
        %2886 = vmatpush2.msra.mxu0 %v2786
        %2887 = vmatprep.mubr.f32.mxu0 %v1809
        %2888 = vmatmul.mubr.f32.gmra.mxu0 %v2763
        %v2889 = vpop.f32.mrf.mxu0
        %v2890 = vadd.f32 %v2822, %v2889
        %v2891 = vpop.f32.mrf.mxu0
        %2892 = vmatprep.mubr.f32.mxu0 %v2758
        %2893 = vmatmul.mubr.f32.gmra.mxu0 %v2764
        %v2894 = vpop.f32.mrf.mxu0
        %v2895 = vadd.f32 %v2822, %v2894
        %v2896 = vpop.f32.mrf.mxu0
        %2897 = vdwg.mxu0
        %2898 = vmatprep.subr.mxu0 0.0
        %2899 = vmatpush1.msra.mxu0 %v2817
        %2900 = vmatprep.subr.mxu0 0.0
        %2901 = vmatpush1.msra.mxu0 %v2816
        %2902 = vmatprep.subr.mxu0 0.0
        %2903 = vmatpush1.msra.mxu0 %v2815
        %2904 = vmatprep.subr.mxu0 0.0
        %2905 = vmatpush1.msra.mxu0 %v2814
        %2906 = vmatprep.subr.mxu0 0.0
        %2907 = vmatpush1.msra.mxu0 %v2813
        %2908 = vmatprep.subr.mxu0 0.0
        %2909 = vmatpush1.msra.mxu0 %v2812
        %2910 = vmatprep.subr.mxu0 0.0
        %2911 = vmatpush1.msra.mxu0 %v2811
        %2912 = vmatprep.subr.mxu0 0.0
        %2913 = vmatpush1.msra.mxu0 %v2810
        %2914 = vmatprep.subr.mxu0 0.0
        %2915 = vmatpush1.msra.mxu0 %v2809
        %2916 = vmatprep.subr.mxu0 0.0
        %2917 = vmatpush1.msra.mxu0 %v2808
        %2918 = vmatprep.subr.mxu0 0.0
        %2919 = vmatpush1.msra.mxu0 %v2807
        %2920 = vmatprep.subr.mxu0 0.0
        %2921 = vmatpush1.msra.mxu0 %v2806
        %2922 = vmatprep.subr.mxu0 0.0
        %2923 = vmatpush1.msra.mxu0 %v2805
        %2924 = vmatprep.subr.mxu0 0.0
        %2925 = vmatpush1.msra.mxu0 %v2804
        %2926 = vmatprep.subr.mxu0 0.0
        %2927 = vmatpush1.msra.mxu0 %v2803
        %2928 = vmatprep.subr.mxu0 0.0
        %2929 = vmatpush1.msra.mxu0 %v2802
        %2930 = vmatprep.subr.mxu0 0.0
        %2931 = vmatpush2.msra.mxu0 0.0
        %2932 = vmatprep.subr.mxu0 0.0
        %2933 = vmatpush2.msra.mxu0 0.0
        %2934 = vmatprep.subr.mxu0 0.0
        %2935 = vmatpush2.msra.mxu0 0.0
        %2936 = vmatprep.subr.mxu0 0.0
        %2937 = vmatpush2.msra.mxu0 0.0
        %2938 = vmatprep.subr.mxu0 0.0
        %2939 = vmatpush2.msra.mxu0 0.0
        %2940 = vmatprep.subr.mxu0 0.0
        %2941 = vmatpush2.msra.mxu0 0.0
        %2942 = vmatprep.subr.mxu0 0.0
        %2943 = vmatpush2.msra.mxu0 0.0
        %2944 = vmatprep.subr.mxu0 0.0
        %2945 = vmatpush2.msra.mxu0 0.0
        %2946 = vmatprep.subr.mxu0 0.0
        %2947 = vmatpush2.msra.mxu0 0.0
        %2948 = vmatprep.subr.mxu0 0.0
        %2949 = vmatpush2.msra.mxu0 0.0
        %2950 = vmatprep.subr.mxu0 0.0
        %2951 = vmatpush2.msra.mxu0 0.0
        %2952 = vmatprep.subr.mxu0 0.0
        %2953 = vmatpush2.msra.mxu0 0.0
        %2954 = vmatprep.subr.mxu0 0.0
        %2955 = vmatpush2.msra.mxu0 0.0
        %2956 = vmatprep.subr.mxu0 0.0
        %2957 = vmatpush2.msra.mxu0 0.0
        %2958 = vmatprep.subr.mxu0 0.0
        %2959 = vmatpush2.msra.mxu0 0.0
        %2960 = vmatprep.subr.mxu0 0.0
        %2961 = vmatpush2.msra.mxu0 0.0
        %2962 = vmatprep.mubr.f32.mxu0 0.0
        %2963 = vmatmul.mubr.f32.gmra.mxu0 %v2768
        %v2964 = vpop.f32.mrf.mxu0
        %v2965 = vadd.f32 %v2890, %v2964
        %v2966 = vpop.f32.mrf.mxu0
        %2967 = vmatprep.mubr.f32.mxu0 0.0
        %2968 = vmatmul.mubr.f32.gmra.mxu0 %v2769
        %v2969 = vpop.f32.mrf.mxu0
        %v2970 = vadd.f32 %v2895, %v2969
        %v2971 = vpop.f32.mrf.mxu0
        %2972 = vdwg.mxu0
        %v2973 = vmax.f32 %v2965, 0.0
        %v2974 = vmax.f32 %v2970, 0.0
        %v2975 = vlaneseq
        %v2976 = vshrl.u32 %v2975, 7
        %v2977 = vsub.s32 1, %v2976
        %v2978 = vrot.slane %v2818, %v2977
        %v2979 = vmul.f32 %v2973, %v2978
        %v2980 = vmul.f32 %v2974, %v2978
        %v2981 = vlaneseq
        %v2982 = vshrl.u32 %v2981, 7
        %v2983 = vsub.s32 2, %v2982
        %v2984 = vrot.slane %v2818, %v2983
        %v2985 = vadd.f32 %v2979, %v2984
        %v2986 = vadd.f32 %v2980, %v2984
        %v2987 = vadd.s32 %v840, 16
        %v2988 = vadd.s32 %v840, 24
        %vm2989 = vcmp.eq.s32.totalorder %v2987, 0
        %vm2990 = vcmp.eq.s32.totalorder %v2988, 0
        %v2991 = vrot.slane %v1456, 7
        %v2992 = vrot.slane %v1457, 7
        %v2993 = vrot.slane %v2985, 7
        %v2994 = vrot.slane %v2986, 7
        %v2995 = vsel %vm846, %v2993, %v2994
        %v2996 = vsel %vm846, %v2992, %v2993
        %v2997 = vsel %vm846, %v2991, %v2992
        %v2998 = vsel %vm846, %v2994, %v2991
        %v2999 = vsel %vm2989, 1, 0
        %v3000 = vsel %vm2990, 1, 0
        %vm3001 = vcmp.eq.s32.totalorder %v2999, 1
        %vm3002 = vcmp.eq.s32.totalorder %v3000, 1
        %v3003 = vsel %vm851, 0.0, %v2998
        %v3004 = vsel %vm852, 0.0, %v2997
        %v3005 = vsel %vm3001, 0.0, %v2996
        %v3006 = vsel %vm3002, 0.0, %v2995
        %vm3007 = vcmp.eq.s32.totalorder %v840, 31
        %vm3008 = vcmp.eq.s32.totalorder %v841, 31
        %vm3009 = vcmp.eq.s32.totalorder %v2987, 31
        %vm3010 = vcmp.eq.s32.totalorder %v2988, 31
        %v3011 = vrot.slane %v2985, 1
        %v3012 = vrot.slane %v2986, 1
        %v3013 = vsel %vm859, %v3011, %v3012
        %v3014 = vsel %vm859, %v1459, %v3011
        %v3015 = vsel %vm859, %v3012, %v1458
        %v3016 = vsel %vm3007, 1, 0
        %v3017 = vsel %vm3008, 1, 0
        %v3018 = vsel %vm3009, 1, 0
        %v3019 = vsel %vm3010, 1, 0
        %vm3020 = vcmp.eq.s32.totalorder %v3016, 1
        %vm3021 = vcmp.eq.s32.totalorder %v3017, 1
        %vm3022 = vcmp.eq.s32.totalorder %v3018, 1
        %vm3023 = vcmp.eq.s32.totalorder %v3019, 1
        %v3024 = vsel %vm3020, 0.0, %v1460
        %v3025 = vsel %vm3021, 0.0, %v3014
        %v3026 = vsel %vm3022, 0.0, %v3013
        %v3027 = vsel %vm3023, 0.0, %v3015
        %v3028 = vld [vmem:[%s13] sm:$0xff]
        %v3029 = vld [vmem:[%s13 + $0x8] sm:$0xff]
        %v3030 = vld [vmem:[%s13 + $0x10] sm:$0xff]
        %v3031 = vld [vmem:[%s13 + $0x18] sm:$0xff]
        %v3032 = vld [vmem:[%s13 + $0x20] sm:$0xff]
        %v3033 = vld [vmem:[%s13 + $0x28] sm:$0xff]
        %v3034 = vld [vmem:[%s13 + $0x30] sm:$0xff]
        %v3035 = vld [vmem:[%s13 + $0x38] sm:$0xff]
        %s3036 = scalar_lea.vmem %s13, 64
        %v3037 = vld [vmem:[%s3036] sm:$0xff]
        %v3038 = vld [vmem:[%s3036 + $0x8] sm:$0xff]
        %v3039 = vld [vmem:[%s3036 + $0x10] sm:$0xff]
        %v3040 = vld [vmem:[%s3036 + $0x18] sm:$0xff]
        %v3041 = vld [vmem:[%s3036 + $0x20] sm:$0xff]
        %v3042 = vld [vmem:[%s3036 + $0x28] sm:$0xff]
        %v3043 = vld [vmem:[%s3036 + $0x30] sm:$0xff]
        %v3044 = vld [vmem:[%s3036 + $0x38] sm:$0xff]
        %v3046 = vsel %vm1563, %v1456, 0
        %v3049 = vsel %vm1563, %v1457, 0
        %v3052 = vsel %vm1563, %v2985, 0
        %v3055 = vsel %vm1563, %v2986, 0
        %3057 = vmatprep.subr.mxu0 0.0
        %3058 = vmatpush1.msra.mxu0 0.0
        %3059 = vmatprep.subr.mxu0 0.0
        %3060 = vmatpush1.msra.mxu0 0.0
        %3061 = vmatprep.subr.mxu0 0.0
        %3062 = vmatpush1.msra.mxu0 0.0
        %3063 = vmatprep.subr.mxu0 0.0
        %3064 = vmatpush1.msra.mxu0 0.0
        %3065 = vmatprep.subr.mxu0 0.0
        %3066 = vmatpush1.msra.mxu0 0.0
        %3067 = vmatprep.subr.mxu0 0.0
        %3068 = vmatpush1.msra.mxu0 0.0
        %3069 = vmatprep.subr.mxu0 0.0
        %3070 = vmatpush1.msra.mxu0 0.0
        %3071 = vmatprep.subr.mxu0 0.0
        %3072 = vmatpush1.msra.mxu0 0.0
        %3073 = vmatprep.subr.mxu0 0.0
        %3074 = vmatpush1.msra.mxu0 %v3044
        %3075 = vmatprep.subr.mxu0 0.0
        %3076 = vmatpush1.msra.mxu0 %v3043
        %3077 = vmatprep.subr.mxu0 0.0
        %3078 = vmatpush1.msra.mxu0 %v3042
        %3079 = vmatprep.subr.mxu0 0.0
        %3080 = vmatpush1.msra.mxu0 %v3041
        %3081 = vmatprep.subr.mxu0 0.0
        %3082 = vmatpush1.msra.mxu0 %v3040
        %3083 = vmatprep.subr.mxu0 0.0
        %3084 = vmatpush1.msra.mxu0 %v3039
        %3085 = vmatprep.subr.mxu0 0.0
        %3086 = vmatpush1.msra.mxu0 %v3038
        %3087 = vmatprep.subr.mxu0 0.0
        %3088 = vmatpush1.msra.mxu0 %v3037
        %3089 = vmatprep.subr.mxu0 0.0
        %3090 = vmatpush2.msra.mxu0 0.0
        %3091 = vmatprep.subr.mxu0 0.0
        %3092 = vmatpush2.msra.mxu0 0.0
        %3093 = vmatprep.subr.mxu0 0.0
        %3094 = vmatpush2.msra.mxu0 0.0
        %3095 = vmatprep.subr.mxu0 0.0
        %3096 = vmatpush2.msra.mxu0 0.0
        %3097 = vmatprep.subr.mxu0 0.0
        %3098 = vmatpush2.msra.mxu0 0.0
        %3099 = vmatprep.subr.mxu0 0.0
        %3100 = vmatpush2.msra.mxu0 0.0
        %3101 = vmatprep.subr.mxu0 0.0
        %3102 = vmatpush2.msra.mxu0 0.0
        %3103 = vmatprep.subr.mxu0 0.0
        %3104 = vmatpush2.msra.mxu0 0.0
        %3105 = vmatprep.subr.mxu0 0.0
        %3106 = vmatpush2.msra.mxu0 0.0
        %3107 = vmatprep.subr.mxu0 0.0
        %3108 = vmatpush2.msra.mxu0 0.0
        %3109 = vmatprep.subr.mxu0 0.0
        %3110 = vmatpush2.msra.mxu0 0.0
        %3111 = vmatprep.subr.mxu0 0.0
        %3112 = vmatpush2.msra.mxu0 0.0
        %3113 = vmatprep.subr.mxu0 0.0
        %3114 = vmatpush2.msra.mxu0 0.0
        %3115 = vmatprep.subr.mxu0 0.0
        %3116 = vmatpush2.msra.mxu0 0.0
        %3117 = vmatprep.subr.mxu0 0.0
        %3118 = vmatpush2.msra.mxu0 0.0
        %3119 = vmatprep.subr.mxu0 0.0
        %3120 = vmatpush2.msra.mxu0 0.0
        %3121 = vmatprep.mubr.f32.mxu0 0.0
        %3122 = vmatmul.mubr.f32.gmra.mxu0 %v3046
        %v3123 = vpop.f32.mrf.mxu0
        %v3124 = vadd.f32 0.0, %v3123
        %v3125 = vpop.f32.mrf.mxu0
        %3126 = vmatprep.mubr.f32.mxu0 0.0
        %3127 = vmatmul.mubr.f32.gmra.mxu0 %v3049
        %v3128 = vpop.f32.mrf.mxu0
        %v3129 = vadd.f32 0.0, %v3128
        %v3130 = vpop.f32.mrf.mxu0
        %3131 = vmatprep.mubr.f32.mxu0 0.0
        %3132 = vmatmul.mubr.f32.gmra.mxu0 %v3052
        %v3133 = vpop.f32.mrf.mxu0
        %v3134 = vadd.f32 0.0, %v3133
        %v3135 = vpop.f32.mrf.mxu0
        %3136 = vmatprep.mubr.f32.mxu0 0.0
        %3137 = vmatmul.mubr.f32.gmra.mxu0 %v3055
        %v3138 = vpop.f32.mrf.mxu0
        %v3139 = vadd.f32 0.0, %v3138
        %v3140 = vpop.f32.mrf.mxu0
        %3141 = vdwg.mxu0
        %v3143 = vsel %vm1563, %v3003, 0
        %v3146 = vsel %vm1563, %v3004, 0
        %v3149 = vsel %vm1563, %v3005, 0
        %v3152 = vsel %vm1563, %v3006, 0
        %3154 = vmatprep.subr.mxu0 0.0
        %3155 = vmatpush1.msra.mxu0 0.0
        %3156 = vmatprep.subr.mxu0 0.0
        %3157 = vmatpush1.msra.mxu0 0.0
        %3158 = vmatprep.subr.mxu0 0.0
        %3159 = vmatpush1.msra.mxu0 0.0
        %3160 = vmatprep.subr.mxu0 0.0
        %3161 = vmatpush1.msra.mxu0 0.0
        %3162 = vmatprep.subr.mxu0 0.0
        %3163 = vmatpush1.msra.mxu0 0.0
        %3164 = vmatprep.subr.mxu0 0.0
        %3165 = vmatpush1.msra.mxu0 0.0
        %3166 = vmatprep.subr.mxu0 0.0
        %3167 = vmatpush1.msra.mxu0 0.0
        %3168 = vmatprep.subr.mxu0 0.0
        %3169 = vmatpush1.msra.mxu0 0.0
        %3170 = vmatprep.subr.mxu0 0.0
        %3171 = vmatpush1.msra.mxu0 %v3035
        %3172 = vmatprep.subr.mxu0 0.0
        %3173 = vmatpush1.msra.mxu0 %v3034
        %3174 = vmatprep.subr.mxu0 0.0
        %3175 = vmatpush1.msra.mxu0 %v3033
        %3176 = vmatprep.subr.mxu0 0.0
        %3177 = vmatpush1.msra.mxu0 %v3032
        %3178 = vmatprep.subr.mxu0 0.0
        %3179 = vmatpush1.msra.mxu0 %v3031
        %3180 = vmatprep.subr.mxu0 0.0
        %3181 = vmatpush1.msra.mxu0 %v3030
        %3182 = vmatprep.subr.mxu0 0.0
        %3183 = vmatpush1.msra.mxu0 %v3029
        %3184 = vmatprep.subr.mxu0 0.0
        %3185 = vmatpush1.msra.mxu0 %v3028
        %3186 = vmatprep.subr.mxu0 0.0
        %3187 = vmatpush2.msra.mxu0 0.0
        %3188 = vmatprep.subr.mxu0 0.0
        %3189 = vmatpush2.msra.mxu0 0.0
        %3190 = vmatprep.subr.mxu0 0.0
        %3191 = vmatpush2.msra.mxu0 0.0
        %3192 = vmatprep.subr.mxu0 0.0
        %3193 = vmatpush2.msra.mxu0 0.0
        %3194 = vmatprep.subr.mxu0 0.0
        %3195 = vmatpush2.msra.mxu0 0.0
        %3196 = vmatprep.subr.mxu0 0.0
        %3197 = vmatpush2.msra.mxu0 0.0
        %3198 = vmatprep.subr.mxu0 0.0
        %3199 = vmatpush2.msra.mxu0 0.0
        %3200 = vmatprep.subr.mxu0 0.0
        %3201 = vmatpush2.msra.mxu0 0.0
        %3202 = vmatprep.subr.mxu0 0.0
        %3203 = vmatpush2.msra.mxu0 0.0
        %3204 = vmatprep.subr.mxu0 0.0
        %3205 = vmatpush2.msra.mxu0 0.0
        %3206 = vmatprep.subr.mxu0 0.0
        %3207 = vmatpush2.msra.mxu0 0.0
        %3208 = vmatprep.subr.mxu0 0.0
        %3209 = vmatpush2.msra.mxu0 0.0
        %3210 = vmatprep.subr.mxu0 0.0
        %3211 = vmatpush2.msra.mxu0 0.0
        %3212 = vmatprep.subr.mxu0 0.0
        %3213 = vmatpush2.msra.mxu0 0.0
        %3214 = vmatprep.subr.mxu0 0.0
        %3215 = vmatpush2.msra.mxu0 0.0
        %3216 = vmatprep.subr.mxu0 0.0
        %3217 = vmatpush2.msra.mxu0 0.0
        %3218 = vmatprep.mubr.f32.mxu0 0.0
        %3219 = vmatmul.mubr.f32.gmra.mxu0 %v3143
        %v3220 = vpop.f32.mrf.mxu0
        %v3221 = vadd.f32 %v3124, %v3220
        %v3222 = vpop.f32.mrf.mxu0
        %3223 = vmatprep.mubr.f32.mxu0 0.0
        %3224 = vmatmul.mubr.f32.gmra.mxu0 %v3146
        %v3225 = vpop.f32.mrf.mxu0
        %v3226 = vadd.f32 %v3129, %v3225
        %v3227 = vpop.f32.mrf.mxu0
        %3228 = vmatprep.mubr.f32.mxu0 0.0
        %3229 = vmatmul.mubr.f32.gmra.mxu0 %v3149
        %v3230 = vpop.f32.mrf.mxu0
        %v3231 = vadd.f32 %v3134, %v3230
        %v3232 = vpop.f32.mrf.mxu0
        %3233 = vmatprep.mubr.f32.mxu0 0.0
        %3234 = vmatmul.mubr.f32.gmra.mxu0 %v3152
        %v3235 = vpop.f32.mrf.mxu0
        %v3236 = vadd.f32 %v3139, %v3235
        %v3237 = vpop.f32.mrf.mxu0
        %3238 = vdwg.mxu0
        %s3239 = scalar_lea.vmem %s13, 128
        %v3240 = vld [vmem:[%s3239] sm:$0xff]
        %v3241 = vld [vmem:[%s3239 + $0x8] sm:$0xff]
        %v3242 = vld [vmem:[%s3239 + $0x10] sm:$0xff]
        %v3243 = vld [vmem:[%s3239 + $0x18] sm:$0xff]
        %v3244 = vld [vmem:[%s3239 + $0x20] sm:$0xff]
        %v3245 = vld [vmem:[%s3239 + $0x28] sm:$0xff]
        %v3246 = vld [vmem:[%s3239 + $0x30] sm:$0xff]
        %v3247 = vld [vmem:[%s3239 + $0x38] sm:$0xff]
        %v3249 = vsel %vm1563, %v3024, 0
        %v3252 = vsel %vm1563, %v3025, 0
        %v3255 = vsel %vm1563, %v3026, 0
        %v3258 = vsel %vm1563, %v3027, 0
        %3260 = vmatprep.subr.mxu0 0.0
        %3261 = vmatpush1.msra.mxu0 0.0
        %3262 = vmatprep.subr.mxu0 0.0
        %3263 = vmatpush1.msra.mxu0 0.0
        %3264 = vmatprep.subr.mxu0 0.0
        %3265 = vmatpush1.msra.mxu0 0.0
        %3266 = vmatprep.subr.mxu0 0.0
        %3267 = vmatpush1.msra.mxu0 0.0
        %3268 = vmatprep.subr.mxu0 0.0
        %3269 = vmatpush1.msra.mxu0 0.0
        %3270 = vmatprep.subr.mxu0 0.0
        %3271 = vmatpush1.msra.mxu0 0.0
        %3272 = vmatprep.subr.mxu0 0.0
        %3273 = vmatpush1.msra.mxu0 0.0
        %3274 = vmatprep.subr.mxu0 0.0
        %3275 = vmatpush1.msra.mxu0 0.0
        %3276 = vmatprep.subr.mxu0 0.0
        %3277 = vmatpush1.msra.mxu0 %v3247
        %3278 = vmatprep.subr.mxu0 0.0
        %3279 = vmatpush1.msra.mxu0 %v3246
        %3280 = vmatprep.subr.mxu0 0.0
        %3281 = vmatpush1.msra.mxu0 %v3245
        %3282 = vmatprep.subr.mxu0 0.0
        %3283 = vmatpush1.msra.mxu0 %v3244
        %3284 = vmatprep.subr.mxu0 0.0
        %3285 = vmatpush1.msra.mxu0 %v3243
        %3286 = vmatprep.subr.mxu0 0.0
        %3287 = vmatpush1.msra.mxu0 %v3242
        %3288 = vmatprep.subr.mxu0 0.0
        %3289 = vmatpush1.msra.mxu0 %v3241
        %3290 = vmatprep.subr.mxu0 0.0
        %3291 = vmatpush1.msra.mxu0 %v3240
        %3292 = vmatprep.subr.mxu0 0.0
        %3293 = vmatpush2.msra.mxu0 0.0
        %3294 = vmatprep.subr.mxu0 0.0
        %3295 = vmatpush2.msra.mxu0 0.0
        %3296 = vmatprep.subr.mxu0 0.0
        %3297 = vmatpush2.msra.mxu0 0.0
        %3298 = vmatprep.subr.mxu0 0.0
        %3299 = vmatpush2.msra.mxu0 0.0
        %3300 = vmatprep.subr.mxu0 0.0
        %3301 = vmatpush2.msra.mxu0 0.0
        %3302 = vmatprep.subr.mxu0 0.0
        %3303 = vmatpush2.msra.mxu0 0.0
        %3304 = vmatprep.subr.mxu0 0.0
        %3305 = vmatpush2.msra.mxu0 0.0
        %3306 = vmatprep.subr.mxu0 0.0
        %3307 = vmatpush2.msra.mxu0 0.0
        %3308 = vmatprep.subr.mxu0 0.0
        %3309 = vmatpush2.msra.mxu0 0.0
        %3310 = vmatprep.subr.mxu0 0.0
        %3311 = vmatpush2.msra.mxu0 0.0
        %3312 = vmatprep.subr.mxu0 0.0
        %3313 = vmatpush2.msra.mxu0 0.0
        %3314 = vmatprep.subr.mxu0 0.0
        %3315 = vmatpush2.msra.mxu0 0.0
        %3316 = vmatprep.subr.mxu0 0.0
        %3317 = vmatpush2.msra.mxu0 0.0
        %3318 = vmatprep.subr.mxu0 0.0
        %3319 = vmatpush2.msra.mxu0 0.0
        %3320 = vmatprep.subr.mxu0 0.0
        %3321 = vmatpush2.msra.mxu0 0.0
        %3322 = vmatprep.subr.mxu0 0.0
        %3323 = vmatpush2.msra.mxu0 0.0
        %3324 = vmatprep.mubr.f32.mxu0 0.0
        %3325 = vmatmul.mubr.f32.gmra.mxu0 %v3249
        %v3326 = vpop.f32.mrf.mxu0
        %v3327 = vadd.f32 0.0, %v3326
        %v3328 = vpop.f32.mrf.mxu0
        %3329 = vmatprep.mubr.f32.mxu0 0.0
        %3330 = vmatmul.mubr.f32.gmra.mxu0 %v3252
        %v3331 = vpop.f32.mrf.mxu0
        %v3332 = vadd.f32 0.0, %v3331
        %v3333 = vpop.f32.mrf.mxu0
        %3334 = vmatprep.mubr.f32.mxu0 0.0
        %3335 = vmatmul.mubr.f32.gmra.mxu0 %v3255
        %v3336 = vpop.f32.mrf.mxu0
        %v3337 = vadd.f32 0.0, %v3336
        %v3338 = vpop.f32.mrf.mxu0
        %3339 = vmatprep.mubr.f32.mxu0 0.0
        %3340 = vmatmul.mubr.f32.gmra.mxu0 %v3258
        %v3341 = vpop.f32.mrf.mxu0
        %v3342 = vadd.f32 0.0, %v3341
        %v3343 = vpop.f32.mrf.mxu0
        %3344 = vdwg.mxu0
        %v3345 = vadd.f32 %v3221, %v3327
        %v3346 = vadd.f32 %v3226, %v3332
        %v3347 = vadd.f32 %v3231, %v3337
        %v3348 = vadd.f32 %v3236, %v3342
        %v3349 = vld [vmem:[#allocation9] sm:$0x7]
        %v3350 = vlaneseq
        %v3351 = vshrl.u32 %v3350, 7
        %v3352 = vsub.s32 0, %v3351
        %v3353 = vrot.slane %v3349, %v3352
        %v3354 = vadd.f32 %v3345, %v3353
        %v3355 = vadd.f32 %v3346, %v3353
        %v3356 = vadd.f32 %v3347, %v3353
        %v3357 = vadd.f32 %v3348, %v3353
        %v3358 = vmax.f32 %v3354, 0.0
        %v3359 = vmax.f32 %v3355, 0.0
        %v3360 = vmax.f32 %v3356, 0.0
        %v3361 = vmax.f32 %v3357, 0.0
        %v3362 = vlaneseq
        %v3363 = vshrl.u32 %v3362, 7
        %v3364 = vsub.s32 1, %v3363
        %v3365 = vrot.slane %v3349, %v3364
        %v3366 = vmul.f32 %v3358, %v3365
        %v3367 = vmul.f32 %v3359, %v3365
        %v3368 = vmul.f32 %v3360, %v3365
        %v3369 = vmul.f32 %v3361, %v3365
        %v3370 = vlaneseq
        %v3371 = vshrl.u32 %v3370, 7
        %v3372 = vsub.s32 2, %v3371
        %v3373 = vrot.slane %v3349, %v3372
        %v3374 = vadd.f32 %v3366, %v3373
        %v3375 = vadd.f32 %v3367, %v3373
        %v3376 = vadd.f32 %v3368, %v3373
        %v3377 = vadd.f32 %v3369, %v3373
        %v3378 = vld [vmem:[%s18] sm:$0xff]
        %v3379 = vld [vmem:[%s18 + $0x8] sm:$0xff]
        %v3380 = vld [vmem:[%s18 + $0x10] sm:$0xff]
        %v3381 = vld [vmem:[%s18 + $0x18] sm:$0xff]
        %v3382 = vld [vmem:[%s18 + $0x20] sm:$0xff]
        %v3383 = vld [vmem:[%s18 + $0x28] sm:$0xff]
        %v3384 = vld [vmem:[%s18 + $0x30] sm:$0xff]
        %v3385 = vld [vmem:[%s18 + $0x38] sm:$0xff]
        %v3386 = vld [vmem:[%s18 + $0x40] sm:$0xff]
        %v3387 = vld [vmem:[%s18 + $0x48] sm:$0xff]
        %v3388 = vld [vmem:[%s18 + $0x50] sm:$0xff]
        %v3389 = vld [vmem:[%s18 + $0x58] sm:$0xff]
        %v3390 = vld [vmem:[%s18 + $0x60] sm:$0xff]
        %v3391 = vld [vmem:[%s18 + $0x68] sm:$0xff]
        %v3392 = vld [vmem:[%s18 + $0x70] sm:$0xff]
        %v3393 = vld [vmem:[%s18 + $0x78] sm:$0xff]
        %v3394 = vld [vmem:[%s18 + $0x80] sm:$0xff]
        %v3395 = vld [vmem:[%s18 + $0x88] sm:$0xff]
        %v3396 = vld [vmem:[%s18 + $0x90] sm:$0xff]
        %v3397 = vld [vmem:[%s18 + $0x98] sm:$0xff]
        %v3398 = vld [vmem:[%s18 + $0xa0] sm:$0xff]
        %v3399 = vld [vmem:[%s18 + $0xa8] sm:$0xff]
        %v3400 = vld [vmem:[%s18 + $0xb0] sm:$0xff]
        %v3401 = vld [vmem:[%s18 + $0xb8] sm:$0xff]
        %v3402 = vld [vmem:[%s18 + $0xc0] sm:$0xff]
        %v3403 = vld [vmem:[%s18 + $0xc8] sm:$0xff]
        %v3404 = vld [vmem:[%s18 + $0xd0] sm:$0xff]
        %v3405 = vld [vmem:[%s18 + $0xd8] sm:$0xff]
        %v3406 = vld [vmem:[%s18 + $0xe0] sm:$0xff]
        %v3407 = vld [vmem:[%s18 + $0xe8] sm:$0xff]
        %v3408 = vld [vmem:[%s18 + $0xf0] sm:$0xff]
        %v3409 = vld [vmem:[%s18 + $0xf8] sm:$0xff]
        %v3411 = vsel %vm1186, %v3374, 0
        %v3414 = vsel %vm1186, %v3375, 0
        %v3417 = vsel %vm1186, %v3376, 0
        %v3420 = vsel %vm1186, %v3377, 0
        %3422 = vmatprep.subr.mxu0 0.0
        %3423 = vmatpush1.msra.mxu0 0.0
        %3424 = vmatprep.subr.mxu0 0.0
        %3425 = vmatpush1.msra.mxu0 0.0
        %3426 = vmatprep.subr.mxu0 0.0
        %3427 = vmatpush1.msra.mxu0 0.0
        %3428 = vmatprep.subr.mxu0 0.0
        %3429 = vmatpush1.msra.mxu0 0.0
        %3430 = vmatprep.subr.mxu0 0.0
        %3431 = vmatpush1.msra.mxu0 0.0
        %3432 = vmatprep.subr.mxu0 0.0
        %3433 = vmatpush1.msra.mxu0 0.0
        %3434 = vmatprep.subr.mxu0 0.0
        %3435 = vmatpush1.msra.mxu0 0.0
        %3436 = vmatprep.subr.mxu0 0.0
        %3437 = vmatpush1.msra.mxu0 0.0
        %3438 = vmatprep.subr.mxu0 0.0
        %3439 = vmatpush1.msra.mxu0 0.0
        %3440 = vmatprep.subr.mxu0 0.0
        %3441 = vmatpush1.msra.mxu0 0.0
        %3442 = vmatprep.subr.mxu0 0.0
        %3443 = vmatpush1.msra.mxu0 0.0
        %3444 = vmatprep.subr.mxu0 0.0
        %3445 = vmatpush1.msra.mxu0 0.0
        %3446 = vmatprep.subr.mxu0 %v3403
        %3447 = vmatpush1.msra.mxu0 %v3402
        %3448 = vmatprep.subr.mxu0 %v3395
        %3449 = vmatpush1.msra.mxu0 %v3394
        %3450 = vmatprep.subr.mxu0 %v3387
        %3451 = vmatpush1.msra.mxu0 %v3386
        %3452 = vmatprep.subr.mxu0 %v3379
        %3453 = vmatpush1.msra.mxu0 %v3378
        %3454 = vmatprep.subr.mxu0 0.0
        %3455 = vmatpush2.msra.mxu0 0.0
        %3456 = vmatprep.subr.mxu0 0.0
        %3457 = vmatpush2.msra.mxu0 0.0
        %3458 = vmatprep.subr.mxu0 0.0
        %3459 = vmatpush2.msra.mxu0 0.0
        %3460 = vmatprep.subr.mxu0 0.0
        %3461 = vmatpush2.msra.mxu0 0.0
        %3462 = vmatprep.subr.mxu0 0.0
        %3463 = vmatpush2.msra.mxu0 0.0
        %3464 = vmatprep.subr.mxu0 0.0
        %3465 = vmatpush2.msra.mxu0 0.0
        %3466 = vmatprep.subr.mxu0 0.0
        %3467 = vmatpush2.msra.mxu0 0.0
        %3468 = vmatprep.subr.mxu0 0.0
        %3469 = vmatpush2.msra.mxu0 0.0
        %3470 = vmatprep.subr.mxu0 0.0
        %3471 = vmatpush2.msra.mxu0 0.0
        %3472 = vmatprep.subr.mxu0 0.0
        %3473 = vmatpush2.msra.mxu0 0.0
        %3474 = vmatprep.subr.mxu0 0.0
        %3475 = vmatpush2.msra.mxu0 0.0
        %3476 = vmatprep.subr.mxu0 0.0
        %3477 = vmatpush2.msra.mxu0 0.0
        %3478 = vmatprep.subr.mxu0 0.0
        %3479 = vmatpush2.msra.mxu0 0.0
        %3480 = vmatprep.subr.mxu0 0.0
        %3481 = vmatpush2.msra.mxu0 0.0
        %3482 = vmatprep.subr.mxu0 0.0
        %3483 = vmatpush2.msra.mxu0 0.0
        %3484 = vmatprep.subr.mxu0 0.0
        %3485 = vmatpush2.msra.mxu0 0.0
        %3486 = vmatprep.mubr.f32.mxu0 0.0
        %3487 = vmatmul.mubr.f32.gmra.mxu0 %v3411
        %v3488 = vpop.f32.mrf.mxu0
        %v3489 = vadd.f32 0.0, %v3488
        %v3490 = vpop.f32.mrf.mxu0
        %v3491 = vadd.f32 0.0, %v3490
        %3492 = vmatprep.mubr.f32.mxu0 0.0
        %3493 = vmatmul.mubr.f32.gmra.mxu0 %v3414
        %v3494 = vpop.f32.mrf.mxu0
        %v3495 = vadd.f32 0.0, %v3494
        %v3496 = vpop.f32.mrf.mxu0
        %v3497 = vadd.f32 0.0, %v3496
        %3498 = vmatprep.mubr.f32.mxu0 0.0
        %3499 = vmatmul.mubr.f32.gmra.mxu0 %v3417
        %v3500 = vpop.f32.mrf.mxu0
        %v3501 = vadd.f32 0.0, %v3500
        %v3502 = vpop.f32.mrf.mxu0
        %v3503 = vadd.f32 0.0, %v3502
        %3504 = vmatprep.mubr.f32.mxu0 0.0
        %3505 = vmatmul.mubr.f32.gmra.mxu0 %v3420
        %v3506 = vpop.f32.mrf.mxu0
        %v3507 = vadd.f32 0.0, %v3506
        %v3508 = vpop.f32.mrf.mxu0
        %v3509 = vadd.f32 0.0, %v3508
        %3510 = vdwg.mxu0
        %3511 = vmatprep.subr.mxu0 0.0
        %3512 = vmatpush1.msra.mxu0 0.0
        %3513 = vmatprep.subr.mxu0 0.0
        %3514 = vmatpush1.msra.mxu0 0.0
        %3515 = vmatprep.subr.mxu0 0.0
        %3516 = vmatpush1.msra.mxu0 0.0
        %3517 = vmatprep.subr.mxu0 0.0
        %3518 = vmatpush1.msra.mxu0 0.0
        %3519 = vmatprep.subr.mxu0 0.0
        %3520 = vmatpush1.msra.mxu0 0.0
        %3521 = vmatprep.subr.mxu0 0.0
        %3522 = vmatpush1.msra.mxu0 0.0
        %3523 = vmatprep.subr.mxu0 0.0
        %3524 = vmatpush1.msra.mxu0 0.0
        %3525 = vmatprep.subr.mxu0 0.0
        %3526 = vmatpush1.msra.mxu0 0.0
        %3527 = vmatprep.subr.mxu0 0.0
        %3528 = vmatpush1.msra.mxu0 0.0
        %3529 = vmatprep.subr.mxu0 0.0
        %3530 = vmatpush1.msra.mxu0 0.0
        %3531 = vmatprep.subr.mxu0 0.0
        %3532 = vmatpush1.msra.mxu0 0.0
        %3533 = vmatprep.subr.mxu0 0.0
        %3534 = vmatpush1.msra.mxu0 0.0
        %3535 = vmatprep.subr.mxu0 %v3405
        %3536 = vmatpush1.msra.mxu0 %v3404
        %3537 = vmatprep.subr.mxu0 %v3397
        %3538 = vmatpush1.msra.mxu0 %v3396
        %3539 = vmatprep.subr.mxu0 %v3389
        %3540 = vmatpush1.msra.mxu0 %v3388
        %3541 = vmatprep.subr.mxu0 %v3381
        %3542 = vmatpush1.msra.mxu0 %v3380
        %3543 = vmatprep.subr.mxu0 0.0
        %3544 = vmatpush2.msra.mxu0 0.0
        %3545 = vmatprep.subr.mxu0 0.0
        %3546 = vmatpush2.msra.mxu0 0.0
        %3547 = vmatprep.subr.mxu0 0.0
        %3548 = vmatpush2.msra.mxu0 0.0
        %3549 = vmatprep.subr.mxu0 0.0
        %3550 = vmatpush2.msra.mxu0 0.0
        %3551 = vmatprep.subr.mxu0 0.0
        %3552 = vmatpush2.msra.mxu0 0.0
        %3553 = vmatprep.subr.mxu0 0.0
        %3554 = vmatpush2.msra.mxu0 0.0
        %3555 = vmatprep.subr.mxu0 0.0
        %3556 = vmatpush2.msra.mxu0 0.0
        %3557 = vmatprep.subr.mxu0 0.0
        %3558 = vmatpush2.msra.mxu0 0.0
        %3559 = vmatprep.subr.mxu0 0.0
        %3560 = vmatpush2.msra.mxu0 0.0
        %3561 = vmatprep.subr.mxu0 0.0
        %3562 = vmatpush2.msra.mxu0 0.0
        %3563 = vmatprep.subr.mxu0 0.0
        %3564 = vmatpush2.msra.mxu0 0.0
        %3565 = vmatprep.subr.mxu0 0.0
        %3566 = vmatpush2.msra.mxu0 0.0
        %3567 = vmatprep.subr.mxu0 0.0
        %3568 = vmatpush2.msra.mxu0 0.0
        %3569 = vmatprep.subr.mxu0 0.0
        %3570 = vmatpush2.msra.mxu0 0.0
        %3571 = vmatprep.subr.mxu0 0.0
        %3572 = vmatpush2.msra.mxu0 0.0
        %3573 = vmatprep.subr.mxu0 0.0
        %3574 = vmatpush2.msra.mxu0 0.0
        %3575 = vmatprep.mubr.f32.mxu0 0.0
        %3576 = vmatmul.mubr.f32.gmra.mxu0 %v3411
        %v3577 = vpop.f32.mrf.mxu0
        %v3578 = vadd.f32 0.0, %v3577
        %v3579 = vpop.f32.mrf.mxu0
        %v3580 = vadd.f32 0.0, %v3579
        %3581 = vmatprep.mubr.f32.mxu0 0.0
        %3582 = vmatmul.mubr.f32.gmra.mxu0 %v3414
        %v3583 = vpop.f32.mrf.mxu0
        %v3584 = vadd.f32 0.0, %v3583
        %v3585 = vpop.f32.mrf.mxu0
        %v3586 = vadd.f32 0.0, %v3585
        %3587 = vmatprep.mubr.f32.mxu0 0.0
        %3588 = vmatmul.mubr.f32.gmra.mxu0 %v3417
        %v3589 = vpop.f32.mrf.mxu0
        %v3590 = vadd.f32 0.0, %v3589
        %v3591 = vpop.f32.mrf.mxu0
        %v3592 = vadd.f32 0.0, %v3591
        %3593 = vmatprep.mubr.f32.mxu0 0.0
        %3594 = vmatmul.mubr.f32.gmra.mxu0 %v3420
        %v3595 = vpop.f32.mrf.mxu0
        %v3596 = vadd.f32 0.0, %v3595
        %v3597 = vpop.f32.mrf.mxu0
        %v3598 = vadd.f32 0.0, %v3597
        %3599 = vdwg.mxu0
        %3600 = vmatprep.subr.mxu0 0.0
        %3601 = vmatpush1.msra.mxu0 0.0
        %3602 = vmatprep.subr.mxu0 0.0
        %3603 = vmatpush1.msra.mxu0 0.0
        %3604 = vmatprep.subr.mxu0 0.0
        %3605 = vmatpush1.msra.mxu0 0.0
        %3606 = vmatprep.subr.mxu0 0.0
        %3607 = vmatpush1.msra.mxu0 0.0
        %3608 = vmatprep.subr.mxu0 0.0
        %3609 = vmatpush1.msra.mxu0 0.0
        %3610 = vmatprep.subr.mxu0 0.0
        %3611 = vmatpush1.msra.mxu0 0.0
        %3612 = vmatprep.subr.mxu0 0.0
        %3613 = vmatpush1.msra.mxu0 0.0
        %3614 = vmatprep.subr.mxu0 0.0
        %3615 = vmatpush1.msra.mxu0 0.0
        %3616 = vmatprep.subr.mxu0 0.0
        %3617 = vmatpush1.msra.mxu0 0.0
        %3618 = vmatprep.subr.mxu0 0.0
        %3619 = vmatpush1.msra.mxu0 0.0
        %3620 = vmatprep.subr.mxu0 0.0
        %3621 = vmatpush1.msra.mxu0 0.0
        %3622 = vmatprep.subr.mxu0 0.0
        %3623 = vmatpush1.msra.mxu0 0.0
        %3624 = vmatprep.subr.mxu0 %v3407
        %3625 = vmatpush1.msra.mxu0 %v3406
        %3626 = vmatprep.subr.mxu0 %v3399
        %3627 = vmatpush1.msra.mxu0 %v3398
        %3628 = vmatprep.subr.mxu0 %v3391
        %3629 = vmatpush1.msra.mxu0 %v3390
        %3630 = vmatprep.subr.mxu0 %v3383
        %3631 = vmatpush1.msra.mxu0 %v3382
        %3632 = vmatprep.subr.mxu0 0.0
        %3633 = vmatpush2.msra.mxu0 0.0
        %3634 = vmatprep.subr.mxu0 0.0
        %3635 = vmatpush2.msra.mxu0 0.0
        %3636 = vmatprep.subr.mxu0 0.0
        %3637 = vmatpush2.msra.mxu0 0.0
        %3638 = vmatprep.subr.mxu0 0.0
        %3639 = vmatpush2.msra.mxu0 0.0
        %3640 = vmatprep.subr.mxu0 0.0
        %3641 = vmatpush2.msra.mxu0 0.0
        %3642 = vmatprep.subr.mxu0 0.0
        %3643 = vmatpush2.msra.mxu0 0.0
        %3644 = vmatprep.subr.mxu0 0.0
        %3645 = vmatpush2.msra.mxu0 0.0
        %3646 = vmatprep.subr.mxu0 0.0
        %3647 = vmatpush2.msra.mxu0 0.0
        %3648 = vmatprep.subr.mxu0 0.0
        %3649 = vmatpush2.msra.mxu0 0.0
        %3650 = vmatprep.subr.mxu0 0.0
        %3651 = vmatpush2.msra.mxu0 0.0
        %3652 = vmatprep.subr.mxu0 0.0
        %3653 = vmatpush2.msra.mxu0 0.0
        %3654 = vmatprep.subr.mxu0 0.0
        %3655 = vmatpush2.msra.mxu0 0.0
        %3656 = vmatprep.subr.mxu0 0.0
        %3657 = vmatpush2.msra.mxu0 0.0
        %3658 = vmatprep.subr.mxu0 0.0
        %3659 = vmatpush2.msra.mxu0 0.0
        %3660 = vmatprep.subr.mxu0 0.0
        %3661 = vmatpush2.msra.mxu0 0.0
        %3662 = vmatprep.subr.mxu0 0.0
        %3663 = vmatpush2.msra.mxu0 0.0
        %3664 = vmatprep.mubr.f32.mxu0 0.0
        %3665 = vmatmul.mubr.f32.gmra.mxu0 %v3411
        %v3666 = vpop.f32.mrf.mxu0
        %v3667 = vadd.f32 0.0, %v3666
        %v3668 = vpop.f32.mrf.mxu0
        %v3669 = vadd.f32 0.0, %v3668
        %3670 = vmatprep.mubr.f32.mxu0 0.0
        %3671 = vmatmul.mubr.f32.gmra.mxu0 %v3414
        %v3672 = vpop.f32.mrf.mxu0
        %v3673 = vadd.f32 0.0, %v3672
        %v3674 = vpop.f32.mrf.mxu0
        %v3675 = vadd.f32 0.0, %v3674
        %3676 = vmatprep.mubr.f32.mxu0 0.0
        %3677 = vmatmul.mubr.f32.gmra.mxu0 %v3417
        %v3678 = vpop.f32.mrf.mxu0
        %v3679 = vadd.f32 0.0, %v3678
        %v3680 = vpop.f32.mrf.mxu0
        %v3681 = vadd.f32 0.0, %v3680
        %3682 = vmatprep.mubr.f32.mxu0 0.0
        %3683 = vmatmul.mubr.f32.gmra.mxu0 %v3420
        %v3684 = vpop.f32.mrf.mxu0
        %v3685 = vadd.f32 0.0, %v3684
        %v3686 = vpop.f32.mrf.mxu0
        %v3687 = vadd.f32 0.0, %v3686
        %3688 = vdwg.mxu0
        %3689 = vmatprep.subr.mxu0 0.0
        %3690 = vmatpush1.msra.mxu0 0.0
        %3691 = vmatprep.subr.mxu0 0.0
        %3692 = vmatpush1.msra.mxu0 0.0
        %3693 = vmatprep.subr.mxu0 0.0
        %3694 = vmatpush1.msra.mxu0 0.0
        %3695 = vmatprep.subr.mxu0 0.0
        %3696 = vmatpush1.msra.mxu0 0.0
        %3697 = vmatprep.subr.mxu0 0.0
        %3698 = vmatpush1.msra.mxu0 0.0
        %3699 = vmatprep.subr.mxu0 0.0
        %3700 = vmatpush1.msra.mxu0 0.0
        %3701 = vmatprep.subr.mxu0 0.0
        %3702 = vmatpush1.msra.mxu0 0.0
        %3703 = vmatprep.subr.mxu0 0.0
        %3704 = vmatpush1.msra.mxu0 0.0
        %3705 = vmatprep.subr.mxu0 0.0
        %3706 = vmatpush1.msra.mxu0 0.0
        %3707 = vmatprep.subr.mxu0 0.0
        %3708 = vmatpush1.msra.mxu0 0.0
        %3709 = vmatprep.subr.mxu0 0.0
        %3710 = vmatpush1.msra.mxu0 0.0
        %3711 = vmatprep.subr.mxu0 0.0
        %3712 = vmatpush1.msra.mxu0 0.0
        %3713 = vmatprep.subr.mxu0 %v3409
        %3714 = vmatpush1.msra.mxu0 %v3408
        %3715 = vmatprep.subr.mxu0 %v3401
        %3716 = vmatpush1.msra.mxu0 %v3400
        %3717 = vmatprep.subr.mxu0 %v3393
        %3718 = vmatpush1.msra.mxu0 %v3392
        %3719 = vmatprep.subr.mxu0 %v3385
        %3720 = vmatpush1.msra.mxu0 %v3384
        %3721 = vmatprep.subr.mxu0 0.0
        %3722 = vmatpush2.msra.mxu0 0.0
        %3723 = vmatprep.subr.mxu0 0.0
        %3724 = vmatpush2.msra.mxu0 0.0
        %3725 = vmatprep.subr.mxu0 0.0
        %3726 = vmatpush2.msra.mxu0 0.0
        %3727 = vmatprep.subr.mxu0 0.0
        %3728 = vmatpush2.msra.mxu0 0.0
        %3729 = vmatprep.subr.mxu0 0.0
        %3730 = vmatpush2.msra.mxu0 0.0
        %3731 = vmatprep.subr.mxu0 0.0
        %3732 = vmatpush2.msra.mxu0 0.0
        %3733 = vmatprep.subr.mxu0 0.0
        %3734 = vmatpush2.msra.mxu0 0.0
        %3735 = vmatprep.subr.mxu0 0.0
        %3736 = vmatpush2.msra.mxu0 0.0
        %3737 = vmatprep.subr.mxu0 0.0
        %3738 = vmatpush2.msra.mxu0 0.0
        %3739 = vmatprep.subr.mxu0 0.0
        %3740 = vmatpush2.msra.mxu0 0.0
        %3741 = vmatprep.subr.mxu0 0.0
        %3742 = vmatpush2.msra.mxu0 0.0
        %3743 = vmatprep.subr.mxu0 0.0
        %3744 = vmatpush2.msra.mxu0 0.0
        %3745 = vmatprep.subr.mxu0 0.0
        %3746 = vmatpush2.msra.mxu0 0.0
        %3747 = vmatprep.subr.mxu0 0.0
        %3748 = vmatpush2.msra.mxu0 0.0
        %3749 = vmatprep.subr.mxu0 0.0
        %3750 = vmatpush2.msra.mxu0 0.0
        %3751 = vmatprep.subr.mxu0 0.0
        %3752 = vmatpush2.msra.mxu0 0.0
        %3753 = vmatprep.mubr.f32.mxu0 0.0
        %3754 = vmatmul.mubr.f32.gmra.mxu0 %v3411
        %v3755 = vpop.f32.mrf.mxu0
        %v3756 = vadd.f32 0.0, %v3755
        %v3757 = vpop.f32.mrf.mxu0
        %v3758 = vadd.f32 0.0, %v3757
        %3759 = vmatprep.mubr.f32.mxu0 0.0
        %3760 = vmatmul.mubr.f32.gmra.mxu0 %v3414
        %v3761 = vpop.f32.mrf.mxu0
        %v3762 = vadd.f32 0.0, %v3761
        %v3763 = vpop.f32.mrf.mxu0
        %v3764 = vadd.f32 0.0, %v3763
        %3765 = vmatprep.mubr.f32.mxu0 0.0
        %3766 = vmatmul.mubr.f32.gmra.mxu0 %v3417
        %v3767 = vpop.f32.mrf.mxu0
        %v3768 = vadd.f32 0.0, %v3767
        %v3769 = vpop.f32.mrf.mxu0
        %v3770 = vadd.f32 0.0, %v3769
        %3771 = vmatprep.mubr.f32.mxu0 0.0
        %3772 = vmatmul.mubr.f32.gmra.mxu0 %v3420
        %v3773 = vpop.f32.mrf.mxu0
        %v3774 = vadd.f32 0.0, %v3773
        %v3775 = vpop.f32.mrf.mxu0
        %v3776 = vadd.f32 0.0, %v3775
        %3777 = vdwg.mxu0
        %v3778 = vld [vmem:[%s19] sm:$0xff]
        %v3779 = vld [vmem:[%s19 + $0x8] sm:$0xff]
        %v3780 = vld [vmem:[%s19 + $0x10] sm:$0xff]
        %v3781 = vld [vmem:[%s19 + $0x18] sm:$0xff]
        %v3782 = vld [vmem:[%s19 + $0x20] sm:$0xff]
        %v3783 = vld [vmem:[%s19 + $0x28] sm:$0xff]
        %v3784 = vld [vmem:[%s19 + $0x30] sm:$0xff]
        %v3785 = vld [vmem:[%s19 + $0x38] sm:$0xff]
        %v3786 = vld [vmem:[%s19 + $0x40] sm:$0xff]
        %v3787 = vld [vmem:[%s19 + $0x48] sm:$0xff]
        %v3788 = vld [vmem:[%s19 + $0x50] sm:$0xff]
        %v3789 = vld [vmem:[%s19 + $0x58] sm:$0xff]
        %v3790 = vld [vmem:[%s19 + $0x60] sm:$0xff]
        %v3791 = vld [vmem:[%s19 + $0x68] sm:$0xff]
        %v3792 = vld [vmem:[%s19 + $0x70] sm:$0xff]
        %v3793 = vld [vmem:[%s19 + $0x78] sm:$0xff]
        %v3794 = vld [vmem:[%s19 + $0x80] sm:$0xff]
        %v3795 = vld [vmem:[%s19 + $0x88] sm:$0xff]
        %v3796 = vld [vmem:[%s19 + $0x90] sm:$0xff]
        %v3797 = vld [vmem:[%s19 + $0x98] sm:$0xff]
        %v3798 = vld [vmem:[%s19 + $0xa0] sm:$0xff]
        %v3799 = vld [vmem:[%s19 + $0xa8] sm:$0xff]
        %v3800 = vld [vmem:[%s19 + $0xb0] sm:$0xff]
        %v3801 = vld [vmem:[%s19 + $0xb8] sm:$0xff]
        %v3802 = vld [vmem:[%s19 + $0xc0] sm:$0xff]
        %v3803 = vld [vmem:[%s19 + $0xc8] sm:$0xff]
        %v3804 = vld [vmem:[%s19 + $0xd0] sm:$0xff]
        %v3805 = vld [vmem:[%s19 + $0xd8] sm:$0xff]
        %v3806 = vld [vmem:[%s19 + $0xe0] sm:$0xff]
        %v3807 = vld [vmem:[%s19 + $0xe8] sm:$0xff]
        %v3808 = vld [vmem:[%s19 + $0xf0] sm:$0xff]
        %v3809 = vld [vmem:[%s19 + $0xf8] sm:$0xff]
        %v3810 = vmul.f32 %v3489, %v3778
        %v3811 = vmul.f32 %v3491, %v3779
        %v3812 = vmul.f32 %v3578, %v3780
        %v3813 = vmul.f32 %v3580, %v3781
        %v3814 = vmul.f32 %v3667, %v3782
        %v3815 = vmul.f32 %v3669, %v3783
        %v3816 = vmul.f32 %v3756, %v3784
        %v3817 = vmul.f32 %v3758, %v3785
        %v3818 = vmul.f32 %v3495, %v3786
        %v3819 = vmul.f32 %v3497, %v3787
        %v3820 = vmul.f32 %v3584, %v3788
        %v3821 = vmul.f32 %v3586, %v3789
        %v3822 = vmul.f32 %v3673, %v3790
        %v3823 = vmul.f32 %v3675, %v3791
        %v3824 = vmul.f32 %v3762, %v3792
        %v3825 = vmul.f32 %v3764, %v3793
        %v3826 = vmul.f32 %v3501, %v3794
        %v3827 = vmul.f32 %v3503, %v3795
        %v3828 = vmul.f32 %v3590, %v3796
        %v3829 = vmul.f32 %v3592, %v3797
        %v3830 = vmul.f32 %v3679, %v3798
        %v3831 = vmul.f32 %v3681, %v3799
        %v3832 = vmul.f32 %v3768, %v3800
        %v3833 = vmul.f32 %v3770, %v3801
        %v3834 = vmul.f32 %v3507, %v3802
        %v3835 = vmul.f32 %v3509, %v3803
        %v3836 = vmul.f32 %v3596, %v3804
        %v3837 = vmul.f32 %v3598, %v3805
        %v3838 = vmul.f32 %v3685, %v3806
        %v3839 = vmul.f32 %v3687, %v3807
        %v3840 = vmul.f32 %v3774, %v3808
        %v3841 = vmul.f32 %v3776, %v3809
        %v3842 = vadd.f32 %v3810, %v3818
        %v3843 = vadd.f32 %v3842, %v3826
        %v3844 = vadd.f32 %v3843, %v3834
        %v3845 = vrot.slane %v3844, 4
        %v3846 = vadd.f32 %v3844, %v3845
        %v3847 = vrot.slane %v3846, 2
        %v3848 = vadd.f32 %v3846, %v3847
        %v3849 = vrot.slane %v3848, 1
        %v3850 = vadd.f32 %v3848, %v3849
        %v3851 = vadd.f32 %v3811, %v3819
        %v3852 = vadd.f32 %v3851, %v3827
        %v3853 = vadd.f32 %v3852, %v3835
        %v3854 = vrot.slane %v3853, 4
        %v3855 = vadd.f32 %v3853, %v3854
        %v3856 = vrot.slane %v3855, 2
        %v3857 = vadd.f32 %v3855, %v3856
        %v3858 = vrot.slane %v3857, 1
        %v3859 = vadd.f32 %v3857, %v3858
        %v3860 = vadd.f32 %v3812, %v3820
        %v3861 = vadd.f32 %v3860, %v3828
        %v3862 = vadd.f32 %v3861, %v3836
        %v3863 = vrot.slane %v3862, 4
        %v3864 = vadd.f32 %v3862, %v3863
        %v3865 = vrot.slane %v3864, 2
        %v3866 = vadd.f32 %v3864, %v3865
        %v3867 = vrot.slane %v3866, 1
        %v3868 = vadd.f32 %v3866, %v3867
        %v3869 = vadd.f32 %v3813, %v3821
        %v3870 = vadd.f32 %v3869, %v3829
        %v3871 = vadd.f32 %v3870, %v3837
        %v3872 = vrot.slane %v3871, 4
        %v3873 = vadd.f32 %v3871, %v3872
        %v3874 = vrot.slane %v3873, 2
        %v3875 = vadd.f32 %v3873, %v3874
        %v3876 = vrot.slane %v3875, 1
        %v3877 = vadd.f32 %v3875, %v3876
        %v3878 = vadd.f32 %v3814, %v3822
        %v3879 = vadd.f32 %v3878, %v3830
        %v3880 = vadd.f32 %v3879, %v3838
        %v3881 = vrot.slane %v3880, 4
        %v3882 = vadd.f32 %v3880, %v3881
        %v3883 = vrot.slane %v3882, 2
        %v3884 = vadd.f32 %v3882, %v3883
        %v3885 = vrot.slane %v3884, 1
        %v3886 = vadd.f32 %v3884, %v3885
        %v3887 = vadd.f32 %v3815, %v3823
        %v3888 = vadd.f32 %v3887, %v3831
        %v3889 = vadd.f32 %v3888, %v3839
        %v3890 = vrot.slane %v3889, 4
        %v3891 = vadd.f32 %v3889, %v3890
        %v3892 = vrot.slane %v3891, 2
        %v3893 = vadd.f32 %v3891, %v3892
        %v3894 = vrot.slane %v3893, 1
        %v3895 = vadd.f32 %v3893, %v3894
        %v3896 = vadd.f32 %v3816, %v3824
        %v3897 = vadd.f32 %v3896, %v3832
        %v3898 = vadd.f32 %v3897, %v3840
        %v3899 = vrot.slane %v3898, 4
        %v3900 = vadd.f32 %v3898, %v3899
        %v3901 = vrot.slane %v3900, 2
        %v3902 = vadd.f32 %v3900, %v3901
        %v3903 = vrot.slane %v3902, 1
        %v3904 = vadd.f32 %v3902, %v3903
        %v3905 = vadd.f32 %v3817, %v3825
        %v3906 = vadd.f32 %v3905, %v3833
        %v3907 = vadd.f32 %v3906, %v3841
        %v3908 = vrot.slane %v3907, 4
        %v3909 = vadd.f32 %v3907, %v3908
        %v3910 = vrot.slane %v3909, 2
        %v3911 = vadd.f32 %v3909, %v3910
        %v3912 = vrot.slane %v3911, 1
        %v3913 = vadd.f32 %v3911, %v3912
        %v3914 = vld [vmem:[%s20] sm:$0xff]
        %v3915 = vld [vmem:[%s20 + $0x8] sm:$0xff]
        %v3916 = vld [vmem:[%s20 + $0x10] sm:$0xff]
        %v3917 = vld [vmem:[%s20 + $0x18] sm:$0xff]
        %v3918 = vld [vmem:[%s20 + $0x20] sm:$0xff]
        %v3919 = vld [vmem:[%s20 + $0x28] sm:$0xff]
        %v3920 = vld [vmem:[%s20 + $0x30] sm:$0xff]
        %v3921 = vld [vmem:[%s20 + $0x38] sm:$0xff]
        %v3922 = vld [vmem:[%s20 + $0x40] sm:$0xff]
        %v3923 = vld [vmem:[%s20 + $0x48] sm:$0xff]
        %v3924 = vld [vmem:[%s20 + $0x50] sm:$0xff]
        %v3925 = vld [vmem:[%s20 + $0x58] sm:$0xff]
        %v3926 = vld [vmem:[%s20 + $0x60] sm:$0xff]
        %v3927 = vld [vmem:[%s20 + $0x68] sm:$0xff]
        %v3928 = vld [vmem:[%s20 + $0x70] sm:$0xff]
        %v3929 = vld [vmem:[%s20 + $0x78] sm:$0xff]
        %v3930 = vld [vmem:[%s20 + $0x80] sm:$0xff]
        %v3931 = vld [vmem:[%s20 + $0x88] sm:$0xff]
        %v3932 = vld [vmem:[%s20 + $0x90] sm:$0xff]
        %v3933 = vld [vmem:[%s20 + $0x98] sm:$0xff]
        %v3934 = vld [vmem:[%s20 + $0xa0] sm:$0xff]
        %v3935 = vld [vmem:[%s20 + $0xa8] sm:$0xff]
        %v3936 = vld [vmem:[%s20 + $0xb0] sm:$0xff]
        %v3937 = vld [vmem:[%s20 + $0xb8] sm:$0xff]
        %v3938 = vld [vmem:[%s20 + $0xc0] sm:$0xff]
        %v3939 = vld [vmem:[%s20 + $0xc8] sm:$0xff]
        %v3940 = vld [vmem:[%s20 + $0xd0] sm:$0xff]
        %v3941 = vld [vmem:[%s20 + $0xd8] sm:$0xff]
        %v3942 = vld [vmem:[%s20 + $0xe0] sm:$0xff]
        %v3943 = vld [vmem:[%s20 + $0xe8] sm:$0xff]
        %v3944 = vld [vmem:[%s20 + $0xf0] sm:$0xff]
        %v3945 = vld [vmem:[%s20 + $0xf8] sm:$0xff]
        %v3946 = vld [vmem:[%s20 + $0x100] sm:$0xff]
        %v3947 = vld [vmem:[%s20 + $0x108] sm:$0xff]
        %v3948 = vld [vmem:[%s20 + $0x110] sm:$0xff]
        %v3949 = vld [vmem:[%s20 + $0x118] sm:$0xff]
        %v3950 = vld [vmem:[%s20 + $0x120] sm:$0xff]
        %v3951 = vld [vmem:[%s20 + $0x128] sm:$0xff]
        %v3952 = vld [vmem:[%s20 + $0x130] sm:$0xff]
        %v3953 = vld [vmem:[%s20 + $0x138] sm:$0xff]
        %v3954 = vld [vmem:[%s20 + $0x140] sm:$0xff]
        %v3955 = vld [vmem:[%s20 + $0x148] sm:$0xff]
        %v3956 = vld [vmem:[%s20 + $0x150] sm:$0xff]
        %v3957 = vld [vmem:[%s20 + $0x158] sm:$0xff]
        %v3958 = vld [vmem:[%s20 + $0x160] sm:$0xff]
        %v3959 = vld [vmem:[%s20 + $0x168] sm:$0xff]
        %v3960 = vld [vmem:[%s20 + $0x170] sm:$0xff]
        %v3961 = vld [vmem:[%s20 + $0x178] sm:$0xff]
        %v3962 = vld [vmem:[%s20 + $0x180] sm:$0xff]
        %v3963 = vld [vmem:[%s20 + $0x188] sm:$0xff]
        %v3964 = vld [vmem:[%s20 + $0x190] sm:$0xff]
        %v3965 = vld [vmem:[%s20 + $0x198] sm:$0xff]
        %v3966 = vld [vmem:[%s20 + $0x1a0] sm:$0xff]
        %v3967 = vld [vmem:[%s20 + $0x1a8] sm:$0xff]
        %v3968 = vld [vmem:[%s20 + $0x1b0] sm:$0xff]
        %v3969 = vld [vmem:[%s20 + $0x1b8] sm:$0xff]
        %v3970 = vld [vmem:[%s20 + $0x1c0] sm:$0xff]
        %v3971 = vld [vmem:[%s20 + $0x1c8] sm:$0xff]
        %v3972 = vld [vmem:[%s20 + $0x1d0] sm:$0xff]
        %v3973 = vld [vmem:[%s20 + $0x1d8] sm:$0xff]
        %v3974 = vld [vmem:[%s20 + $0x1e0] sm:$0xff]
        %v3975 = vld [vmem:[%s20 + $0x1e8] sm:$0xff]
        %v3976 = vld [vmem:[%s20 + $0x1f0] sm:$0xff]
        %v3977 = vld [vmem:[%s20 + $0x1f8] sm:$0xff]
        %v3978 = vld [vmem:[%s20 + $0x200] sm:$0xff]
        %v3979 = vld [vmem:[%s20 + $0x208] sm:$0xff]
        %v3980 = vld [vmem:[%s20 + $0x210] sm:$0xff]
        %v3981 = vld [vmem:[%s20 + $0x218] sm:$0xff]
        %v3982 = vld [vmem:[%s20 + $0x220] sm:$0xff]
        %v3983 = vld [vmem:[%s20 + $0x228] sm:$0xff]
        %v3984 = vld [vmem:[%s20 + $0x230] sm:$0xff]
        %v3985 = vld [vmem:[%s20 + $0x238] sm:$0xff]
        %v3986 = vld [vmem:[%s20 + $0x240] sm:$0xff]
        %v3987 = vld [vmem:[%s20 + $0x248] sm:$0xff]
        %v3988 = vld [vmem:[%s20 + $0x250] sm:$0xff]
        %v3989 = vld [vmem:[%s20 + $0x258] sm:$0xff]
        %v3990 = vld [vmem:[%s20 + $0x260] sm:$0xff]
        %v3991 = vld [vmem:[%s20 + $0x268] sm:$0xff]
        %v3992 = vld [vmem:[%s20 + $0x270] sm:$0xff]
        %v3993 = vld [vmem:[%s20 + $0x278] sm:$0xff]
        %v3994 = vld [vmem:[%s20 + $0x280] sm:$0xff]
        %v3995 = vld [vmem:[%s20 + $0x288] sm:$0xff]
        %v3996 = vld [vmem:[%s20 + $0x290] sm:$0xff]
        %v3997 = vld [vmem:[%s20 + $0x298] sm:$0xff]
        %v3998 = vld [vmem:[%s20 + $0x2a0] sm:$0xff]
        %v3999 = vld [vmem:[%s20 + $0x2a8] sm:$0xff]
        %v4000 = vld [vmem:[%s20 + $0x2b0] sm:$0xff]
        %v4001 = vld [vmem:[%s20 + $0x2b8] sm:$0xff]
        %v4002 = vld [vmem:[%s20 + $0x2c0] sm:$0xff]
        %v4003 = vld [vmem:[%s20 + $0x2c8] sm:$0xff]
        %v4004 = vld [vmem:[%s20 + $0x2d0] sm:$0xff]
        %v4005 = vld [vmem:[%s20 + $0x2d8] sm:$0xff]
        %v4006 = vld [vmem:[%s20 + $0x2e0] sm:$0xff]
        %v4007 = vld [vmem:[%s20 + $0x2e8] sm:$0xff]
        %v4008 = vld [vmem:[%s20 + $0x2f0] sm:$0xff]
        %v4009 = vld [vmem:[%s20 + $0x2f8] sm:$0xff]
        %v4010 = vld [vmem:[%s20 + $0x300] sm:$0xff]
        %v4011 = vld [vmem:[%s20 + $0x308] sm:$0xff]
        %v4012 = vld [vmem:[%s20 + $0x310] sm:$0xff]
        %v4013 = vld [vmem:[%s20 + $0x318] sm:$0xff]
        %v4014 = vld [vmem:[%s20 + $0x320] sm:$0xff]
        %v4015 = vld [vmem:[%s20 + $0x328] sm:$0xff]
        %v4016 = vld [vmem:[%s20 + $0x330] sm:$0xff]
        %v4017 = vld [vmem:[%s20 + $0x338] sm:$0xff]
        %v4018 = vld [vmem:[%s20 + $0x340] sm:$0xff]
        %v4019 = vld [vmem:[%s20 + $0x348] sm:$0xff]
        %v4020 = vld [vmem:[%s20 + $0x350] sm:$0xff]
        %v4021 = vld [vmem:[%s20 + $0x358] sm:$0xff]
        %v4022 = vld [vmem:[%s20 + $0x360] sm:$0xff]
        %v4023 = vld [vmem:[%s20 + $0x368] sm:$0xff]
        %v4024 = vld [vmem:[%s20 + $0x370] sm:$0xff]
        %v4025 = vld [vmem:[%s20 + $0x378] sm:$0xff]
        %v4026 = vld [vmem:[%s20 + $0x380] sm:$0xff]
        %v4027 = vld [vmem:[%s20 + $0x388] sm:$0xff]
        %v4028 = vld [vmem:[%s20 + $0x390] sm:$0xff]
        %v4029 = vld [vmem:[%s20 + $0x398] sm:$0xff]
        %v4030 = vld [vmem:[%s20 + $0x3a0] sm:$0xff]
        %v4031 = vld [vmem:[%s20 + $0x3a8] sm:$0xff]
        %v4032 = vld [vmem:[%s20 + $0x3b0] sm:$0xff]
        %v4033 = vld [vmem:[%s20 + $0x3b8] sm:$0xff]
        %v4034 = vld [vmem:[%s20 + $0x3c0] sm:$0xff]
        %v4035 = vld [vmem:[%s20 + $0x3c8] sm:$0xff]
        %v4036 = vld [vmem:[%s20 + $0x3d0] sm:$0xff]
        %v4037 = vld [vmem:[%s20 + $0x3d8] sm:$0xff]
        %v4038 = vld [vmem:[%s20 + $0x3e0] sm:$0xff]
        %v4039 = vld [vmem:[%s20 + $0x3e8] sm:$0xff]
        %v4040 = vld [vmem:[%s20 + $0x3f0] sm:$0xff]
        %v4041 = vld [vmem:[%s20 + $0x3f8] sm:$0xff]
        %v4042 = vld [vmem:[%s21] sm:$0x1]
        %4043 = vmatprep.subr.mxu0 0.0
        %4044 = vmatpush1.msra.mxu0 %v3929
        %4045 = vmatprep.subr.mxu0 0.0
        %4046 = vmatpush1.msra.mxu0 %v3928
        %4047 = vmatprep.subr.mxu0 0.0
        %4048 = vmatpush1.msra.mxu0 %v3927
        %4049 = vmatprep.subr.mxu0 0.0
        %4050 = vmatpush1.msra.mxu0 %v3926
        %4051 = vmatprep.subr.mxu0 0.0
        %4052 = vmatpush1.msra.mxu0 %v3925
        %4053 = vmatprep.subr.mxu0 0.0
        %4054 = vmatpush1.msra.mxu0 %v3924
        %4055 = vmatprep.subr.mxu0 0.0
        %4056 = vmatpush1.msra.mxu0 %v3923
        %4057 = vmatprep.subr.mxu0 0.0
        %4058 = vmatpush1.msra.mxu0 %v3922
        %4059 = vmatprep.subr.mxu0 0.0
        %4060 = vmatpush1.msra.mxu0 %v3921
        %4061 = vmatprep.subr.mxu0 0.0
        %4062 = vmatpush1.msra.mxu0 %v3920
        %4063 = vmatprep.subr.mxu0 0.0
        %4064 = vmatpush1.msra.mxu0 %v3919
        %4065 = vmatprep.subr.mxu0 0.0
        %4066 = vmatpush1.msra.mxu0 %v3918
        %4067 = vmatprep.subr.mxu0 0.0
        %4068 = vmatpush1.msra.mxu0 %v3917
        %4069 = vmatprep.subr.mxu0 0.0
        %4070 = vmatpush1.msra.mxu0 %v3916
        %4071 = vmatprep.subr.mxu0 0.0
        %4072 = vmatpush1.msra.mxu0 %v3915
        %4073 = vmatprep.subr.mxu0 0.0
        %4074 = vmatpush1.msra.mxu0 %v3914
        %4075 = vmatprep.subr.mxu0 0.0
        %4076 = vmatpush2.msra.mxu0 %v3945
        %4077 = vmatprep.subr.mxu0 0.0
        %4078 = vmatpush2.msra.mxu0 %v3944
        %4079 = vmatprep.subr.mxu0 0.0
        %4080 = vmatpush2.msra.mxu0 %v3943
        %4081 = vmatprep.subr.mxu0 0.0
        %4082 = vmatpush2.msra.mxu0 %v3942
        %4083 = vmatprep.subr.mxu0 0.0
        %4084 = vmatpush2.msra.mxu0 %v3941
        %4085 = vmatprep.subr.mxu0 0.0
        %4086 = vmatpush2.msra.mxu0 %v3940
        %4087 = vmatprep.subr.mxu0 0.0
        %4088 = vmatpush2.msra.mxu0 %v3939
        %4089 = vmatprep.subr.mxu0 0.0
        %4090 = vmatpush2.msra.mxu0 %v3938
        %4091 = vmatprep.subr.mxu0 0.0
        %4092 = vmatpush2.msra.mxu0 %v3937
        %4093 = vmatprep.subr.mxu0 0.0
        %4094 = vmatpush2.msra.mxu0 %v3936
        %4095 = vmatprep.subr.mxu0 0.0
        %4096 = vmatpush2.msra.mxu0 %v3935
        %4097 = vmatprep.subr.mxu0 0.0
        %4098 = vmatpush2.msra.mxu0 %v3934
        %4099 = vmatprep.subr.mxu0 0.0
        %4100 = vmatpush2.msra.mxu0 %v3933
        %4101 = vmatprep.subr.mxu0 0.0
        %4102 = vmatpush2.msra.mxu0 %v3932
        %4103 = vmatprep.subr.mxu0 0.0
        %4104 = vmatpush2.msra.mxu0 %v3931
        %4105 = vmatprep.subr.mxu0 0.0
        %4106 = vmatpush2.msra.mxu0 %v3930
        %4107 = vmatprep.mubr.f32.mxu0 %v3859
        %4108 = vmatmul.mubr.f32.gmra.mxu0 %v3850
        %v4109 = vpop.f32.mrf.mxu0
        %v4110 = vadd.f32 %v4042, %v4109
        %v4111 = vpop.f32.mrf.mxu0
        %4112 = vdwg.mxu0
        %4113 = vmatprep.subr.mxu0 0.0
        %4114 = vmatpush1.msra.mxu0 %v3961
        %4115 = vmatprep.subr.mxu0 0.0
        %4116 = vmatpush1.msra.mxu0 %v3960
        %4117 = vmatprep.subr.mxu0 0.0
        %4118 = vmatpush1.msra.mxu0 %v3959
        %4119 = vmatprep.subr.mxu0 0.0
        %4120 = vmatpush1.msra.mxu0 %v3958
        %4121 = vmatprep.subr.mxu0 0.0
        %4122 = vmatpush1.msra.mxu0 %v3957
        %4123 = vmatprep.subr.mxu0 0.0
        %4124 = vmatpush1.msra.mxu0 %v3956
        %4125 = vmatprep.subr.mxu0 0.0
        %4126 = vmatpush1.msra.mxu0 %v3955
        %4127 = vmatprep.subr.mxu0 0.0
        %4128 = vmatpush1.msra.mxu0 %v3954
        %4129 = vmatprep.subr.mxu0 0.0
        %4130 = vmatpush1.msra.mxu0 %v3953
        %4131 = vmatprep.subr.mxu0 0.0
        %4132 = vmatpush1.msra.mxu0 %v3952
        %4133 = vmatprep.subr.mxu0 0.0
        %4134 = vmatpush1.msra.mxu0 %v3951
        %4135 = vmatprep.subr.mxu0 0.0
        %4136 = vmatpush1.msra.mxu0 %v3950
        %4137 = vmatprep.subr.mxu0 0.0
        %4138 = vmatpush1.msra.mxu0 %v3949
        %4139 = vmatprep.subr.mxu0 0.0
        %4140 = vmatpush1.msra.mxu0 %v3948
        %4141 = vmatprep.subr.mxu0 0.0
        %4142 = vmatpush1.msra.mxu0 %v3947
        %4143 = vmatprep.subr.mxu0 0.0
        %4144 = vmatpush1.msra.mxu0 %v3946
        %4145 = vmatprep.subr.mxu0 0.0
        %4146 = vmatpush2.msra.mxu0 %v3977
        %4147 = vmatprep.subr.mxu0 0.0
        %4148 = vmatpush2.msra.mxu0 %v3976
        %4149 = vmatprep.subr.mxu0 0.0
        %4150 = vmatpush2.msra.mxu0 %v3975
        %4151 = vmatprep.subr.mxu0 0.0
        %4152 = vmatpush2.msra.mxu0 %v3974
        %4153 = vmatprep.subr.mxu0 0.0
        %4154 = vmatpush2.msra.mxu0 %v3973
        %4155 = vmatprep.subr.mxu0 0.0
        %4156 = vmatpush2.msra.mxu0 %v3972
        %4157 = vmatprep.subr.mxu0 0.0
        %4158 = vmatpush2.msra.mxu0 %v3971
        %4159 = vmatprep.subr.mxu0 0.0
        %4160 = vmatpush2.msra.mxu0 %v3970
        %4161 = vmatprep.subr.mxu0 0.0
        %4162 = vmatpush2.msra.mxu0 %v3969
        %4163 = vmatprep.subr.mxu0 0.0
        %4164 = vmatpush2.msra.mxu0 %v3968
        %4165 = vmatprep.subr.mxu0 0.0
        %4166 = vmatpush2.msra.mxu0 %v3967
        %4167 = vmatprep.subr.mxu0 0.0
        %4168 = vmatpush2.msra.mxu0 %v3966
        %4169 = vmatprep.subr.mxu0 0.0
        %4170 = vmatpush2.msra.mxu0 %v3965
        %4171 = vmatprep.subr.mxu0 0.0
        %4172 = vmatpush2.msra.mxu0 %v3964
        %4173 = vmatprep.subr.mxu0 0.0
        %4174 = vmatpush2.msra.mxu0 %v3963
        %4175 = vmatprep.subr.mxu0 0.0
        %4176 = vmatpush2.msra.mxu0 %v3962
        %4177 = vmatprep.mubr.f32.mxu0 %v3877
        %4178 = vmatmul.mubr.f32.gmra.mxu0 %v3868
        %v4179 = vpop.f32.mrf.mxu0
        %v4180 = vadd.f32 %v4110, %v4179
        %v4181 = vpop.f32.mrf.mxu0
        %4182 = vdwg.mxu0
        %4183 = vmatprep.subr.mxu0 0.0
        %4184 = vmatpush1.msra.mxu0 %v3993
        %4185 = vmatprep.subr.mxu0 0.0
        %4186 = vmatpush1.msra.mxu0 %v3992
        %4187 = vmatprep.subr.mxu0 0.0
        %4188 = vmatpush1.msra.mxu0 %v3991
        %4189 = vmatprep.subr.mxu0 0.0
        %4190 = vmatpush1.msra.mxu0 %v3990
        %4191 = vmatprep.subr.mxu0 0.0
        %4192 = vmatpush1.msra.mxu0 %v3989
        %4193 = vmatprep.subr.mxu0 0.0
        %4194 = vmatpush1.msra.mxu0 %v3988
        %4195 = vmatprep.subr.mxu0 0.0
        %4196 = vmatpush1.msra.mxu0 %v3987
        %4197 = vmatprep.subr.mxu0 0.0
        %4198 = vmatpush1.msra.mxu0 %v3986
        %4199 = vmatprep.subr.mxu0 0.0
        %4200 = vmatpush1.msra.mxu0 %v3985
        %4201 = vmatprep.subr.mxu0 0.0
        %4202 = vmatpush1.msra.mxu0 %v3984
        %4203 = vmatprep.subr.mxu0 0.0
        %4204 = vmatpush1.msra.mxu0 %v3983
        %4205 = vmatprep.subr.mxu0 0.0
        %4206 = vmatpush1.msra.mxu0 %v3982
        %4207 = vmatprep.subr.mxu0 0.0
        %4208 = vmatpush1.msra.mxu0 %v3981
        %4209 = vmatprep.subr.mxu0 0.0
        %4210 = vmatpush1.msra.mxu0 %v3980
        %4211 = vmatprep.subr.mxu0 0.0
        %4212 = vmatpush1.msra.mxu0 %v3979
        %4213 = vmatprep.subr.mxu0 0.0
        %4214 = vmatpush1.msra.mxu0 %v3978
        %4215 = vmatprep.subr.mxu0 0.0
        %4216 = vmatpush2.msra.mxu0 %v4009
        %4217 = vmatprep.subr.mxu0 0.0
        %4218 = vmatpush2.msra.mxu0 %v4008
        %4219 = vmatprep.subr.mxu0 0.0
        %4220 = vmatpush2.msra.mxu0 %v4007
        %4221 = vmatprep.subr.mxu0 0.0
        %4222 = vmatpush2.msra.mxu0 %v4006
        %4223 = vmatprep.subr.mxu0 0.0
        %4224 = vmatpush2.msra.mxu0 %v4005
        %4225 = vmatprep.subr.mxu0 0.0
        %4226 = vmatpush2.msra.mxu0 %v4004
        %4227 = vmatprep.subr.mxu0 0.0
        %4228 = vmatpush2.msra.mxu0 %v4003
        %4229 = vmatprep.subr.mxu0 0.0
        %4230 = vmatpush2.msra.mxu0 %v4002
        %4231 = vmatprep.subr.mxu0 0.0
        %4232 = vmatpush2.msra.mxu0 %v4001
        %4233 = vmatprep.subr.mxu0 0.0
        %4234 = vmatpush2.msra.mxu0 %v4000
        %4235 = vmatprep.subr.mxu0 0.0
        %4236 = vmatpush2.msra.mxu0 %v3999
        %4237 = vmatprep.subr.mxu0 0.0
        %4238 = vmatpush2.msra.mxu0 %v3998
        %4239 = vmatprep.subr.mxu0 0.0
        %4240 = vmatpush2.msra.mxu0 %v3997
        %4241 = vmatprep.subr.mxu0 0.0
        %4242 = vmatpush2.msra.mxu0 %v3996
        %4243 = vmatprep.subr.mxu0 0.0
        %4244 = vmatpush2.msra.mxu0 %v3995
        %4245 = vmatprep.subr.mxu0 0.0
        %4246 = vmatpush2.msra.mxu0 %v3994
        %4247 = vmatprep.mubr.f32.mxu0 %v3895
        %4248 = vmatmul.mubr.f32.gmra.mxu0 %v3886
        %v4249 = vpop.f32.mrf.mxu0
        %v4250 = vadd.f32 %v4180, %v4249
        %v4251 = vpop.f32.mrf.mxu0
        %4252 = vdwg.mxu0
        %4253 = vmatprep.subr.mxu0 0.0
        %4254 = vmatpush1.msra.mxu0 %v4025
        %4255 = vmatprep.subr.mxu0 0.0
        %4256 = vmatpush1.msra.mxu0 %v4024
        %4257 = vmatprep.subr.mxu0 0.0
        %4258 = vmatpush1.msra.mxu0 %v4023
        %4259 = vmatprep.subr.mxu0 0.0
        %4260 = vmatpush1.msra.mxu0 %v4022
        %4261 = vmatprep.subr.mxu0 0.0
        %4262 = vmatpush1.msra.mxu0 %v4021
        %4263 = vmatprep.subr.mxu0 0.0
        %4264 = vmatpush1.msra.mxu0 %v4020
        %4265 = vmatprep.subr.mxu0 0.0
        %4266 = vmatpush1.msra.mxu0 %v4019
        %4267 = vmatprep.subr.mxu0 0.0
        %4268 = vmatpush1.msra.mxu0 %v4018
        %4269 = vmatprep.subr.mxu0 0.0
        %4270 = vmatpush1.msra.mxu0 %v4017
        %4271 = vmatprep.subr.mxu0 0.0
        %4272 = vmatpush1.msra.mxu0 %v4016
        %4273 = vmatprep.subr.mxu0 0.0
        %4274 = vmatpush1.msra.mxu0 %v4015
        %4275 = vmatprep.subr.mxu0 0.0
        %4276 = vmatpush1.msra.mxu0 %v4014
        %4277 = vmatprep.subr.mxu0 0.0
        %4278 = vmatpush1.msra.mxu0 %v4013
        %4279 = vmatprep.subr.mxu0 0.0
        %4280 = vmatpush1.msra.mxu0 %v4012
        %4281 = vmatprep.subr.mxu0 0.0
        %4282 = vmatpush1.msra.mxu0 %v4011
        %4283 = vmatprep.subr.mxu0 0.0
        %4284 = vmatpush1.msra.mxu0 %v4010
        %4285 = vmatprep.subr.mxu0 0.0
        %4286 = vmatpush2.msra.mxu0 %v4041
        %4287 = vmatprep.subr.mxu0 0.0
        %4288 = vmatpush2.msra.mxu0 %v4040
        %4289 = vmatprep.subr.mxu0 0.0
        %4290 = vmatpush2.msra.mxu0 %v4039
        %4291 = vmatprep.subr.mxu0 0.0
        %4292 = vmatpush2.msra.mxu0 %v4038
        %4293 = vmatprep.subr.mxu0 0.0
        %4294 = vmatpush2.msra.mxu0 %v4037
        %4295 = vmatprep.subr.mxu0 0.0
        %4296 = vmatpush2.msra.mxu0 %v4036
        %4297 = vmatprep.subr.mxu0 0.0
        %4298 = vmatpush2.msra.mxu0 %v4035
        %4299 = vmatprep.subr.mxu0 0.0
        %4300 = vmatpush2.msra.mxu0 %v4034
        %4301 = vmatprep.subr.mxu0 0.0
        %4302 = vmatpush2.msra.mxu0 %v4033
        %4303 = vmatprep.subr.mxu0 0.0
        %4304 = vmatpush2.msra.mxu0 %v4032
        %4305 = vmatprep.subr.mxu0 0.0
        %4306 = vmatpush2.msra.mxu0 %v4031
        %4307 = vmatprep.subr.mxu0 0.0
        %4308 = vmatpush2.msra.mxu0 %v4030
        %4309 = vmatprep.subr.mxu0 0.0
        %4310 = vmatpush2.msra.mxu0 %v4029
        %4311 = vmatprep.subr.mxu0 0.0
        %4312 = vmatpush2.msra.mxu0 %v4028
        %4313 = vmatprep.subr.mxu0 0.0
        %4314 = vmatpush2.msra.mxu0 %v4027
        %4315 = vmatprep.subr.mxu0 0.0
        %4316 = vmatpush2.msra.mxu0 %v4026
        %4317 = vmatprep.mubr.f32.mxu0 %v3913
        %4318 = vmatmul.mubr.f32.gmra.mxu0 %v3904
        %v4319 = vpop.f32.mrf.mxu0
        %v4320 = vadd.f32 %v4250, %v4319
        %v4321 = vpop.f32.mrf.mxu0
        %4322 = vdwg.mxu0
        %v4323 = vld [vmem:[%s22] sm:$0xff]
        %v4324 = vld [vmem:[%s22 + $0x8] sm:$0xff]
        %v4325 = vld [vmem:[%s22 + $0x10] sm:$0xff]
        %v4326 = vld [vmem:[%s22 + $0x18] sm:$0x3f]
        %vm4327 = vcmask 244736
        %v4329 = vsel %vm4327, %v4320, 0
        %vm4331 = vcmask 1045504
        %v4333 = vsel %vm4331, %v4326, 0
        %4335 = vmatprep.subr.mxu0 0.0
        %4336 = vmatpush1.msra.mxu0 0.0
        %4337 = vmatprep.subr.mxu0 0.0
        %4338 = vmatpush1.msra.mxu0 0.0
        %4339 = vmatprep.subr.mxu0 0.0
        %4340 = vmatpush1.msra.mxu0 0.0
        %4341 = vmatprep.subr.mxu0 0.0
        %4342 = vmatpush1.msra.mxu0 0.0
        %4343 = vmatprep.subr.mxu0 0.0
        %4344 = vmatpush1.msra.mxu0 0.0
        %4345 = vmatprep.subr.mxu0 0.0
        %4346 = vmatpush1.msra.mxu0 0.0
        %4347 = vmatprep.subr.mxu0 0.0
        %4348 = vmatpush1.msra.mxu0 0.0
        %4349 = vmatprep.subr.mxu0 0.0
        %4350 = vmatpush1.msra.mxu0 0.0
        %4351 = vmatprep.subr.mxu0 0.0
        %4352 = vmatpush1.msra.mxu0 0.0
        %4353 = vmatprep.subr.mxu0 0.0
        %4354 = vmatpush1.msra.mxu0 0.0
        %4355 = vmatprep.subr.mxu0 0.0
        %4356 = vmatpush1.msra.mxu0 0.0
        %4357 = vmatprep.subr.mxu0 0.0
        %4358 = vmatpush1.msra.mxu0 0.0
        %4359 = vmatprep.subr.mxu0 0.0
        %4360 = vmatpush1.msra.mxu0 %v4333
        %4361 = vmatprep.subr.mxu0 0.0
        %4362 = vmatpush1.msra.mxu0 %v4325
        %4363 = vmatprep.subr.mxu0 0.0
        %4364 = vmatpush1.msra.mxu0 %v4324
        %4365 = vmatprep.subr.mxu0 0.0
        %4366 = vmatpush1.msra.mxu0 %v4323
        %4367 = vmatprep.subr.mxu0 0.0
        %4368 = vmatpush2.msra.mxu0 0.0
        %4369 = vmatprep.subr.mxu0 0.0
        %4370 = vmatpush2.msra.mxu0 0.0
        %4371 = vmatprep.subr.mxu0 0.0
        %4372 = vmatpush2.msra.mxu0 0.0
        %4373 = vmatprep.subr.mxu0 0.0
        %4374 = vmatpush2.msra.mxu0 0.0
        %4375 = vmatprep.subr.mxu0 0.0
        %4376 = vmatpush2.msra.mxu0 0.0
        %4377 = vmatprep.subr.mxu0 0.0
        %4378 = vmatpush2.msra.mxu0 0.0
        %4379 = vmatprep.subr.mxu0 0.0
        %4380 = vmatpush2.msra.mxu0 0.0
        %4381 = vmatprep.subr.mxu0 0.0
        %4382 = vmatpush2.msra.mxu0 0.0
        %4383 = vmatprep.subr.mxu0 0.0
        %4384 = vmatpush2.msra.mxu0 0.0
        %4385 = vmatprep.subr.mxu0 0.0
        %4386 = vmatpush2.msra.mxu0 0.0
        %4387 = vmatprep.subr.mxu0 0.0
        %4388 = vmatpush2.msra.mxu0 0.0
        %4389 = vmatprep.subr.mxu0 0.0
        %4390 = vmatpush2.msra.mxu0 0.0
        %4391 = vmatprep.subr.mxu0 0.0
        %4392 = vmatpush2.msra.mxu0 0.0
        %4393 = vmatprep.subr.mxu0 0.0
        %4394 = vmatpush2.msra.mxu0 0.0
        %4395 = vmatprep.subr.mxu0 0.0
        %4396 = vmatpush2.msra.mxu0 0.0
        %4397 = vmatprep.subr.mxu0 0.0
        %4398 = vmatpush2.msra.mxu0 0.0
        %4399 = vmatprep.mubr.f32.mxu0 0.0
        %4400 = vmatmul.mubr.f32.gmra.mxu0 %v4329
        %v4401 = vpop.f32.mrf.mxu0
        %v4402 = vadd.f32 0.0, %v4401
        %v4403 = vpop.f32.mrf.mxu0
        %4404 = vdwg.mxu0
        %s4405 = scalar_lea.vmem %s22, 32
        %v4406 = vld [vmem:[%s4405] sm:$0xff]
        %v4407 = vld [vmem:[%s4405 + $0x8] sm:$0xff]
        %v4408 = vld [vmem:[%s4405 + $0x10] sm:$0xff]
        %v4409 = vld [vmem:[%s4405 + $0x18] sm:$0x3f]
        %v4411 = vsel %vm4331, %v4409, 0
        %4413 = vmatprep.subr.mxu0 0.0
        %4414 = vmatpush1.msra.mxu0 0.0
        %4415 = vmatprep.subr.mxu0 0.0
        %4416 = vmatpush1.msra.mxu0 0.0
        %4417 = vmatprep.subr.mxu0 0.0
        %4418 = vmatpush1.msra.mxu0 0.0
        %4419 = vmatprep.subr.mxu0 0.0
        %4420 = vmatpush1.msra.mxu0 0.0
        %4421 = vmatprep.subr.mxu0 0.0
        %4422 = vmatpush1.msra.mxu0 0.0
        %4423 = vmatprep.subr.mxu0 0.0
        %4424 = vmatpush1.msra.mxu0 0.0
        %4425 = vmatprep.subr.mxu0 0.0
        %4426 = vmatpush1.msra.mxu0 0.0
        %4427 = vmatprep.subr.mxu0 0.0
        %4428 = vmatpush1.msra.mxu0 0.0
        %4429 = vmatprep.subr.mxu0 0.0
        %4430 = vmatpush1.msra.mxu0 0.0
        %4431 = vmatprep.subr.mxu0 0.0
        %4432 = vmatpush1.msra.mxu0 0.0
        %4433 = vmatprep.subr.mxu0 0.0
        %4434 = vmatpush1.msra.mxu0 0.0
        %4435 = vmatprep.subr.mxu0 0.0
        %4436 = vmatpush1.msra.mxu0 0.0
        %4437 = vmatprep.subr.mxu0 0.0
        %4438 = vmatpush1.msra.mxu0 %v4411
        %4439 = vmatprep.subr.mxu0 0.0
        %4440 = vmatpush1.msra.mxu0 %v4408
        %4441 = vmatprep.subr.mxu0 0.0
        %4442 = vmatpush1.msra.mxu0 %v4407
        %4443 = vmatprep.subr.mxu0 0.0
        %4444 = vmatpush1.msra.mxu0 %v4406
        %4445 = vmatprep.subr.mxu0 0.0
        %4446 = vmatpush2.msra.mxu0 0.0
        %4447 = vmatprep.subr.mxu0 0.0
        %4448 = vmatpush2.msra.mxu0 0.0
        %4449 = vmatprep.subr.mxu0 0.0
        %4450 = vmatpush2.msra.mxu0 0.0
        %4451 = vmatprep.subr.mxu0 0.0
        %4452 = vmatpush2.msra.mxu0 0.0
        %4453 = vmatprep.subr.mxu0 0.0
        %4454 = vmatpush2.msra.mxu0 0.0
        %4455 = vmatprep.subr.mxu0 0.0
        %4456 = vmatpush2.msra.mxu0 0.0
        %4457 = vmatprep.subr.mxu0 0.0
        %4458 = vmatpush2.msra.mxu0 0.0
        %4459 = vmatprep.subr.mxu0 0.0
        %4460 = vmatpush2.msra.mxu0 0.0
        %4461 = vmatprep.subr.mxu0 0.0
        %4462 = vmatpush2.msra.mxu0 0.0
        %4463 = vmatprep.subr.mxu0 0.0
        %4464 = vmatpush2.msra.mxu0 0.0
        %4465 = vmatprep.subr.mxu0 0.0
        %4466 = vmatpush2.msra.mxu0 0.0
        %4467 = vmatprep.subr.mxu0 0.0
        %4468 = vmatpush2.msra.mxu0 0.0
        %4469 = vmatprep.subr.mxu0 0.0
        %4470 = vmatpush2.msra.mxu0 0.0
        %4471 = vmatprep.subr.mxu0 0.0
        %4472 = vmatpush2.msra.mxu0 0.0
        %4473 = vmatprep.subr.mxu0 0.0
        %4474 = vmatpush2.msra.mxu0 0.0
        %4475 = vmatprep.subr.mxu0 0.0
        %4476 = vmatpush2.msra.mxu0 0.0
        %4477 = vmatprep.mubr.f32.mxu0 0.0
        %4478 = vmatmul.mubr.f32.gmra.mxu0 %v4329
        %v4479 = vpop.f32.mrf.mxu0
        %v4480 = vadd.f32 0.0, %v4479
        %v4481 = vpop.f32.mrf.mxu0
        %4482 = vdwg.mxu0
        %v4483 = vmax.f32 %v4402, %v4480
        %v4484 = vsub.f32 %v4320, %v4483
        %v4485 = vmul.f32 %v4484, 1.442695
        %v4486 = vpow.pop %v4485
        %v4487 = vld [vmem:[#allocation13] sm:$0xff]
        %v4488 = vld [vmem:[#allocation13 + $0x8] sm:$0xff]
        %v4489 = vld [vmem:[#allocation13 + $0x10] sm:$0xff]
        %v4490 = vld [vmem:[#allocation13 + $0x18] sm:$0x3f]
        %v4492 = vsel %vm4327, %v4486, 0
        %v4495 = vsel %vm4331, %v4490, 0
        %4497 = vmatprep.subr.mxu0 0.0
        %4498 = vmatpush1.msra.mxu0 0.0
        %4499 = vmatprep.subr.mxu0 0.0
        %4500 = vmatpush1.msra.mxu0 0.0
        %4501 = vmatprep.subr.mxu0 0.0
        %4502 = vmatpush1.msra.mxu0 0.0
        %4503 = vmatprep.subr.mxu0 0.0
        %4504 = vmatpush1.msra.mxu0 0.0
        %4505 = vmatprep.subr.mxu0 0.0
        %4506 = vmatpush1.msra.mxu0 0.0
        %4507 = vmatprep.subr.mxu0 0.0
        %4508 = vmatpush1.msra.mxu0 0.0
        %4509 = vmatprep.subr.mxu0 0.0
        %4510 = vmatpush1.msra.mxu0 0.0
        %4511 = vmatprep.subr.mxu0 0.0
        %4512 = vmatpush1.msra.mxu0 0.0
        %4513 = vmatprep.subr.mxu0 0.0
        %4514 = vmatpush1.msra.mxu0 0.0
        %4515 = vmatprep.subr.mxu0 0.0
        %4516 = vmatpush1.msra.mxu0 0.0
        %4517 = vmatprep.subr.mxu0 0.0
        %4518 = vmatpush1.msra.mxu0 0.0
        %4519 = vmatprep.subr.mxu0 0.0
        %4520 = vmatpush1.msra.mxu0 0.0
        %4521 = vmatprep.subr.mxu0 0.0
        %4522 = vmatpush1.msra.mxu0 %v4495
        %4523 = vmatprep.subr.mxu0 0.0
        %4524 = vmatpush1.msra.mxu0 %v4489
        %4525 = vmatprep.subr.mxu0 0.0
        %4526 = vmatpush1.msra.mxu0 %v4488
        %4527 = vmatprep.subr.mxu0 0.0
        %4528 = vmatpush1.msra.mxu0 %v4487
        %4529 = vmatprep.subr.mxu0 0.0
        %4530 = vmatpush2.msra.mxu0 0.0
        %4531 = vmatprep.subr.mxu0 0.0
        %4532 = vmatpush2.msra.mxu0 0.0
        %4533 = vmatprep.subr.mxu0 0.0
        %4534 = vmatpush2.msra.mxu0 0.0
        %4535 = vmatprep.subr.mxu0 0.0
        %4536 = vmatpush2.msra.mxu0 0.0
        %4537 = vmatprep.subr.mxu0 0.0
        %4538 = vmatpush2.msra.mxu0 0.0
        %4539 = vmatprep.subr.mxu0 0.0
        %4540 = vmatpush2.msra.mxu0 0.0
        %4541 = vmatprep.subr.mxu0 0.0
        %4542 = vmatpush2.msra.mxu0 0.0
        %4543 = vmatprep.subr.mxu0 0.0
        %4544 = vmatpush2.msra.mxu0 0.0
        %4545 = vmatprep.subr.mxu0 0.0
        %4546 = vmatpush2.msra.mxu0 0.0
        %4547 = vmatprep.subr.mxu0 0.0
        %4548 = vmatpush2.msra.mxu0 0.0
        %4549 = vmatprep.subr.mxu0 0.0
        %4550 = vmatpush2.msra.mxu0 0.0
        %4551 = vmatprep.subr.mxu0 0.0
        %4552 = vmatpush2.msra.mxu0 0.0
        %4553 = vmatprep.subr.mxu0 0.0
        %4554 = vmatpush2.msra.mxu0 0.0
        %4555 = vmatprep.subr.mxu0 0.0
        %4556 = vmatpush2.msra.mxu0 0.0
        %4557 = vmatprep.subr.mxu0 0.0
        %4558 = vmatpush2.msra.mxu0 0.0
        %4559 = vmatprep.subr.mxu0 0.0
        %4560 = vmatpush2.msra.mxu0 0.0
        %4561 = vmatprep.mubr.f32.mxu0 0.0
        %4562 = vmatmul.mubr.f32.gmra.mxu0 %v4492
        %v4563 = vpop.f32.mrf.mxu0
        %v4564 = vadd.f32 0.0, %v4563
        %v4565 = vpop.f32.mrf.mxu0
        %4566 = vdwg.mxu0
        %v4567 = vrcp.pop %v4564
        %v4568 = vmul.f32 %v4486, %v4567
        %vm4569 = vcmask 237568
        %4570 = vst.msk [vmem:[%s836] sm:$0x1] %vm4569, %v4568
        %p4571 = scmp.lt.s32.totalorder %s40, 1
        %s4572 = scalar_select %p4571, %s40, 1
        %s4573 = scalar_lea.vmem %s24, %s4572
        // Predicated region
        $region149: #{uconv1d_forward.1} parent=115 // pred_check
          %p4574 = pneg %p567
        $region150: #{uconv1d_forward.1} parent=115 // pred_check_branch
          %4576 = sbr.rel (%p4574) target = $region152
        $region151: #{uconv1d_forward.1} parent=115 // pred_region
          _
        $region152: #{uconv1d_forward.1} parent=115 // pred_fallthru
          _
      $region116: #{uconv1d_forward.1} parent=5 // pred_fallthru
        _
      %p4577 = scmp.le.s32.totalorder 2, %s35
      // Predicated region
      $region153: #{uconv1d_forward.1} parent=5 // pred_check
        %p4578 = pneg %p4577
      $region154: #{uconv1d_forward.1} parent=5 // pred_check_branch
        %4580 = sbr.rel (%p4578) target = $region156
      $region155: #{uconv1d_forward.1} parent=5 // pred_region
        %s4581 = ssub.s32 %s35, 2
        // Predicated region
        $region157: #{uconv1d_forward.1} parent=155 // pred_check
          %p4582 = pneg %p573
        $region158: #{uconv1d_forward.1} parent=155 // pred_check_branch
          %4584 = sbr.rel (%p4582) target = $region160
        $region159: #{uconv1d_forward.1} parent=155 // pred_region
          %p4585 = scmp.lt.s32.totalorder %s41, 1
          %s4586 = scalar_select %p4585, %s41, 1
          %s4587 = scalar_lea.vmem %s24, %s4586
        $region160: #{uconv1d_forward.1} parent=155 // pred_fallthru
          _
      $region156: #{uconv1d_forward.1} parent=5 // pred_fallthru
        _
    $region6: #{uconv1d_forward.1} parent=1 // loop_footer
      %s39 = sadd.s32 1, %s35
    $region7: #{uconv1d_forward.1} parent=1 // loop_footer_branch
      %34 = sbr.rel target = $region3
    $region8: #{uconv1d_forward.1} parent=1 // loop_exit
      _
    %4588 = vsyncpa [#allocation3], 1
    %s4589 = scalar_lea.sflag [#allocation3], 1
    %4590 = vsyncpa %s4589, 1
    %4591 = vsyncpa [#allocation5], 1
    %4592 = vsyncpa [#allocation8], 1
    %4593 = vsyncpa [#allocation11], 1
    %4594 = vsyncpa [#allocation14], 1

</llo_original>
